<compile_context>
chip_gen: v5e
topology: v5e:2x2
jax: 0.10.0
libtpu: 0.0.40
codegen_flags: <defaults>
</compile_context>

<pallas_src>
import jax
import jax.numpy as jnp
from jax.experimental import pallas as pl
from jax.experimental.pallas import tpu as pltpu


# ----------------------------- hyper-params (small, consistent with module) --
N_CLASSES = 4
CHANNELS = 1
IMG_SIZE = 8
IMG_SHAPE = (CHANNELS, IMG_SIZE, IMG_SIZE * 2)        # (C, H, 2H) as in cgan.py
IMG_FLAT = CHANNELS * IMG_SIZE * (IMG_SIZE * 2)       # 128
D_IN = N_CLASSES * 2 + IMG_FLAT                       # 136 = 2*n_classes + prod(img_shape)

H1, H2, H3, H4, OUT = 1024, 512, 512, 512, 2
LANE = 128
SUBLANE = 8
MAX_BATCH_TILE = 256                                  # rows per grid step for large B


def _pad_to(x, m):
    return ((x + m - 1) // m) * m


OUT_PAD = _pad_to(OUT, LANE)                          # 128


# ------------------------------------------------------------------ kernel ---
def _leaky_relu(x, slope=0.2):
    return jnp.where(x > 0, x, slope * x)


def mlp_kernel(x_ref,
               w1_ref, b1_ref,
               w2_hbm, b2_ref,
               w3_hbm, b3_ref,
               w4_hbm, b4_ref,
               w5_hbm, b5_ref,
               out_ref,
               w2_s, w3_s, w4_s, w5_s, sems):
    # w2..w5 live in HBM (memory_space=pl.ANY); copy them into VMEM scratch on
    # grid step 0 with async DMAs that overlap the previous layer's compute.
    # Scratch persists across batch-tile grid steps, so later steps reuse it.
    first = pl.program_id(0) == 0

    cp2 = pltpu.make_async_copy(w2_hbm, w2_s, sems.at[0])
    cp3 = pltpu.make_async_copy(w3_hbm, w3_s, sems.at[1])
    cp4 = pltpu.make_async_copy(w4_hbm, w4_s, sems.at[2])
    cp5 = pltpu.make_async_copy(w5_hbm, w5_s, sems.at[3])

    @pl.when(first)
    def _():
        cp2.start()

    # Layer 1: Linear(136, 1024) + LeakyReLU(0.2)
    h = jnp.dot(x_ref[...].astype(jnp.bfloat16), w1_ref[...],
                preferred_element_type=jnp.float32)
    h = _leaky_relu(h + b1_ref[...])

    @pl.when(first)
    def _():
        cp2.wait()
        cp3.start()

    # Layer 2: Linear(1024, 512) + Dropout(eval: identity) + LeakyReLU(0.2)
    h = jnp.dot(h.astype(jnp.bfloat16), w2_s[...],
                preferred_element_type=jnp.float32)
    h = _leaky_relu(h + b2_ref[...])

    @pl.when(first)
    def _():
        cp3.wait()
        cp4.start()

    # Layer 3: Linear(512, 512) + Dropout(eval) + LeakyReLU(0.2)
    h = jnp.dot(h.astype(jnp.bfloat16), w3_s[...],
                preferred_element_type=jnp.float32)
    h = _leaky_relu(h + b3_ref[...])

    @pl.when(first)
    def _():
        cp4.wait()
        cp5.start()

    # Layer 4: Linear(512, 512) + Dropout(eval) + LeakyReLU(0.2)
    h = jnp.dot(h.astype(jnp.bfloat16), w4_s[...],
                preferred_element_type=jnp.float32)
    h = _leaky_relu(h + b4_ref[...])

    @pl.when(first)
    def _():
        cp5.wait()

    # Layer 5: Linear(512, 2)  (output columns zero-padded to 128)
    h = jnp.dot(h.astype(jnp.bfloat16), w5_s[...],
                preferred_element_type=jnp.float32)
    out_ref[...] = h + b5_ref[...]


# ----------------------------------------------------------------- params ----
def init_params(key):
    """Deterministic f32 master parameters matching the nn.Module shapes."""
    ks = jax.random.split(key, 11)

    def lin(kw, kb, fan_in, fan_out):
        bound = 1.0 / jnp.sqrt(fan_in)
        w = jax.random.uniform(kw, (fan_in, fan_out), jnp.float32, -bound, bound)
        b = jax.random.uniform(kb, (fan_out,), jnp.float32, -bound, bound)
        return w, b

    emb = jax.random.normal(ks[0], (N_CLASSES * 2, N_CLASSES), jnp.float32)
    w1, b1 = lin(ks[1], ks[2], D_IN, H1)
    w2, b2 = lin(ks[3], ks[4], H1, H2)
    w3, b3 = lin(ks[5], ks[6], H2, H3)
    w4, b4 = lin(ks[7], ks[8], H3, H4)
    w5, b5 = lin(ks[9], ks[10], H4, OUT)
    return dict(emb=emb, w1=w1, b1=b1, w2=w2, b2=b2, w3=w3, b3=b3,
                w4=w4, b4=b4, w5=w5, b5=b5)


def prepare_params(params):
    """One-time kernel-layout prep: cast weights to bf16, pad w5/b5, reshape
    biases to (1, H).  Done once at init, NOT per forward call."""
    w5p = jnp.zeros((H4, OUT_PAD), jnp.bfloat16).at[:, :OUT].set(
        params["w5"].astype(jnp.bfloat16))
    b5p = jnp.zeros((1, OUT_PAD), jnp.float32).at[0, :OUT].set(params["b5"])
    return dict(
        emb=params["emb"],
        w1=params["w1"].astype(jnp.bfloat16),        # (136, 1024) — no K padding
        b1=params["b1"].reshape(1, H1),
        w2=params["w2"].astype(jnp.bfloat16),
        b2=params["b2"].reshape(1, H2),
        w3=params["w3"].astype(jnp.bfloat16),
        b3=params["b3"].reshape(1, H3),
        w4=params["w4"].astype(jnp.bfloat16),
        b4=params["b4"].reshape(1, H4),
        w5=w5p,
        b5=b5p,
    )


# ----------------------------------------------------------------- wrapper ---
def discriminator_forward(img, labels, prep):
    B = img.shape[0]
    # Glue: embedding gather + flatten + concat (matches PyTorch semantics).
    emb = jnp.take(prep["emb"], labels, axis=0).reshape(B, -1)      # [B, 2*n_classes]
    d_in = jnp.concatenate([img.reshape(B, -1), emb], axis=-1)      # [B, 136]

    # Batch tiling: single tile for small B, 256-row tiles for large B.
    if B <= MAX_BATCH_TILE:
        TB = max(SUBLANE, _pad_to(B, SUBLANE))
    else:
        TB = MAX_BATCH_TILE
    B_pad = _pad_to(B, TB)

    x = jnp.zeros((B_pad, D_IN), jnp.float32).at[:B, :].set(d_in)

    grid = (B_pad // TB,)

    out = pl.pallas_call(
        mlp_kernel,
        out_shape=jax.ShapeDtypeStruct((B_pad, OUT_PAD), jnp.float32),
        grid_spec=pltpu.PrefetchScalarGridSpec(
            num_scalar_prefetch=0,
            grid=grid,
            in_specs=[
                pl.BlockSpec((TB, D_IN), lambda i: (i, 0)),      # x (per batch tile)
                pl.BlockSpec((D_IN, H1), lambda i: (0, 0)),      # w1 bf16 (resident)
                pl.BlockSpec((1, H1), lambda i: (0, 0)),         # b1
                pl.BlockSpec(memory_space=pl.ANY),               # w2 (HBM, manual DMA)
                pl.BlockSpec((1, H2), lambda i: (0, 0)),         # b2
                pl.BlockSpec(memory_space=pl.ANY),               # w3
                pl.BlockSpec((1, H3), lambda i: (0, 0)),         # b3
                pl.BlockSpec(memory_space=pl.ANY),               # w4
                pl.BlockSpec((1, H4), lambda i: (0, 0)),         # b4
                pl.BlockSpec(memory_space=pl.ANY),               # w5
                pl.BlockSpec((1, OUT_PAD), lambda i: (0, 0)),    # b5
            ],
            out_specs=pl.BlockSpec((TB, OUT_PAD), lambda i: (i, 0)),
            scratch_shapes=[
                pltpu.VMEM((H1, H2), jnp.bfloat16),              # w2 scratch
                pltpu.VMEM((H2, H3), jnp.bfloat16),              # w3 scratch
                pltpu.VMEM((H3, H4), jnp.bfloat16),              # w4 scratch
                pltpu.VMEM((H4, OUT_PAD), jnp.bfloat16),         # w5 scratch
                pltpu.SemaphoreType.DMA((4,)),
            ],
        ),
        compiler_params=pltpu.CompilerParams(
            # "arbitrary": weight-scratch DMAs are issued only on grid step 0
            # and reused by later steps, which requires sequential execution
            # of the batch axis on a single core.
            dimension_semantics=("arbitrary",),
        ),
    )(x,
      prep["w1"], prep["b1"],
      prep["w2"], prep["b2"],
      prep["w3"], prep["b3"],
      prep["w4"], prep["b4"],
      prep["w5"], prep["b5"])

    return out[:B, :OUT]                                            # [B, 2]


# -------------------------------------------------------------- reference ----
def reference_forward(img, labels, params):
    """Pure-JAX reference with the same precision policy as the kernel
    (bf16 weights & activations into each matmul, f32 accumulation)."""
    B = img.shape[0]
    emb = jnp.take(params["emb"], labels, axis=0).reshape(B, -1)
    h = jnp.concatenate([img.reshape(B, -1), emb], axis=-1)
    lrelu = lambda x: jnp.where(x > 0, x, 0.2 * x)

    def lin(h, w, b):
        return jnp.dot(h.astype(jnp.bfloat16), w.astype(jnp.bfloat16),
                       preferred_element_type=jnp.float32) + b

    h = lrelu(lin(h, params["w1"], params["b1"]))
    h = lrelu(lin(h, params["w2"], params["b2"]))
    h = lrelu(lin(h, params["w3"], params["b3"]))
    h = lrelu(lin(h, params["w4"], params["b4"]))
    return lin(h, params["w5"], params["b5"])


# ------------------------------------------------------------------- main ----
if __name__ == "__main__":
    key = jax.random.PRNGKey(0)
    k_img, k_lbl, k_par = jax.random.split(key, 3)

    B = 2
    img = jax.random.normal(k_img, (B,) + IMG_SHAPE, jnp.float32)    # [2, 1, 8, 16]
    labels = jax.random.randint(k_lbl, (B, 2), 0, N_CLASSES * 2)     # [2, 2] ints
    params = init_params(k_par)
    prep = prepare_params(params)                                    # one-time prep

    validity = discriminator_forward(img, labels, prep)
    validity = jax.block_until_ready(validity)

    ref = reference_forward(img, labels, params)
    assert validity.shape == (B, 2), validity.shape
    assert jnp.allclose(validity, ref, atol=1e-2, rtol=1e-2), (validity, ref)

    print("KERNEL_OK")
</pallas_src>

<mosaic_0001>
module attributes {stable_mosaic.version = 11 : i64} {
  func.func @mlp_kernel(%arg0: i32, %arg1: memref<8x136xf32, #tpu.memory_space<vmem>>, %arg2: memref<136x1024xbf16, #tpu.memory_space<vmem>>, %arg3: memref<1x1024xf32, #tpu.memory_space<vmem>>, %arg4: memref<1024x512xbf16, #tpu.memory_space<any>>, %arg5: memref<1x512xf32, #tpu.memory_space<vmem>>, %arg6: memref<512x512xbf16, #tpu.memory_space<any>>, %arg7: memref<1x512xf32, #tpu.memory_space<vmem>>, %arg8: memref<512x512xbf16, #tpu.memory_space<any>>, %arg9: memref<1x512xf32, #tpu.memory_space<vmem>>, %arg10: memref<512x128xbf16, #tpu.memory_space<any>>, %arg11: memref<1x128xf32, #tpu.memory_space<vmem>>, %arg12: memref<8x128xf32, #tpu.memory_space<vmem>>, %arg13: memref<1024x512xbf16, #tpu.memory_space<vmem>>, %arg14: memref<512x512xbf16, #tpu.memory_space<vmem>>, %arg15: memref<512x512xbf16, #tpu.memory_space<vmem>>, %arg16: memref<512x128xbf16, #tpu.memory_space<vmem>>, %arg17: memref<4x!tpu.dma_semaphore, #tpu.memory_space<semaphore_mem>>) attributes {dimension_semantics = [#tpu.dimension_semantics<arbitrary>], iteration_bounds = array<i64: 1>, scalar_prefetch = 0 : i64, scratch_operands = 5 : i64, tpu.core_type = #tpu.core_type<tc>, window_params = [{transform_indices = @transform_0, window_bounds = array<i64: 8, 136>}, {pipeline_mode = #tpu.pipeline_mode<synchronous>, transform_indices = @transform_1, window_bounds = array<i64: 136, 1024>}, {pipeline_mode = #tpu.pipeline_mode<synchronous>, transform_indices = @transform_2, window_bounds = array<i64: 1, 1024>}, {}, {pipeline_mode = #tpu.pipeline_mode<synchronous>, transform_indices = @transform_4, window_bounds = array<i64: 1, 512>}, {}, {pipeline_mode = #tpu.pipeline_mode<synchronous>, transform_indices = @transform_6, window_bounds = array<i64: 1, 512>}, {}, {pipeline_mode = #tpu.pipeline_mode<synchronous>, transform_indices = @transform_8, window_bounds = array<i64: 1, 512>}, {}, {pipeline_mode = #tpu.pipeline_mode<synchronous>, transform_indices = @transform_10, window_bounds = array<i64: 1, 128>}, {transform_indices = @transform_11, window_bounds = array<i64: 8, 128>}]} {
    %c0_i32 = arith.constant 0 : i32
    %0 = arith.cmpi eq, %arg0, %c0_i32 : i32
    %1 = arith.extui %0 : i1 to i32
    %c0_i32_0 = arith.constant 0 : i32
    %c0_i32_1 = arith.constant 0 : i32
    %2 = arith.cmpi ne, %1, %c0_i32_1 : i32
    scf.if %2 {
      %63 = tpu.memref_slice %arg17[%c0_i32_0] : memref<4x!tpu.dma_semaphore, #tpu.memory_space<semaphore_mem>> -> memref<1x!tpu.dma_semaphore, #tpu.memory_space<semaphore_mem>>
      %64 = tpu.memref_squeeze %63 : memref<1x!tpu.dma_semaphore, #tpu.memory_space<semaphore_mem>> -> memref<!tpu.dma_semaphore, #tpu.memory_space<semaphore_mem>>
      tpu.enqueue_dma source(%arg4 : memref<1024x512xbf16, #tpu.memory_space<any>>) target(%arg13 : memref<1024x512xbf16, #tpu.memory_space<vmem>>) target_semaphore(%64 : memref<!tpu.dma_semaphore, #tpu.memory_space<semaphore_mem>>)
    } else {
    }
    %c0 = arith.constant 0 : index
    %c0_2 = arith.constant 0 : index
    %3 = vector.load %arg1[%c0, %c0_2] : memref<8x136xf32, #tpu.memory_space<vmem>>, vector<8x136xf32>
    %4 = arith.truncf %3 : vector<8x136xf32> to vector<8x136xbf16>
    %c0_3 = arith.constant 0 : index
    %c0_4 = arith.constant 0 : index
    %5 = vector.load %arg2[%c0_3, %c0_4] : memref<136x1024xbf16, #tpu.memory_space<vmem>>, vector<136x1024xbf16>
    %cst = arith.constant dense<0.000000e+00> : vector<8x1024xf32>
    %6 = tpu.matmul %4, %5, %cst {dimension_numbers = #tpu.dot_dimension_numbers<[1], [0], [0], [1], [0, 0, 1, 1], [], []>} : vector<8x136xbf16>, vector<136x1024xbf16>, vector<8x1024xf32> -> vector<8x1024xf32>
    %c0_5 = arith.constant 0 : index
    %c0_6 = arith.constant 0 : index
    %7 = vector.load %arg3[%c0_5, %c0_6] : memref<1x1024xf32, #tpu.memory_space<vmem>>, vector<1x1024xf32>
    %8 = vector.broadcast %7 : vector<1x1024xf32> to vector<8x1024xf32>
    %9 = arith.addf %6, %8 : vector<8x1024xf32>
    %cst_7 = arith.constant 0.000000e+00 : f32
    %10 = vector.broadcast %cst_7 : f32 to vector<8x1024xf32>
    %11 = arith.cmpf ogt, %9, %10 : vector<8x1024xf32>
    %cst_8 = arith.constant 2.000000e-01 : f32
    %12 = vector.broadcast %cst_8 : f32 to vector<8x1024xf32>
    %13 = arith.mulf %12, %9 : vector<8x1024xf32>
    %14 = arith.select %11, %9, %13 : vector<8x1024xi1>, vector<8x1024xf32>
    %15 = arith.extui %0 : i1 to i32
    %c0_i32_9 = arith.constant 0 : i32
    %c1_i32 = arith.constant 1 : i32
    %c0_i32_10 = arith.constant 0 : i32
    %16 = arith.cmpi ne, %15, %c0_i32_10 : i32
    scf.if %16 {
      %63 = tpu.memref_slice %arg17[%c0_i32_9] : memref<4x!tpu.dma_semaphore, #tpu.memory_space<semaphore_mem>> -> memref<1x!tpu.dma_semaphore, #tpu.memory_space<semaphore_mem>>
      %64 = tpu.memref_squeeze %63 : memref<1x!tpu.dma_semaphore, #tpu.memory_space<semaphore_mem>> -> memref<!tpu.dma_semaphore, #tpu.memory_space<semaphore_mem>>
      tpu.wait_dma2 semaphore(%64 : memref<!tpu.dma_semaphore, #tpu.memory_space<semaphore_mem>>) src(%arg4 : memref<1024x512xbf16, #tpu.memory_space<any>>) dst(%arg13 : memref<1024x512xbf16, #tpu.memory_space<vmem>>)
      %65 = tpu.memref_slice %arg17[%c1_i32] : memref<4x!tpu.dma_semaphore, #tpu.memory_space<semaphore_mem>> -> memref<1x!tpu.dma_semaphore, #tpu.memory_space<semaphore_mem>>
      %66 = tpu.memref_squeeze %65 : memref<1x!tpu.dma_semaphore, #tpu.memory_space<semaphore_mem>> -> memref<!tpu.dma_semaphore, #tpu.memory_space<semaphore_mem>>
      tpu.enqueue_dma source(%arg6 : memref<512x512xbf16, #tpu.memory_space<any>>) target(%arg14 : memref<512x512xbf16, #tpu.memory_space<vmem>>) target_semaphore(%66 : memref<!tpu.dma_semaphore, #tpu.memory_space<semaphore_mem>>)
    } else {
    }
    %17 = arith.truncf %14 : vector<8x1024xf32> to vector<8x1024xbf16>
    %c0_11 = arith.constant 0 : index
    %c0_12 = arith.constant 0 : index
    %18 = vector.load %arg13[%c0_11, %c0_12] : memref<1024x512xbf16, #tpu.memory_space<vmem>>, vector<1024x512xbf16>
    %cst_13 = arith.constant dense<0.000000e+00> : vector<8x512xf32>
    %19 = tpu.matmul %17, %18, %cst_13 {dimension_numbers = #tpu.dot_dimension_numbers<[1], [0], [0], [1], [0, 0, 1, 1], [], []>} : vector<8x1024xbf16>, vector<1024x512xbf16>, vector<8x512xf32> -> vector<8x512xf32>
    %c0_14 = arith.constant 0 : index
    %c0_15 = arith.constant 0 : index
    %20 = vector.load %arg5[%c0_14, %c0_15] : memref<1x512xf32, #tpu.memory_space<vmem>>, vector<1x512xf32>
    %21 = vector.broadcast %20 : vector<1x512xf32> to vector<8x512xf32>
    %22 = arith.addf %19, %21 : vector<8x512xf32>
    %cst_16 = arith.constant 0.000000e+00 : f32
    %23 = vector.broadcast %cst_16 : f32 to vector<8x512xf32>
    %24 = arith.cmpf ogt, %22, %23 : vector<8x512xf32>
    %cst_17 = arith.constant 2.000000e-01 : f32
    %25 = vector.broadcast %cst_17 : f32 to vector<8x512xf32>
    %26 = arith.mulf %25, %22 : vector<8x512xf32>
    %27 = arith.select %24, %22, %26 : vector<8x512xi1>, vector<8x512xf32>
    %28 = arith.extui %0 : i1 to i32
    %c1_i32_18 = arith.constant 1 : i32
    %c2_i32 = arith.constant 2 : i32
    %c0_i32_19 = arith.constant 0 : i32
    %29 = arith.cmpi ne, %28, %c0_i32_19 : i32
    scf.if %29 {
      %63 = tpu.memref_slice %arg17[%c1_i32_18] : memref<4x!tpu.dma_semaphore, #tpu.memory_space<semaphore_mem>> -> memref<1x!tpu.dma_semaphore, #tpu.memory_space<semaphore_mem>>
      %64 = tpu.memref_squeeze %63 : memref<1x!tpu.dma_semaphore, #tpu.memory_space<semaphore_mem>> -> memref<!tpu.dma_semaphore, #tpu.memory_space<semaphore_mem>>
      tpu.wait_dma2 semaphore(%64 : memref<!tpu.dma_semaphore, #tpu.memory_space<semaphore_mem>>) src(%arg6 : memref<512x512xbf16, #tpu.memory_space<any>>) dst(%arg14 : memref<512x512xbf16, #tpu.memory_space<vmem>>)
      %65 = tpu.memref_slice %arg17[%c2_i32] : memref<4x!tpu.dma_semaphore, #tpu.memory_space<semaphore_mem>> -> memref<1x!tpu.dma_semaphore, #tpu.memory_space<semaphore_mem>>
      %66 = tpu.memref_squeeze %65 : memref<1x!tpu.dma_semaphore, #tpu.memory_space<semaphore_mem>> -> memref<!tpu.dma_semaphore, #tpu.memory_space<semaphore_mem>>
      tpu.enqueue_dma source(%arg8 : memref<512x512xbf16, #tpu.memory_space<any>>) target(%arg15 : memref<512x512xbf16, #tpu.memory_space<vmem>>) target_semaphore(%66 : memref<!tpu.dma_semaphore, #tpu.memory_space<semaphore_mem>>)
    } else {
    }
    %30 = arith.truncf %27 : vector<8x512xf32> to vector<8x512xbf16>
    %c0_20 = arith.constant 0 : index
    %c0_21 = arith.constant 0 : index
    %31 = vector.load %arg14[%c0_20, %c0_21] : memref<512x512xbf16, #tpu.memory_space<vmem>>, vector<512x512xbf16>
    %cst_22 = arith.constant dense<0.000000e+00> : vector<8x512xf32>
    %32 = tpu.matmul %30, %31, %cst_22 {dimension_numbers = #tpu.dot_dimension_numbers<[1], [0], [0], [1], [0, 0, 1, 1], [], []>} : vector<8x512xbf16>, vector<512x512xbf16>, vector<8x512xf32> -> vector<8x512xf32>
    %c0_23 = arith.constant 0 : index
    %c0_24 = arith.constant 0 : index
    %33 = vector.load %arg7[%c0_23, %c0_24] : memref<1x512xf32, #tpu.memory_space<vmem>>, vector<1x512xf32>
    %34 = vector.broadcast %33 : vector<1x512xf32> to vector<8x512xf32>
    %35 = arith.addf %32, %34 : vector<8x512xf32>
    %cst_25 = arith.constant 0.000000e+00 : f32
    %36 = vector.broadcast %cst_25 : f32 to vector<8x512xf32>
    %37 = arith.cmpf ogt, %35, %36 : vector<8x512xf32>
    %cst_26 = arith.constant 2.000000e-01 : f32
    %38 = vector.broadcast %cst_26 : f32 to vector<8x512xf32>
    %39 = arith.mulf %38, %35 : vector<8x512xf32>
    %40 = arith.select %37, %35, %39 : vector<8x512xi1>, vector<8x512xf32>
    %41 = arith.extui %0 : i1 to i32
    %c2_i32_27 = arith.constant 2 : i32
    %c3_i32 = arith.constant 3 : i32
    %c0_i32_28 = arith.constant 0 : i32
    %42 = arith.cmpi ne, %41, %c0_i32_28 : i32
    scf.if %42 {
      %63 = tpu.memref_slice %arg17[%c2_i32_27] : memref<4x!tpu.dma_semaphore, #tpu.memory_space<semaphore_mem>> -> memref<1x!tpu.dma_semaphore, #tpu.memory_space<semaphore_mem>>
      %64 = tpu.memref_squeeze %63 : memref<1x!tpu.dma_semaphore, #tpu.memory_space<semaphore_mem>> -> memref<!tpu.dma_semaphore, #tpu.memory_space<semaphore_mem>>
      tpu.wait_dma2 semaphore(%64 : memref<!tpu.dma_semaphore, #tpu.memory_space<semaphore_mem>>) src(%arg8 : memref<512x512xbf16, #tpu.memory_space<any>>) dst(%arg15 : memref<512x512xbf16, #tpu.memory_space<vmem>>)
      %65 = tpu.memref_slice %arg17[%c3_i32] : memref<4x!tpu.dma_semaphore, #tpu.memory_space<semaphore_mem>> -> memref<1x!tpu.dma_semaphore, #tpu.memory_space<semaphore_mem>>
      %66 = tpu.memref_squeeze %65 : memref<1x!tpu.dma_semaphore, #tpu.memory_space<semaphore_mem>> -> memref<!tpu.dma_semaphore, #tpu.memory_space<semaphore_mem>>
      tpu.enqueue_dma source(%arg10 : memref<512x128xbf16, #tpu.memory_space<any>>) target(%arg16 : memref<512x128xbf16, #tpu.memory_space<vmem>>) target_semaphore(%66 : memref<!tpu.dma_semaphore, #tpu.memory_space<semaphore_mem>>)
    } else {
    }
    %43 = arith.truncf %40 : vector<8x512xf32> to vector<8x512xbf16>
    %c0_29 = arith.constant 0 : index
    %c0_30 = arith.constant 0 : index
    %44 = vector.load %arg15[%c0_29, %c0_30] : memref<512x512xbf16, #tpu.memory_space<vmem>>, vector<512x512xbf16>
    %cst_31 = arith.constant dense<0.000000e+00> : vector<8x512xf32>
    %45 = tpu.matmul %43, %44, %cst_31 {dimension_numbers = #tpu.dot_dimension_numbers<[1], [0], [0], [1], [0, 0, 1, 1], [], []>} : vector<8x512xbf16>, vector<512x512xbf16>, vector<8x512xf32> -> vector<8x512xf32>
    %c0_32 = arith.constant 0 : index
    %c0_33 = arith.constant 0 : index
    %46 = vector.load %arg9[%c0_32, %c0_33] : memref<1x512xf32, #tpu.memory_space<vmem>>, vector<1x512xf32>
    %47 = vector.broadcast %46 : vector<1x512xf32> to vector<8x512xf32>
    %48 = arith.addf %45, %47 : vector<8x512xf32>
    %cst_34 = arith.constant 0.000000e+00 : f32
    %49 = vector.broadcast %cst_34 : f32 to vector<8x512xf32>
    %50 = arith.cmpf ogt, %48, %49 : vector<8x512xf32>
    %cst_35 = arith.constant 2.000000e-01 : f32
    %51 = vector.broadcast %cst_35 : f32 to vector<8x512xf32>
    %52 = arith.mulf %51, %48 : vector<8x512xf32>
    %53 = arith.select %50, %48, %52 : vector<8x512xi1>, vector<8x512xf32>
    %54 = arith.extui %0 : i1 to i32
    %c3_i32_36 = arith.constant 3 : i32
    %c0_i32_37 = arith.constant 0 : i32
    %55 = arith.cmpi ne, %54, %c0_i32_37 : i32
    scf.if %55 {
      %63 = tpu.memref_slice %arg17[%c3_i32_36] : memref<4x!tpu.dma_semaphore, #tpu.memory_space<semaphore_mem>> -> memref<1x!tpu.dma_semaphore, #tpu.memory_space<semaphore_mem>>
      %64 = tpu.memref_squeeze %63 : memref<1x!tpu.dma_semaphore, #tpu.memory_space<semaphore_mem>> -> memref<!tpu.dma_semaphore, #tpu.memory_space<semaphore_mem>>
      tpu.wait_dma2 semaphore(%64 : memref<!tpu.dma_semaphore, #tpu.memory_space<semaphore_mem>>) src(%arg10 : memref<512x128xbf16, #tpu.memory_space<any>>) dst(%arg16 : memref<512x128xbf16, #tpu.memory_space<vmem>>)
    } else {
    }
    %56 = arith.truncf %53 : vector<8x512xf32> to vector<8x512xbf16>
    %c0_38 = arith.constant 0 : index
    %c0_39 = arith.constant 0 : index
    %57 = vector.load %arg16[%c0_38, %c0_39] : memref<512x128xbf16, #tpu.memory_space<vmem>>, vector<512x128xbf16>
    %cst_40 = arith.constant dense<0.000000e+00> : vector<8x128xf32>
    %58 = tpu.matmul %56, %57, %cst_40 {dimension_numbers = #tpu.dot_dimension_numbers<[1], [0], [0], [1], [0, 0, 1, 1], [], []>} : vector<8x512xbf16>, vector<512x128xbf16>, vector<8x128xf32> -> vector<8x128xf32>
    %c0_41 = arith.constant 0 : index
    %c0_42 = arith.constant 0 : index
    %59 = vector.load %arg11[%c0_41, %c0_42] : memref<1x128xf32, #tpu.memory_space<vmem>>, vector<1x128xf32>
    %60 = vector.broadcast %59 : vector<1x128xf32> to vector<8x128xf32>
    %61 = arith.addf %58, %60 : vector<8x128xf32>
    %c0_43 = arith.constant 0 : index
    %c0_44 = arith.constant 0 : index
    %62 = vector.load %arg12[%c0_43, %c0_44] : memref<8x128xf32, #tpu.memory_space<vmem>>, vector<8x128xf32>
    tpu.vector_store %arg12[%c0_43, %c0_44], %61 {strides = array<i32>} : memref<8x128xf32, #tpu.memory_space<vmem>>, vector<8x128xf32>,
    return
  }
  func.func @transform_0(%arg0: i32) -> (i32, i32) {
    %c0_i32 = arith.constant 0 : i32
    %c0_i32_0 = arith.constant 0 : i32
    return %arg0, %c0_i32 : i32, i32
  }
  func.func @transform_1(%arg0: i32) -> (i32, i32) {
    %c0_i32 = arith.constant 0 : i32
    %c0_i32_0 = arith.constant 0 : i32
    %c0_i32_1 = arith.constant 0 : i32
    return %c0_i32, %c0_i32_0 : i32, i32
  }
  func.func @transform_2(%arg0: i32) -> (i32, i32) {
    %c0_i32 = arith.constant 0 : i32
    %c0_i32_0 = arith.constant 0 : i32
    %c0_i32_1 = arith.constant 0 : i32
    return %c0_i32, %c0_i32_0 : i32, i32
  }
  func.func @transform_4(%arg0: i32) -> (i32, i32) {
    %c0_i32 = arith.constant 0 : i32
    %c0_i32_0 = arith.constant 0 : i32
    %c0_i32_1 = arith.constant 0 : i32
    return %c0_i32, %c0_i32_0 : i32, i32
  }
  func.func @transform_6(%arg0: i32) -> (i32, i32) {
    %c0_i32 = arith.constant 0 : i32
    %c0_i32_0 = arith.constant 0 : i32
    %c0_i32_1 = arith.constant 0 : i32
    return %c0_i32, %c0_i32_0 : i32, i32
  }
  func.func @transform_8(%arg0: i32) -> (i32, i32) {
    %c0_i32 = arith.constant 0 : i32
    %c0_i32_0 = arith.constant 0 : i32
    %c0_i32_1 = arith.constant 0 : i32
    return %c0_i32, %c0_i32_0 : i32, i32
  }
  func.func @transform_10(%arg0: i32) -> (i32, i32) {
    %c0_i32 = arith.constant 0 : i32
    %c0_i32_0 = arith.constant 0 : i32
    %c0_i32_1 = arith.constant 0 : i32
    return %c0_i32, %c0_i32_0 : i32, i32
  }
  func.func @transform_11(%arg0: i32) -> (i32, i32) {
    %c0_i32 = arith.constant 0 : i32
    %c0_i32_0 = arith.constant 0 : i32
    return %arg0, %c0_i32 : i32, i32
  }
}

</mosaic_0001>

<llo_original>
// kernel: tpu_custom_call.1
$region0: #{tpu_custom_call.1}
  #allocation0 [shape = 'u32[]', space=smem, size = 0x4, offset = 0x4, fixed_abs, tag = 'smem constant byte address 0x4 - core index']
  #allocation1 [shape = 'u32[72,128]{1,0:T(1,128)}', space=vmem, size = 0x9000, scoped, tag = 'internal scratch']
  #allocation2 [shape = 'bf16[1024,512]{1,0:T(8,128)(2,1)}', space=vmem, size = 0x100000, scoped, tag = 'scratch operand']
  #allocation3 [shape = 'bf16[512,512]{1,0:T(8,128)(2,1)}', space=vmem, size = 0x80000, scoped, tag = 'scratch operand']
  #allocation4 [shape = 'bf16[512,512]{1,0:T(8,128)(2,1)}', space=vmem, size = 0x80000, scoped, tag = 'scratch operand']
  #allocation5 [shape = 'bf16[512,128]{1,0:T(8,128)(2,1)}', space=vmem, size = 0x20000, scoped, tag = 'scratch operand']
  #allocation6 [shape = 's32[4]{0}', space=sflag, size = 0x10, scoped, tag = 'scratch operand']
  #allocation17 [shape = 's32[]', space=sflag, size = 0x4, offset = 0, fixed_abs, tag = 'sflag constant byte address 0x0 - dummy sync flag']
  #allocation18 [shape = 's32[]', space=sflag, size = 0x4, offset = 0, fixed_abs, tag = 'sflag constant byte address 0x0 - dummy sync flag']
  #allocation19 [shape = 'u32[]', space=smem, size = 0x4, offset = 0x44, fixed_abs, tag = 'smem constant byte address 0x44 - assertion arg 0']
  #allocation20 [shape = 'u32[]', space=smem, size = 0x4, offset = 0x48, fixed_abs, tag = 'smem constant byte address 0x48 - assertion arg 1']
  #allocation21 [shape = 's32[]', space=sflag, size = 0x4, offset = 0, fixed_abs, tag = 'sflag constant byte address 0x0 - dummy sync flag']
  #allocation22 [shape = 's32[]', space=sflag, size = 0x4, offset = 0, fixed_abs, tag = 'sflag constant byte address 0x0 - dummy sync flag']
  #allocation23 [shape = 's32[]', space=sflag, size = 0x4, offset = 0, fixed_abs, tag = 'sflag constant byte address 0x0 - dummy sync flag']
  #allocation24 [shape = 's32[]', space=sflag, size = 0x4, offset = 0, fixed_abs, tag = 'sflag constant byte address 0x0 - dummy sync flag']
  #allocation25 [shape = 's32[]', space=sflag, size = 0x4, offset = 0, fixed_abs, tag = 'sflag constant byte address 0x0 - dummy sync flag']
  #allocation26 [shape = 's32[]', space=sflag, size = 0x4, offset = 0, fixed_abs, tag = 'sflag constant byte address 0x0 - dummy sync flag']
  %s0 = inlined_call_operand.hbm [shape: f32[8,136], index: 0, kind: input, shape index: {}]
  %s1 = inlined_call_operand.hbm [shape: bf16[136,1024], index: 1, kind: input, shape index: {}]
  %s2 = inlined_call_operand.hbm [shape: f32[1,1024], index: 2, kind: input, shape index: {}]
  %s3 = inlined_call_operand.hbm [shape: bf16[1024,512], index: 3, kind: input, shape index: {}]
  %s4 = inlined_call_operand.hbm [shape: f32[1,512], index: 4, kind: input, shape index: {}]
  %s5 = inlined_call_operand.hbm [shape: bf16[512,512], index: 5, kind: input, shape index: {}]
  %s6 = inlined_call_operand.vmem [shape: f32[1,512], index: 6, kind: input, shape index: {}]
  %s7 = inlined_call_operand.hbm [shape: bf16[512,512], index: 7, kind: input, shape index: {}]
  %s8 = inlined_call_operand.hbm [shape: f32[1,512], index: 8, kind: input, shape index: {}]
  %s9 = inlined_call_operand.hbm [shape: bf16[512,128], index: 9, kind: input, shape index: {}]
  %s10 = inlined_call_operand.vmem [shape: f32[1,128], index: 10, kind: input, shape index: {}]
  %s11 = inlined_call_operand.hbm [shape: f32[8,128], index: 11, kind: output, shape index: {}]
  %s12 = sld [smem:[#allocation0]]
  $region94: #{tpu_custom_call.1} parent=0
    _
  %s14 = ssub.s32 1, %s12
  %s15 = scalar_select 0, %s14, %s12
  $region1: #{tpu_custom_call.1} parent=0
    #allocation7 [shape = 'u8[8192]{0}', space=vmem, size = 0x2000, scoped, tag = 'input window, operand 0, single buffered']
    #allocation8 [shape = 's32[1]{0}', space=sflag, size = 0x4, scoped, tag = 'scoped memory for tpu_custom_call.1']
    #allocation9 [shape = 's32[1]{0}', space=sflag, size = 0x4, scoped, tag = 'scoped memory for tpu_custom_call.1']
    #allocation10 [shape = 'u8[278528]{0}', space=vmem, size = 0x44000, scoped, tag = 'input window, operand 1, single buffered']
    #allocation11 [shape = 's32[1]{0}', space=sflag, size = 0x4, scoped, tag = 'scoped memory for tpu_custom_call.1']
    #allocation12 [shape = 'u8[4096]{0}', space=vmem, size = 0x1000, scoped, tag = 'input window, operand 2, single buffered']
    #allocation13 [shape = 'u8[2048]{0}', space=vmem, size = 0x800, scoped, tag = 'input window, operand 4, single buffered']
    #allocation14 [shape = 's32[1]{0}', space=sflag, size = 0x4, scoped, tag = 'scoped memory for tpu_custom_call.1']
    #allocation15 [shape = 'u8[2048]{0}', space=vmem, size = 0x800, scoped, tag = 'input window, operand 8, single buffered']
    #allocation16 [shape = 'u8[4096]{0}', space=vmem, size = 0x1000, scoped, tag = 'output window, operand 0, single buffered']
    %16 = vsyncpa [#allocation8], 0
    %17 = vsyncpa [#allocation11], 0
    %18 = vsyncpa [#allocation14], 0
    %19 = vsyncpa [#allocation9], 0
    // Predicated region
    $region2: #{tpu_custom_call.1} parent=1 // pred_check
      _
    $region3: #{tpu_custom_call.1} parent=1 // pred_check_branch
      %21 = sbr.rel (0) target = $region5
    $region4: #{tpu_custom_call.1} parent=1 // pred_region
      %23 = vsyncadd [#allocation8], 0
      %s25 = sshll.u32 %s0, 4
      %s26 = int_to_ptr.hbm [resolvable:$true] %s25
      %s27 = sshll.u32 [#allocation7], 4
      %s28 = int_to_ptr.vmem [resolvable:$true] %s27
      %30 = dma.hbm_to_vmem [thread:$0]  %s26, 256, %s28, [#allocation8]
    $region5: #{tpu_custom_call.1} parent=1 // pred_fallthru
      _
    // Predicated region
    $region6: #{tpu_custom_call.1} parent=1 // pred_check
      _
    $region7: #{tpu_custom_call.1} parent=1 // pred_check_branch
      %32 = sbr.rel (0) target = $region9
    $region8: #{tpu_custom_call.1} parent=1 // pred_region
      %34 = vsyncadd [#allocation11], 0
      %s35 = sshll.u32 %s1, 4
      %s36 = int_to_ptr.hbm [resolvable:$true] %s35
      %s37 = sshll.u32 [#allocation10], 4
      %s38 = int_to_ptr.vmem [resolvable:$true] %s37
      %43 = dma.hbm_to_vmem [thread:$0]  %s36, 8704, %s38, [#allocation11], 512, 512, 32
    $region9: #{tpu_custom_call.1} parent=1 // pred_fallthru
      _
    // Predicated region
    $region10: #{tpu_custom_call.1} parent=1 // pred_check
      _
    $region11: #{tpu_custom_call.1} parent=1 // pred_check_branch
      %45 = sbr.rel (0) target = $region13
    $region12: #{tpu_custom_call.1} parent=1 // pred_region
      %47 = vsyncadd [#allocation11], 0
      %s49 = sshll.u32 %s2, 4
      %s50 = int_to_ptr.hbm [resolvable:$true] %s49
      %s51 = sshll.u32 [#allocation12], 4
      %s52 = int_to_ptr.vmem [resolvable:$true] %s51
      %54 = dma.hbm_to_vmem [thread:$0]  %s50, 128, %s52, [#allocation11]
    $region13: #{tpu_custom_call.1} parent=1 // pred_fallthru
      _
    // Predicated region
    $region14: #{tpu_custom_call.1} parent=1 // pred_check
      _
    $region15: #{tpu_custom_call.1} parent=1 // pred_check_branch
      %56 = sbr.rel (0) target = $region17
    $region16: #{tpu_custom_call.1} parent=1 // pred_region
      %58 = vsyncadd [#allocation14], 0
      %s60 = sshll.u32 %s4, 4
      %s61 = int_to_ptr.hbm [resolvable:$true] %s60
      %s62 = sshll.u32 [#allocation13], 4
      %s63 = int_to_ptr.vmem [resolvable:$true] %s62
      %65 = dma.hbm_to_vmem [thread:$0]  %s61, 64, %s63, [#allocation14]
    $region17: #{tpu_custom_call.1} parent=1 // pred_fallthru
      _
    // Predicated region
    $region18: #{tpu_custom_call.1} parent=1 // pred_check
      _
    $region19: #{tpu_custom_call.1} parent=1 // pred_check_branch
      %67 = sbr.rel (0) target = $region21
    $region20: #{tpu_custom_call.1} parent=1 // pred_region
      _
    $region21: #{tpu_custom_call.1} parent=1 // pred_fallthru
      _
    // Predicated region
    $region22: #{tpu_custom_call.1} parent=1 // pred_check
      _
    $region23: #{tpu_custom_call.1} parent=1 // pred_check_branch
      %69 = sbr.rel (0) target = $region25
    $region24: #{tpu_custom_call.1} parent=1 // pred_region
      %71 = vsyncadd [#allocation14], 0
      %s73 = sshll.u32 %s8, 4
      %s74 = int_to_ptr.hbm [resolvable:$true] %s73
      %s75 = sshll.u32 [#allocation15], 4
      %s76 = int_to_ptr.vmem [resolvable:$true] %s75
      %78 = dma.hbm_to_vmem [thread:$0]  %s74, 64, %s76, [#allocation14]
    $region25: #{tpu_custom_call.1} parent=1 // pred_fallthru
      _
    // Predicated region
    $region26: #{tpu_custom_call.1} parent=1 // pred_check
      _
    $region27: #{tpu_custom_call.1} parent=1 // pred_check_branch
      %80 = sbr.rel (0) target = $region29
    $region28: #{tpu_custom_call.1} parent=1 // pred_region
      _
    $region29: #{tpu_custom_call.1} parent=1 // pred_fallthru
      _
    // Predicated region
    $region30: #{tpu_custom_call.1} parent=1 // pred_check
      _
    $region31: #{tpu_custom_call.1} parent=1 // pred_check_branch
      %82 = sbr.rel (0) target = $region33
    $region32: #{tpu_custom_call.1} parent=1 // pred_region
      %84 = dma.done [#allocation8], 256
    $region33: #{tpu_custom_call.1} parent=1 // pred_fallthru
      _
    // Predicated region
    $region34: #{tpu_custom_call.1} parent=1 // pred_check
      _
    $region35: #{tpu_custom_call.1} parent=1 // pred_check_branch
      %86 = sbr.rel (0) target = $region37
    $region36: #{tpu_custom_call.1} parent=1 // pred_region
      %88 = dma.done [#allocation11], 8704
    $region37: #{tpu_custom_call.1} parent=1 // pred_fallthru
      _
    // Predicated region
    $region38: #{tpu_custom_call.1} parent=1 // pred_check
      _
    $region39: #{tpu_custom_call.1} parent=1 // pred_check_branch
      %90 = sbr.rel (0) target = $region41
    $region40: #{tpu_custom_call.1} parent=1 // pred_region
      %92 = dma.done [#allocation11], 128
    $region41: #{tpu_custom_call.1} parent=1 // pred_fallthru
      _
    // Predicated region
    $region42: #{tpu_custom_call.1} parent=1 // pred_check
      _
    $region43: #{tpu_custom_call.1} parent=1 // pred_check_branch
      %94 = sbr.rel (0) target = $region45
    $region44: #{tpu_custom_call.1} parent=1 // pred_region
      %96 = dma.done [#allocation14], 64
    $region45: #{tpu_custom_call.1} parent=1 // pred_fallthru
      _
    // Predicated region
    $region46: #{tpu_custom_call.1} parent=1 // pred_check
      _
    $region47: #{tpu_custom_call.1} parent=1 // pred_check_branch
      %98 = sbr.rel (0) target = $region49
    $region48: #{tpu_custom_call.1} parent=1 // pred_region
      %100 = dma.done [#allocation14], 64
    $region49: #{tpu_custom_call.1} parent=1 // pred_fallthru
      _
    %p102 = scmp.eq.s32.totalorder 0, 0
    // Predicated region
    $region50: #{tpu_custom_call.1} parent=1 // pred_check
      %p103 = pneg %p102
    $region51: #{tpu_custom_call.1} parent=1 // pred_check_branch
      %105 = sbr.rel (%p103) target = $region53
    $region52: #{tpu_custom_call.1} parent=1 // pred_region
      // Predicated region
      $region54: #{tpu_custom_call.1} parent=52 // pred_check
        _
      $region55: #{tpu_custom_call.1} parent=52 // pred_check_branch
        %107 = sbr.rel target = $region57
      $region56: #{tpu_custom_call.1} parent=52 // pred_region
        %108 = sst [smem:[#allocation19]] [#allocation18]
        %109 = sst [smem:[#allocation20]] [#allocation17]
      $region57: #{tpu_custom_call.1} parent=52 // pred_fallthru
        _
      %111 = shalt.err (0)
      %s113 = sshll.u32 %s3, 4
      %s114 = int_to_ptr.hbm [resolvable:$true] %s113
      %s115 = sshll.u32 [#allocation2], 4
      %s116 = int_to_ptr.vmem [resolvable:$true] %s115
      %118 = dma.hbm_to_vmem [thread:$0]  %s114, 32768, %s116, [#allocation6]
    $region53: #{tpu_custom_call.1} parent=1 // pred_fallthru
      _
    %v119 = vld [vmem:[#allocation7] sm:$0xff]
    %v120 = vld [vmem:[#allocation7 + $0x8] sm:$0xff]
    %v121 = vpack.c.bf16 %v119, %v119
    %v122 = vpack.c.bf16 %v120, %v120
    %v123 = vld [vmem:[#allocation10] sm:$0xff]
    %v124 = vld [vmem:[#allocation10 + $0x8] sm:$0xff]
    %v125 = vld [vmem:[#allocation10 + $0x10] sm:$0xff]
    %v126 = vld [vmem:[#allocation10 + $0x18] sm:$0xff]
    %v127 = vld [vmem:[#allocation10 + $0x20] sm:$0xff]
    %v128 = vld [vmem:[#allocation10 + $0x28] sm:$0xff]
    %v129 = vld [vmem:[#allocation10 + $0x30] sm:$0xff]
    %v130 = vld [vmem:[#allocation10 + $0x38] sm:$0xff]
    %v131 = vld [vmem:[#allocation10 + $0x40] sm:$0xff]
    %v132 = vld [vmem:[#allocation10 + $0x48] sm:$0xff]
    %v133 = vld [vmem:[#allocation10 + $0x50] sm:$0xff]
    %v134 = vld [vmem:[#allocation10 + $0x58] sm:$0xff]
    %v135 = vld [vmem:[#allocation10 + $0x60] sm:$0xff]
    %v136 = vld [vmem:[#allocation10 + $0x68] sm:$0xff]
    %v137 = vld [vmem:[#allocation10 + $0x70] sm:$0xff]
    %v138 = vld [vmem:[#allocation10 + $0x78] sm:$0xff]
    %v139 = vld [vmem:[#allocation10 + $0x80] sm:$0xff]
    %v140 = vld [vmem:[#allocation10 + $0x88] sm:$0xff]
    %v141 = vld [vmem:[#allocation10 + $0x90] sm:$0xff]
    %v142 = vld [vmem:[#allocation10 + $0x98] sm:$0xff]
    %v143 = vld [vmem:[#allocation10 + $0xa0] sm:$0xff]
    %v144 = vld [vmem:[#allocation10 + $0xa8] sm:$0xff]
    %v145 = vld [vmem:[#allocation10 + $0xb0] sm:$0xff]
    %v146 = vld [vmem:[#allocation10 + $0xb8] sm:$0xff]
    %v147 = vld [vmem:[#allocation10 + $0xc0] sm:$0xff]
    %v148 = vld [vmem:[#allocation10 + $0xc8] sm:$0xff]
    %v149 = vld [vmem:[#allocation10 + $0xd0] sm:$0xff]
    %v150 = vld [vmem:[#allocation10 + $0xd8] sm:$0xff]
    %v151 = vld [vmem:[#allocation10 + $0xe0] sm:$0xff]
    %v152 = vld [vmem:[#allocation10 + $0xe8] sm:$0xff]
    %v153 = vld [vmem:[#allocation10 + $0xf0] sm:$0xff]
    %v154 = vld [vmem:[#allocation10 + $0xf8] sm:$0xff]
    %v155 = vld [vmem:[#allocation10 + $0x100] sm:$0xff]
    %v156 = vld [vmem:[#allocation10 + $0x108] sm:$0xff]
    %v157 = vld [vmem:[#allocation10 + $0x110] sm:$0xff]
    %v158 = vld [vmem:[#allocation10 + $0x118] sm:$0xff]
    %v159 = vld [vmem:[#allocation10 + $0x120] sm:$0xff]
    %v160 = vld [vmem:[#allocation10 + $0x128] sm:$0xff]
    %v161 = vld [vmem:[#allocation10 + $0x130] sm:$0xff]
    %v162 = vld [vmem:[#allocation10 + $0x138] sm:$0xff]
    %v163 = vld [vmem:[#allocation10 + $0x140] sm:$0xff]
    %v164 = vld [vmem:[#allocation10 + $0x148] sm:$0xff]
    %v165 = vld [vmem:[#allocation10 + $0x150] sm:$0xff]
    %v166 = vld [vmem:[#allocation10 + $0x158] sm:$0xff]
    %v167 = vld [vmem:[#allocation10 + $0x160] sm:$0xff]
    %v168 = vld [vmem:[#allocation10 + $0x168] sm:$0xff]
    %v169 = vld [vmem:[#allocation10 + $0x170] sm:$0xff]
    %v170 = vld [vmem:[#allocation10 + $0x178] sm:$0xff]
    %v171 = vld [vmem:[#allocation10 + $0x180] sm:$0xff]
    %v172 = vld [vmem:[#allocation10 + $0x188] sm:$0xff]
    %v173 = vld [vmem:[#allocation10 + $0x190] sm:$0xff]
    %v174 = vld [vmem:[#allocation10 + $0x198] sm:$0xff]
    %v175 = vld [vmem:[#allocation10 + $0x1a0] sm:$0xff]
    %v176 = vld [vmem:[#allocation10 + $0x1a8] sm:$0xff]
    %v177 = vld [vmem:[#allocation10 + $0x1b0] sm:$0xff]
    %v178 = vld [vmem:[#allocation10 + $0x1b8] sm:$0xff]
    %v179 = vld [vmem:[#allocation10 + $0x1c0] sm:$0xff]
    %v180 = vld [vmem:[#allocation10 + $0x1c8] sm:$0xff]
    %v181 = vld [vmem:[#allocation10 + $0x1d0] sm:$0xff]
    %v182 = vld [vmem:[#allocation10 + $0x1d8] sm:$0xff]
    %v183 = vld [vmem:[#allocation10 + $0x1e0] sm:$0xff]
    %v184 = vld [vmem:[#allocation10 + $0x1e8] sm:$0xff]
    %v185 = vld [vmem:[#allocation10 + $0x1f0] sm:$0xff]
    %v186 = vld [vmem:[#allocation10 + $0x1f8] sm:$0xff]
    %v187 = vld [vmem:[#allocation10 + $0x200] sm:$0xff]
    %v188 = vld [vmem:[#allocation10 + $0x208] sm:$0xff]
    %v189 = vld [vmem:[#allocation10 + $0x210] sm:$0xff]
    %v190 = vld [vmem:[#allocation10 + $0x218] sm:$0xff]
    %v191 = vld [vmem:[#allocation12] sm:$0xff]
    %v193 = vperm.slane %v191, 0
    %v194 = vperm.slane %v191, 1
    %v195 = vperm.slane %v191, 2
    %v196 = vperm.slane %v191, 3
    %v197 = vperm.slane %v191, 4
    %v198 = vperm.slane %v191, 5
    %v199 = vperm.slane %v191, 6
    %v200 = vperm.slane %v191, 7
    %v277 = vunpack.c.l.b16 %v123
    %v278 = vunpack.c.h.b16 %v123
    %v279 = vunpack.c.l.b16 %v124
    %v280 = vunpack.c.h.b16 %v124
    %v281 = vunpack.c.l.b16 %v125
    %v282 = vunpack.c.h.b16 %v125
    %v283 = vunpack.c.l.b16 %v126
    %v284 = vunpack.c.h.b16 %v126
    %v285 = vunpack.c.l.b16 %v127
    %v286 = vunpack.c.h.b16 %v127
    %v287 = vunpack.c.l.b16 %v128
    %v288 = vunpack.c.h.b16 %v128
    %v289 = vunpack.c.l.b16 %v129
    %v290 = vunpack.c.h.b16 %v129
    %v291 = vunpack.c.l.b16 %v130
    %v292 = vunpack.c.h.b16 %v130
    %v293 = vunpack.c.l.b16 %v131
    %v294 = vunpack.c.h.b16 %v131
    %v295 = vunpack.c.l.b16 %v132
    %v296 = vunpack.c.h.b16 %v132
    %v297 = vunpack.c.l.b16 %v133
    %v298 = vunpack.c.h.b16 %v133
    %v299 = vunpack.c.l.b16 %v134
    %v300 = vunpack.c.h.b16 %v134
    %v301 = vunpack.c.l.b16 %v135
    %v302 = vunpack.c.h.b16 %v135
    %v303 = vunpack.c.l.b16 %v136
    %v304 = vunpack.c.h.b16 %v136
    %v305 = vunpack.c.l.b16 %v137
    %v306 = vunpack.c.h.b16 %v137
    %v307 = vunpack.c.l.b16 %v138
    %v308 = vunpack.c.h.b16 %v138
    %v309 = vunpack.c.l.b16 %v139
    %v310 = vunpack.c.h.b16 %v139
    %v311 = vunpack.c.l.b16 %v140
    %v312 = vunpack.c.h.b16 %v140
    %v313 = vunpack.c.l.b16 %v141
    %v314 = vunpack.c.h.b16 %v141
    %v315 = vunpack.c.l.b16 %v142
    %v316 = vunpack.c.h.b16 %v142
    %v317 = vunpack.c.l.b16 %v143
    %v318 = vunpack.c.h.b16 %v143
    %v319 = vunpack.c.l.b16 %v144
    %v320 = vunpack.c.h.b16 %v144
    %v321 = vunpack.c.l.b16 %v145
    %v322 = vunpack.c.h.b16 %v145
    %v323 = vunpack.c.l.b16 %v146
    %v324 = vunpack.c.h.b16 %v146
    %v325 = vunpack.c.l.b16 %v147
    %v326 = vunpack.c.h.b16 %v147
    %v327 = vunpack.c.l.b16 %v148
    %v328 = vunpack.c.h.b16 %v148
    %v329 = vunpack.c.l.b16 %v149
    %v330 = vunpack.c.h.b16 %v149
    %v331 = vunpack.c.l.b16 %v150
    %v332 = vunpack.c.h.b16 %v150
    %v333 = vunpack.c.l.b16 %v151
    %v334 = vunpack.c.h.b16 %v151
    %v335 = vunpack.c.l.b16 %v152
    %v336 = vunpack.c.h.b16 %v152
    %v337 = vunpack.c.l.b16 %v153
    %v338 = vunpack.c.h.b16 %v153
    %v339 = vunpack.c.l.b16 %v154
    %v340 = vunpack.c.h.b16 %v154
    %v341 = vunpack.c.l.b16 %v155
    %v342 = vunpack.c.h.b16 %v155
    %v343 = vunpack.c.l.b16 %v156
    %v344 = vunpack.c.h.b16 %v156
    %v345 = vunpack.c.l.b16 %v157
    %v346 = vunpack.c.h.b16 %v157
    %v347 = vunpack.c.l.b16 %v158
    %v348 = vunpack.c.h.b16 %v158
    %v349 = vunpack.c.l.b16 %v159
    %v350 = vunpack.c.h.b16 %v159
    %v351 = vunpack.c.l.b16 %v160
    %v352 = vunpack.c.h.b16 %v160
    %v353 = vunpack.c.l.b16 %v161
    %v354 = vunpack.c.h.b16 %v161
    %v355 = vunpack.c.l.b16 %v162
    %v356 = vunpack.c.h.b16 %v162
    %v357 = vunpack.c.l.b16 %v163
    %v358 = vunpack.c.h.b16 %v163
    %v359 = vunpack.c.l.b16 %v164
    %v360 = vunpack.c.h.b16 %v164
    %v361 = vunpack.c.l.b16 %v165
    %v362 = vunpack.c.h.b16 %v165
    %v363 = vunpack.c.l.b16 %v166
    %v364 = vunpack.c.h.b16 %v166
    %v365 = vunpack.c.l.b16 %v167
    %v366 = vunpack.c.h.b16 %v167
    %v367 = vunpack.c.l.b16 %v168
    %v368 = vunpack.c.h.b16 %v168
    %v369 = vunpack.c.l.b16 %v169
    %v370 = vunpack.c.h.b16 %v169
    %v371 = vunpack.c.l.b16 %v170
    %v372 = vunpack.c.h.b16 %v170
    %v373 = vunpack.c.l.b16 %v171
    %v374 = vunpack.c.h.b16 %v171
    %v375 = vunpack.c.l.b16 %v172
    %v376 = vunpack.c.h.b16 %v172
    %v377 = vunpack.c.l.b16 %v173
    %v378 = vunpack.c.h.b16 %v173
    %v379 = vunpack.c.l.b16 %v174
    %v380 = vunpack.c.h.b16 %v174
    %v381 = vunpack.c.l.b16 %v175
    %v382 = vunpack.c.h.b16 %v175
    %v383 = vunpack.c.l.b16 %v176
    %v384 = vunpack.c.h.b16 %v176
    %v385 = vunpack.c.l.b16 %v177
    %v386 = vunpack.c.h.b16 %v177
    %v387 = vunpack.c.l.b16 %v178
    %v388 = vunpack.c.h.b16 %v178
    %v389 = vunpack.c.l.b16 %v179
    %v390 = vunpack.c.h.b16 %v179
    %v391 = vunpack.c.l.b16 %v180
    %v392 = vunpack.c.h.b16 %v180
    %v393 = vunpack.c.l.b16 %v181
    %v394 = vunpack.c.h.b16 %v181
    %v395 = vunpack.c.l.b16 %v182
    %v396 = vunpack.c.h.b16 %v182
    %v397 = vunpack.c.l.b16 %v183
    %v398 = vunpack.c.h.b16 %v183
    %v399 = vunpack.c.l.b16 %v184
    %v400 = vunpack.c.h.b16 %v184
    %v401 = vunpack.c.l.b16 %v185
    %v402 = vunpack.c.h.b16 %v185
    %v403 = vunpack.c.l.b16 %v186
    %v404 = vunpack.c.h.b16 %v186
    %v405 = vunpack.c.l.b16 %v187
    %v406 = vunpack.c.h.b16 %v187
    %v407 = vunpack.c.l.b16 %v188
    %v408 = vunpack.c.h.b16 %v188
    %v409 = vunpack.c.l.b16 %v189
    %v410 = vunpack.c.h.b16 %v189
    %v411 = vunpack.c.l.b16 %v190
    %v412 = vunpack.c.h.b16 %v190
    %v413 = vpack.c.b16 %v285, %v277
    %v414 = vpack.c.b16 %v286, %v278
    %v415 = vpack.c.b16 %v287, %v279
    %v416 = vpack.c.b16 %v288, %v280
    %v417 = vpack.c.b16 %v289, %v281
    %v418 = vpack.c.b16 %v290, %v282
    %v419 = vpack.c.b16 %v291, %v283
    %v420 = vpack.c.b16 %v292, %v284
    %v421 = vpack.c.b16 %v301, %v293
    %v422 = vpack.c.b16 %v302, %v294
    %v423 = vpack.c.b16 %v303, %v295
    %v424 = vpack.c.b16 %v304, %v296
    %v425 = vpack.c.b16 %v305, %v297
    %v426 = vpack.c.b16 %v306, %v298
    %v427 = vpack.c.b16 %v307, %v299
    %v428 = vpack.c.b16 %v308, %v300
    %v429 = vpack.c.b16 %v317, %v309
    %v430 = vpack.c.b16 %v318, %v310
    %v431 = vpack.c.b16 %v319, %v311
    %v432 = vpack.c.b16 %v320, %v312
    %v433 = vpack.c.b16 %v321, %v313
    %v434 = vpack.c.b16 %v322, %v314
    %v435 = vpack.c.b16 %v323, %v315
    %v436 = vpack.c.b16 %v324, %v316
    %v437 = vpack.c.b16 %v333, %v325
    %v438 = vpack.c.b16 %v334, %v326
    %v439 = vpack.c.b16 %v335, %v327
    %v440 = vpack.c.b16 %v336, %v328
    %v441 = vpack.c.b16 %v337, %v329
    %v442 = vpack.c.b16 %v338, %v330
    %v443 = vpack.c.b16 %v339, %v331
    %v444 = vpack.c.b16 %v340, %v332
    %v445 = vpack.c.b16 %v349, %v341
    %v446 = vpack.c.b16 %v350, %v342
    %v447 = vpack.c.b16 %v351, %v343
    %v448 = vpack.c.b16 %v352, %v344
    %v449 = vpack.c.b16 %v353, %v345
    %v450 = vpack.c.b16 %v354, %v346
    %v451 = vpack.c.b16 %v355, %v347
    %v452 = vpack.c.b16 %v356, %v348
    %v453 = vpack.c.b16 %v365, %v357
    %v454 = vpack.c.b16 %v366, %v358
    %v455 = vpack.c.b16 %v367, %v359
    %v456 = vpack.c.b16 %v368, %v360
    %v457 = vpack.c.b16 %v369, %v361
    %v458 = vpack.c.b16 %v370, %v362
    %v459 = vpack.c.b16 %v371, %v363
    %v460 = vpack.c.b16 %v372, %v364
    %v461 = vpack.c.b16 %v381, %v373
    %v462 = vpack.c.b16 %v382, %v374
    %v463 = vpack.c.b16 %v383, %v375
    %v464 = vpack.c.b16 %v384, %v376
    %v465 = vpack.c.b16 %v385, %v377
    %v466 = vpack.c.b16 %v386, %v378
    %v467 = vpack.c.b16 %v387, %v379
    %v468 = vpack.c.b16 %v388, %v380
    %v469 = vpack.c.b16 %v397, %v389
    %v470 = vpack.c.b16 %v398, %v390
    %v471 = vpack.c.b16 %v399, %v391
    %v472 = vpack.c.b16 %v400, %v392
    %v473 = vpack.c.b16 %v401, %v393
    %v474 = vpack.c.b16 %v402, %v394
    %v475 = vpack.c.b16 %v403, %v395
    %v476 = vpack.c.b16 %v404, %v396
    %v477 = vpack.c.b16 %v405, %v405
    %v478 = vpack.c.b16 %v406, %v406
    %v479 = vpack.c.b16 %v407, %v407
    %v480 = vpack.c.b16 %v408, %v408
    %v481 = vpack.c.b16 %v409, %v409
    %v482 = vpack.c.b16 %v410, %v410
    %v483 = vpack.c.b16 %v411, %v411
    %v484 = vpack.c.b16 %v412, %v412
    %vm549 = vcmask 64512
    %v551 = vsel %vm549, %v122, 0
    %vm553 = vcmask 1043456
    %v555 = vsel %vm553, %v477, 0
    %v558 = vsel %vm553, %v478, 0
    %v561 = vsel %vm553, %v479, 0
    %v564 = vsel %vm553, %v480, 0
    %v567 = vsel %vm553, %v481, 0
    %v570 = vsel %vm553, %v482, 0
    %v573 = vsel %vm553, %v483, 0
    %v576 = vsel %vm553, %v484, 0
    %578 = vmatpush.bf16.msra.mxu0 %v469
    %579 = vmatpush.bf16.msra.mxu0 %v461
    %580 = vmatpush.bf16.msra.mxu0 %v453
    %581 = vmatpush.bf16.msra.mxu0 %v445
    %582 = vmatpush.bf16.msra.mxu0 %v437
    %583 = vmatpush.bf16.msra.mxu0 %v429
    %584 = vmatpush.bf16.msra.mxu0 %v421
    %585 = vmatpush.bf16.msra.mxu0 %v413
    %586 = vmatmul.bf16.gmra.mxu0 %v121
    %v587 = vpop.f32.mrf.mxu0
    %v588 = vadd.f32 %v193, %v587
    %v589 = vpop.f32.mrf.mxu0
    %590 = vdwg.mxu0
    %591 = vmatpush.bf16.msra.mxu0 0
    %592 = vmatpush.bf16.msra.mxu0 0
    %593 = vmatpush.bf16.msra.mxu0 0
    %594 = vmatpush.bf16.msra.mxu0 0
    %595 = vmatpush.bf16.msra.mxu0 0
    %596 = vmatpush.bf16.msra.mxu0 0
    %597 = vmatpush.bf16.msra.mxu0 0
    %598 = vmatpush.bf16.msra.mxu0 %v555
    %599 = vmatmul.bf16.gmra.mxu0 %v551
    %v600 = vpop.f32.mrf.mxu0
    %v601 = vadd.f32 %v588, %v600
    %v602 = vpop.f32.mrf.mxu0
    %603 = vdwg.mxu0
    %604 = vmatpush.bf16.msra.mxu0 %v470
    %605 = vmatpush.bf16.msra.mxu0 %v462
    %606 = vmatpush.bf16.msra.mxu0 %v454
    %607 = vmatpush.bf16.msra.mxu0 %v446
    %608 = vmatpush.bf16.msra.mxu0 %v438
    %609 = vmatpush.bf16.msra.mxu0 %v430
    %610 = vmatpush.bf16.msra.mxu0 %v422
    %611 = vmatpush.bf16.msra.mxu0 %v414
    %612 = vmatmul.bf16.gmra.mxu0 %v121
    %v613 = vpop.f32.mrf.mxu0
    %v614 = vadd.f32 %v194, %v613
    %v615 = vpop.f32.mrf.mxu0
    %616 = vdwg.mxu0
    %617 = vmatpush.bf16.msra.mxu0 0
    %618 = vmatpush.bf16.msra.mxu0 0
    %619 = vmatpush.bf16.msra.mxu0 0
    %620 = vmatpush.bf16.msra.mxu0 0
    %621 = vmatpush.bf16.msra.mxu0 0
    %622 = vmatpush.bf16.msra.mxu0 0
    %623 = vmatpush.bf16.msra.mxu0 0
    %624 = vmatpush.bf16.msra.mxu0 %v558
    %625 = vmatmul.bf16.gmra.mxu0 %v551
    %v626 = vpop.f32.mrf.mxu0
    %v627 = vadd.f32 %v614, %v626
    %v628 = vpop.f32.mrf.mxu0
    %629 = vdwg.mxu0
    %630 = vmatpush.bf16.msra.mxu0 %v471
    %631 = vmatpush.bf16.msra.mxu0 %v463
    %632 = vmatpush.bf16.msra.mxu0 %v455
    %633 = vmatpush.bf16.msra.mxu0 %v447
    %634 = vmatpush.bf16.msra.mxu0 %v439
    %635 = vmatpush.bf16.msra.mxu0 %v431
    %636 = vmatpush.bf16.msra.mxu0 %v423
    %637 = vmatpush.bf16.msra.mxu0 %v415
    %638 = vmatmul.bf16.gmra.mxu0 %v121
    %v639 = vpop.f32.mrf.mxu0
    %v640 = vadd.f32 %v195, %v639
    %v641 = vpop.f32.mrf.mxu0
    %642 = vdwg.mxu0
    %643 = vmatpush.bf16.msra.mxu0 0
    %644 = vmatpush.bf16.msra.mxu0 0
    %645 = vmatpush.bf16.msra.mxu0 0
    %646 = vmatpush.bf16.msra.mxu0 0
    %647 = vmatpush.bf16.msra.mxu0 0
    %648 = vmatpush.bf16.msra.mxu0 0
    %649 = vmatpush.bf16.msra.mxu0 0
    %650 = vmatpush.bf16.msra.mxu0 %v561
    %651 = vmatmul.bf16.gmra.mxu0 %v551
    %v652 = vpop.f32.mrf.mxu0
    %v653 = vadd.f32 %v640, %v652
    %v654 = vpop.f32.mrf.mxu0
    %655 = vdwg.mxu0
    %656 = vmatpush.bf16.msra.mxu0 %v472
    %657 = vmatpush.bf16.msra.mxu0 %v464
    %658 = vmatpush.bf16.msra.mxu0 %v456
    %659 = vmatpush.bf16.msra.mxu0 %v448
    %660 = vmatpush.bf16.msra.mxu0 %v440
    %661 = vmatpush.bf16.msra.mxu0 %v432
    %662 = vmatpush.bf16.msra.mxu0 %v424
    %663 = vmatpush.bf16.msra.mxu0 %v416
    %664 = vmatmul.bf16.gmra.mxu0 %v121
    %v665 = vpop.f32.mrf.mxu0
    %v666 = vadd.f32 %v196, %v665
    %v667 = vpop.f32.mrf.mxu0
    %668 = vdwg.mxu0
    %669 = vmatpush.bf16.msra.mxu0 0
    %670 = vmatpush.bf16.msra.mxu0 0
    %671 = vmatpush.bf16.msra.mxu0 0
    %672 = vmatpush.bf16.msra.mxu0 0
    %673 = vmatpush.bf16.msra.mxu0 0
    %674 = vmatpush.bf16.msra.mxu0 0
    %675 = vmatpush.bf16.msra.mxu0 0
    %676 = vmatpush.bf16.msra.mxu0 %v564
    %677 = vmatmul.bf16.gmra.mxu0 %v551
    %v678 = vpop.f32.mrf.mxu0
    %v679 = vadd.f32 %v666, %v678
    %v680 = vpop.f32.mrf.mxu0
    %681 = vdwg.mxu0
    %682 = vmatpush.bf16.msra.mxu0 %v473
    %683 = vmatpush.bf16.msra.mxu0 %v465
    %684 = vmatpush.bf16.msra.mxu0 %v457
    %685 = vmatpush.bf16.msra.mxu0 %v449
    %686 = vmatpush.bf16.msra.mxu0 %v441
    %687 = vmatpush.bf16.msra.mxu0 %v433
    %688 = vmatpush.bf16.msra.mxu0 %v425
    %689 = vmatpush.bf16.msra.mxu0 %v417
    %690 = vmatmul.bf16.gmra.mxu0 %v121
    %v691 = vpop.f32.mrf.mxu0
    %v692 = vadd.f32 %v197, %v691
    %v693 = vpop.f32.mrf.mxu0
    %694 = vdwg.mxu0
    %695 = vmatpush.bf16.msra.mxu0 0
    %696 = vmatpush.bf16.msra.mxu0 0
    %697 = vmatpush.bf16.msra.mxu0 0
    %698 = vmatpush.bf16.msra.mxu0 0
    %699 = vmatpush.bf16.msra.mxu0 0
    %700 = vmatpush.bf16.msra.mxu0 0
    %701 = vmatpush.bf16.msra.mxu0 0
    %702 = vmatpush.bf16.msra.mxu0 %v567
    %703 = vmatmul.bf16.gmra.mxu0 %v551
    %v704 = vpop.f32.mrf.mxu0
    %v705 = vadd.f32 %v692, %v704
    %v706 = vpop.f32.mrf.mxu0
    %707 = vdwg.mxu0
    %708 = vmatpush.bf16.msra.mxu0 %v474
    %709 = vmatpush.bf16.msra.mxu0 %v466
    %710 = vmatpush.bf16.msra.mxu0 %v458
    %711 = vmatpush.bf16.msra.mxu0 %v450
    %712 = vmatpush.bf16.msra.mxu0 %v442
    %713 = vmatpush.bf16.msra.mxu0 %v434
    %714 = vmatpush.bf16.msra.mxu0 %v426
    %715 = vmatpush.bf16.msra.mxu0 %v418
    %716 = vmatmul.bf16.gmra.mxu0 %v121
    %v717 = vpop.f32.mrf.mxu0
    %v718 = vadd.f32 %v198, %v717
    %v719 = vpop.f32.mrf.mxu0
    %720 = vdwg.mxu0
    %721 = vmatpush.bf16.msra.mxu0 0
    %722 = vmatpush.bf16.msra.mxu0 0
    %723 = vmatpush.bf16.msra.mxu0 0
    %724 = vmatpush.bf16.msra.mxu0 0
    %725 = vmatpush.bf16.msra.mxu0 0
    %726 = vmatpush.bf16.msra.mxu0 0
    %727 = vmatpush.bf16.msra.mxu0 0
    %728 = vmatpush.bf16.msra.mxu0 %v570
    %729 = vmatmul.bf16.gmra.mxu0 %v551
    %v730 = vpop.f32.mrf.mxu0
    %v731 = vadd.f32 %v718, %v730
    %v732 = vpop.f32.mrf.mxu0
    %733 = vdwg.mxu0
    %734 = vmatpush.bf16.msra.mxu0 %v475
    %735 = vmatpush.bf16.msra.mxu0 %v467
    %736 = vmatpush.bf16.msra.mxu0 %v459
    %737 = vmatpush.bf16.msra.mxu0 %v451
    %738 = vmatpush.bf16.msra.mxu0 %v443
    %739 = vmatpush.bf16.msra.mxu0 %v435
    %740 = vmatpush.bf16.msra.mxu0 %v427
    %741 = vmatpush.bf16.msra.mxu0 %v419
    %742 = vmatmul.bf16.gmra.mxu0 %v121
    %v743 = vpop.f32.mrf.mxu0
    %v744 = vadd.f32 %v199, %v743
    %v745 = vpop.f32.mrf.mxu0
    %746 = vdwg.mxu0
    %747 = vmatpush.bf16.msra.mxu0 0
    %748 = vmatpush.bf16.msra.mxu0 0
    %749 = vmatpush.bf16.msra.mxu0 0
    %750 = vmatpush.bf16.msra.mxu0 0
    %751 = vmatpush.bf16.msra.mxu0 0
    %752 = vmatpush.bf16.msra.mxu0 0
    %753 = vmatpush.bf16.msra.mxu0 0
    %754 = vmatpush.bf16.msra.mxu0 %v573
    %755 = vmatmul.bf16.gmra.mxu0 %v551
    %v756 = vpop.f32.mrf.mxu0
    %v757 = vadd.f32 %v744, %v756
    %v758 = vpop.f32.mrf.mxu0
    %759 = vdwg.mxu0
    %760 = vmatpush.bf16.msra.mxu0 %v476
    %761 = vmatpush.bf16.msra.mxu0 %v468
    %762 = vmatpush.bf16.msra.mxu0 %v460
    %763 = vmatpush.bf16.msra.mxu0 %v452
    %764 = vmatpush.bf16.msra.mxu0 %v444
    %765 = vmatpush.bf16.msra.mxu0 %v436
    %766 = vmatpush.bf16.msra.mxu0 %v428
    %767 = vmatpush.bf16.msra.mxu0 %v420
    %768 = vmatmul.bf16.gmra.mxu0 %v121
    %v769 = vpop.f32.mrf.mxu0
    %v770 = vadd.f32 %v200, %v769
    %v771 = vpop.f32.mrf.mxu0
    %772 = vdwg.mxu0
    %773 = vmatpush.bf16.msra.mxu0 0
    %774 = vmatpush.bf16.msra.mxu0 0
    %775 = vmatpush.bf16.msra.mxu0 0
    %776 = vmatpush.bf16.msra.mxu0 0
    %777 = vmatpush.bf16.msra.mxu0 0
    %778 = vmatpush.bf16.msra.mxu0 0
    %779 = vmatpush.bf16.msra.mxu0 0
    %780 = vmatpush.bf16.msra.mxu0 %v576
    %781 = vmatmul.bf16.gmra.mxu0 %v551
    %v782 = vpop.f32.mrf.mxu0
    %v783 = vadd.f32 %v770, %v782
    %v784 = vpop.f32.mrf.mxu0
    %785 = vdwg.mxu0
    %vm786 = vcmp.gt.f32.partialorder %v601, 0.0
    %vm787 = vcmp.gt.f32.partialorder %v627, 0.0
    %vm788 = vcmp.gt.f32.partialorder %v653, 0.0
    %vm789 = vcmp.gt.f32.partialorder %v679, 0.0
    %vm790 = vcmp.gt.f32.partialorder %v705, 0.0
    %vm791 = vcmp.gt.f32.partialorder %v731, 0.0
    %vm792 = vcmp.gt.f32.partialorder %v757, 0.0
    %vm793 = vcmp.gt.f32.partialorder %v783, 0.0
    %v794 = vmul.f32 %v601, 0.2
    %v795 = vmul.f32 %v627, 0.2
    %v796 = vmul.f32 %v653, 0.2
    %v797 = vmul.f32 %v679, 0.2
    %v798 = vmul.f32 %v705, 0.2
    %v799 = vmul.f32 %v731, 0.2
    %v800 = vmul.f32 %v757, 0.2
    %v801 = vmul.f32 %v783, 0.2
    %v802 = vsel %vm786, %v601, %v794
    %v803 = vsel %vm787, %v627, %v795
    %v804 = vsel %vm788, %v653, %v796
    %v805 = vsel %vm789, %v679, %v797
    %v806 = vsel %vm790, %v705, %v798
    %v807 = vsel %vm791, %v731, %v799
    %v808 = vsel %vm792, %v757, %v800
    %v809 = vsel %vm793, %v783, %v801
    // Predicated region
    $region58: #{tpu_custom_call.1} parent=1 // pred_check
      %p810 = pneg %p102
    $region59: #{tpu_custom_call.1} parent=1 // pred_check_branch
      %812 = sbr.rel (%p810) target = $region61
    $region60: #{tpu_custom_call.1} parent=1 // pred_region
      %s813 = smul.u32 4, 128
      %s814 = smul.u32 %s813, 4
      %s815 = sshll.u32 %s814, 4
      %816 = dma.done [#allocation6], %s815
      %s817 = scalar_lea.sflag [#allocation6], 1
      // Predicated region
      $region62: #{tpu_custom_call.1} parent=60 // pred_check
        _
      $region63: #{tpu_custom_call.1} parent=60 // pred_check_branch
        %819 = sbr.rel target = $region65
      $region64: #{tpu_custom_call.1} parent=60 // pred_region
        %820 = sst [smem:[#allocation19]] [#allocation22]
        %821 = sst [smem:[#allocation20]] [#allocation21]
      $region65: #{tpu_custom_call.1} parent=60 // pred_fallthru
        _
      %823 = shalt.err (0)
      %s825 = sshll.u32 %s5, 4
      %s826 = int_to_ptr.hbm [resolvable:$true] %s825
      %s827 = sshll.u32 [#allocation3], 4
      %s828 = int_to_ptr.vmem [resolvable:$true] %s827
      %830 = dma.hbm_to_vmem [thread:$0]  %s826, 16384, %s828, %s817
    $region61: #{tpu_custom_call.1} parent=1 // pred_fallthru
      _
    %v831 = vpack.c.bf16 %v802, %v802
    %v832 = vpack.c.bf16 %v803, %v803
    %v833 = vpack.c.bf16 %v804, %v804
    %v834 = vpack.c.bf16 %v805, %v805
    %v835 = vpack.c.bf16 %v806, %v806
    %v836 = vpack.c.bf16 %v807, %v807
    %v837 = vpack.c.bf16 %v808, %v808
    %v838 = vpack.c.bf16 %v809, %v809
    %v839 = vld [vmem:[#allocation2] sm:$0xff]
    %v840 = vld [vmem:[#allocation2 + $0x8] sm:$0xff]
    %v841 = vld [vmem:[#allocation2 + $0x10] sm:$0xff]
    %v842 = vld [vmem:[#allocation2 + $0x18] sm:$0xff]
    %v843 = vld [vmem:[#allocation2 + $0x20] sm:$0xff]
    %v844 = vld [vmem:[#allocation2 + $0x28] sm:$0xff]
    %v845 = vld [vmem:[#allocation2 + $0x30] sm:$0xff]
    %v846 = vld [vmem:[#allocation2 + $0x38] sm:$0xff]
    %v847 = vld [vmem:[#allocation2 + $0x40] sm:$0xff]
    %v848 = vld [vmem:[#allocation2 + $0x48] sm:$0xff]
    %v849 = vld [vmem:[#allocation2 + $0x50] sm:$0xff]
    %v850 = vld [vmem:[#allocation2 + $0x58] sm:$0xff]
    %v851 = vld [vmem:[#allocation2 + $0x60] sm:$0xff]
    %v852 = vld [vmem:[#allocation2 + $0x68] sm:$0xff]
    %v853 = vld [vmem:[#allocation2 + $0x70] sm:$0xff]
    %v854 = vld [vmem:[#allocation2 + $0x78] sm:$0xff]
    %v855 = vld [vmem:[#allocation2 + $0x80] sm:$0xff]
    %v856 = vld [vmem:[#allocation2 + $0x88] sm:$0xff]
    %v857 = vld [vmem:[#allocation2 + $0x90] sm:$0xff]
    %v858 = vld [vmem:[#allocation2 + $0x98] sm:$0xff]
    %v859 = vld [vmem:[#allocation2 + $0xa0] sm:$0xff]
    %v860 = vld [vmem:[#allocation2 + $0xa8] sm:$0xff]
    %v861 = vld [vmem:[#allocation2 + $0xb0] sm:$0xff]
    %v862 = vld [vmem:[#allocation2 + $0xb8] sm:$0xff]
    %v863 = vld [vmem:[#allocation2 + $0xc0] sm:$0xff]
    %v864 = vld [vmem:[#allocation2 + $0xc8] sm:$0xff]
    %v865 = vld [vmem:[#allocation2 + $0xd0] sm:$0xff]
    %v866 = vld [vmem:[#allocation2 + $0xd8] sm:$0xff]
    %v867 = vld [vmem:[#allocation2 + $0xe0] sm:$0xff]
    %v868 = vld [vmem:[#allocation2 + $0xe8] sm:$0xff]
    %v869 = vld [vmem:[#allocation2 + $0xf0] sm:$0xff]
    %v870 = vld [vmem:[#allocation2 + $0xf8] sm:$0xff]
    %v871 = vld [vmem:[#allocation2 + $0x100] sm:$0xff]
    %v872 = vld [vmem:[#allocation2 + $0x108] sm:$0xff]
    %v873 = vld [vmem:[#allocation2 + $0x110] sm:$0xff]
    %v874 = vld [vmem:[#allocation2 + $0x118] sm:$0xff]
    %v875 = vld [vmem:[#allocation2 + $0x120] sm:$0xff]
    %v876 = vld [vmem:[#allocation2 + $0x128] sm:$0xff]
    %v877 = vld [vmem:[#allocation2 + $0x130] sm:$0xff]
    %v878 = vld [vmem:[#allocation2 + $0x138] sm:$0xff]
    %v879 = vld [vmem:[#allocation2 + $0x140] sm:$0xff]
    %v880 = vld [vmem:[#allocation2 + $0x148] sm:$0xff]
    %v881 = vld [vmem:[#allocation2 + $0x150] sm:$0xff]
    %v882 = vld [vmem:[#allocation2 + $0x158] sm:$0xff]
    %v883 = vld [vmem:[#allocation2 + $0x160] sm:$0xff]
    %v884 = vld [vmem:[#allocation2 + $0x168] sm:$0xff]
    %v885 = vld [vmem:[#allocation2 + $0x170] sm:$0xff]
    %v886 = vld [vmem:[#allocation2 + $0x178] sm:$0xff]
    %v887 = vld [vmem:[#allocation2 + $0x180] sm:$0xff]
    %v888 = vld [vmem:[#allocation2 + $0x188] sm:$0xff]
    %v889 = vld [vmem:[#allocation2 + $0x190] sm:$0xff]
    %v890 = vld [vmem:[#allocation2 + $0x198] sm:$0xff]
    %v891 = vld [vmem:[#allocation2 + $0x1a0] sm:$0xff]
    %v892 = vld [vmem:[#allocation2 + $0x1a8] sm:$0xff]
    %v893 = vld [vmem:[#allocation2 + $0x1b0] sm:$0xff]
    %v894 = vld [vmem:[#allocation2 + $0x1b8] sm:$0xff]
    %v895 = vld [vmem:[#allocation2 + $0x1c0] sm:$0xff]
    %v896 = vld [vmem:[#allocation2 + $0x1c8] sm:$0xff]
    %v897 = vld [vmem:[#allocation2 + $0x1d0] sm:$0xff]
    %v898 = vld [vmem:[#allocation2 + $0x1d8] sm:$0xff]
    %v899 = vld [vmem:[#allocation2 + $0x1e0] sm:$0xff]
    %v900 = vld [vmem:[#allocation2 + $0x1e8] sm:$0xff]
    %v901 = vld [vmem:[#allocation2 + $0x1f0] sm:$0xff]
    %v902 = vld [vmem:[#allocation2 + $0x1f8] sm:$0xff]
    %v903 = vld [vmem:[#allocation2 + $0x200] sm:$0xff]
    %v904 = vld [vmem:[#allocation2 + $0x208] sm:$0xff]
    %v905 = vld [vmem:[#allocation2 + $0x210] sm:$0xff]
    %v906 = vld [vmem:[#allocation2 + $0x218] sm:$0xff]
    %v907 = vld [vmem:[#allocation2 + $0x220] sm:$0xff]
    %v908 = vld [vmem:[#allocation2 + $0x228] sm:$0xff]
    %v909 = vld [vmem:[#allocation2 + $0x230] sm:$0xff]
    %v910 = vld [vmem:[#allocation2 + $0x238] sm:$0xff]
    %v911 = vld [vmem:[#allocation2 + $0x240] sm:$0xff]
    %v912 = vld [vmem:[#allocation2 + $0x248] sm:$0xff]
    %v913 = vld [vmem:[#allocation2 + $0x250] sm:$0xff]
    %v914 = vld [vmem:[#allocation2 + $0x258] sm:$0xff]
    %v915 = vld [vmem:[#allocation2 + $0x260] sm:$0xff]
    %v916 = vld [vmem:[#allocation2 + $0x268] sm:$0xff]
    %v917 = vld [vmem:[#allocation2 + $0x270] sm:$0xff]
    %v918 = vld [vmem:[#allocation2 + $0x278] sm:$0xff]
    %v919 = vld [vmem:[#allocation2 + $0x280] sm:$0xff]
    %v920 = vld [vmem:[#allocation2 + $0x288] sm:$0xff]
    %v921 = vld [vmem:[#allocation2 + $0x290] sm:$0xff]
    %v922 = vld [vmem:[#allocation2 + $0x298] sm:$0xff]
    %v923 = vld [vmem:[#allocation2 + $0x2a0] sm:$0xff]
    %v924 = vld [vmem:[#allocation2 + $0x2a8] sm:$0xff]
    %v925 = vld [vmem:[#allocation2 + $0x2b0] sm:$0xff]
    %v926 = vld [vmem:[#allocation2 + $0x2b8] sm:$0xff]
    %v927 = vld [vmem:[#allocation2 + $0x2c0] sm:$0xff]
    %v928 = vld [vmem:[#allocation2 + $0x2c8] sm:$0xff]
    %v929 = vld [vmem:[#allocation2 + $0x2d0] sm:$0xff]
    %v930 = vld [vmem:[#allocation2 + $0x2d8] sm:$0xff]
    %v931 = vld [vmem:[#allocation2 + $0x2e0] sm:$0xff]
    %v932 = vld [vmem:[#allocation2 + $0x2e8] sm:$0xff]
    %v933 = vld [vmem:[#allocation2 + $0x2f0] sm:$0xff]
    %v934 = vld [vmem:[#allocation2 + $0x2f8] sm:$0xff]
    %v935 = vld [vmem:[#allocation2 + $0x300] sm:$0xff]
    %v936 = vld [vmem:[#allocation2 + $0x308] sm:$0xff]
    %v937 = vld [vmem:[#allocation2 + $0x310] sm:$0xff]
    %v938 = vld [vmem:[#allocation2 + $0x318] sm:$0xff]
    %v939 = vld [vmem:[#allocation2 + $0x320] sm:$0xff]
    %v940 = vld [vmem:[#allocation2 + $0x328] sm:$0xff]
    %v941 = vld [vmem:[#allocation2 + $0x330] sm:$0xff]
    %v942 = vld [vmem:[#allocation2 + $0x338] sm:$0xff]
    %v943 = vld [vmem:[#allocation2 + $0x340] sm:$0xff]
    %v944 = vld [vmem:[#allocation2 + $0x348] sm:$0xff]
    %v945 = vld [vmem:[#allocation2 + $0x350] sm:$0xff]
    %v946 = vld [vmem:[#allocation2 + $0x358] sm:$0xff]
    %v947 = vld [vmem:[#allocation2 + $0x360] sm:$0xff]
    %v948 = vld [vmem:[#allocation2 + $0x368] sm:$0xff]
    %v949 = vld [vmem:[#allocation2 + $0x370] sm:$0xff]
    %v950 = vld [vmem:[#allocation2 + $0x378] sm:$0xff]
    %v951 = vld [vmem:[#allocation2 + $0x380] sm:$0xff]
    %v952 = vld [vmem:[#allocation2 + $0x388] sm:$0xff]
    %v953 = vld [vmem:[#allocation2 + $0x390] sm:$0xff]
    %v954 = vld [vmem:[#allocation2 + $0x398] sm:$0xff]
    %v955 = vld [vmem:[#allocation2 + $0x3a0] sm:$0xff]
    %v956 = vld [vmem:[#allocation2 + $0x3a8] sm:$0xff]
    %v957 = vld [vmem:[#allocation2 + $0x3b0] sm:$0xff]
    %v958 = vld [vmem:[#allocation2 + $0x3b8] sm:$0xff]
    %v959 = vld [vmem:[#allocation2 + $0x3c0] sm:$0xff]
    %v960 = vld [vmem:[#allocation2 + $0x3c8] sm:$0xff]
    %v961 = vld [vmem:[#allocation2 + $0x3d0] sm:$0xff]
    %v962 = vld [vmem:[#allocation2 + $0x3d8] sm:$0xff]
    %v963 = vld [vmem:[#allocation2 + $0x3e0] sm:$0xff]
    %v964 = vld [vmem:[#allocation2 + $0x3e8] sm:$0xff]
    %v965 = vld [vmem:[#allocation2 + $0x3f0] sm:$0xff]
    %v966 = vld [vmem:[#allocation2 + $0x3f8] sm:$0xff]
    %v967 = vld [vmem:[#allocation2 + $0x400] sm:$0xff]
    %v968 = vld [vmem:[#allocation2 + $0x408] sm:$0xff]
    %v969 = vld [vmem:[#allocation2 + $0x410] sm:$0xff]
    %v970 = vld [vmem:[#allocation2 + $0x418] sm:$0xff]
    %v971 = vld [vmem:[#allocation2 + $0x420] sm:$0xff]
    %v972 = vld [vmem:[#allocation2 + $0x428] sm:$0xff]
    %v973 = vld [vmem:[#allocation2 + $0x430] sm:$0xff]
    %v974 = vld [vmem:[#allocation2 + $0x438] sm:$0xff]
    %v975 = vld [vmem:[#allocation2 + $0x440] sm:$0xff]
    %v976 = vld [vmem:[#allocation2 + $0x448] sm:$0xff]
    %v977 = vld [vmem:[#allocation2 + $0x450] sm:$0xff]
    %v978 = vld [vmem:[#allocation2 + $0x458] sm:$0xff]
    %v979 = vld [vmem:[#allocation2 + $0x460] sm:$0xff]
    %v980 = vld [vmem:[#allocation2 + $0x468] sm:$0xff]
    %v981 = vld [vmem:[#allocation2 + $0x470] sm:$0xff]
    %v982 = vld [vmem:[#allocation2 + $0x478] sm:$0xff]
    %v983 = vld [vmem:[#allocation2 + $0x480] sm:$0xff]
    %v984 = vld [vmem:[#allocation2 + $0x488] sm:$0xff]
    %v985 = vld [vmem:[#allocation2 + $0x490] sm:$0xff]
    %v986 = vld [vmem:[#allocation2 + $0x498] sm:$0xff]
    %v987 = vld [vmem:[#allocation2 + $0x4a0] sm:$0xff]
    %v988 = vld [vmem:[#allocation2 + $0x4a8] sm:$0xff]
    %v989 = vld [vmem:[#allocation2 + $0x4b0] sm:$0xff]
    %v990 = vld [vmem:[#allocation2 + $0x4b8] sm:$0xff]
    %v991 = vld [vmem:[#allocation2 + $0x4c0] sm:$0xff]
    %v992 = vld [vmem:[#allocation2 + $0x4c8] sm:$0xff]
    %v993 = vld [vmem:[#allocation2 + $0x4d0] sm:$0xff]
    %v994 = vld [vmem:[#allocation2 + $0x4d8] sm:$0xff]
    %v995 = vld [vmem:[#allocation2 + $0x4e0] sm:$0xff]
    %v996 = vld [vmem:[#allocation2 + $0x4e8] sm:$0xff]
    %v997 = vld [vmem:[#allocation2 + $0x4f0] sm:$0xff]
    %v998 = vld [vmem:[#allocation2 + $0x4f8] sm:$0xff]
    %v999 = vld [vmem:[#allocation2 + $0x500] sm:$0xff]
    %v1000 = vld [vmem:[#allocation2 + $0x508] sm:$0xff]
    %v1001 = vld [vmem:[#allocation2 + $0x510] sm:$0xff]
    %v1002 = vld [vmem:[#allocation2 + $0x518] sm:$0xff]
    %v1003 = vld [vmem:[#allocation2 + $0x520] sm:$0xff]
    %v1004 = vld [vmem:[#allocation2 + $0x528] sm:$0xff]
    %v1005 = vld [vmem:[#allocation2 + $0x530] sm:$0xff]
    %v1006 = vld [vmem:[#allocation2 + $0x538] sm:$0xff]
    %v1007 = vld [vmem:[#allocation2 + $0x540] sm:$0xff]
    %v1008 = vld [vmem:[#allocation2 + $0x548] sm:$0xff]
    %v1009 = vld [vmem:[#allocation2 + $0x550] sm:$0xff]
    %v1010 = vld [vmem:[#allocation2 + $0x558] sm:$0xff]
    %v1011 = vld [vmem:[#allocation2 + $0x560] sm:$0xff]
    %v1012 = vld [vmem:[#allocation2 + $0x568] sm:$0xff]
    %v1013 = vld [vmem:[#allocation2 + $0x570] sm:$0xff]
    %v1014 = vld [vmem:[#allocation2 + $0x578] sm:$0xff]
    %v1015 = vld [vmem:[#allocation2 + $0x580] sm:$0xff]
    %v1016 = vld [vmem:[#allocation2 + $0x588] sm:$0xff]
    %v1017 = vld [vmem:[#allocation2 + $0x590] sm:$0xff]
    %v1018 = vld [vmem:[#allocation2 + $0x598] sm:$0xff]
    %v1019 = vld [vmem:[#allocation2 + $0x5a0] sm:$0xff]
    %v1020 = vld [vmem:[#allocation2 + $0x5a8] sm:$0xff]
    %v1021 = vld [vmem:[#allocation2 + $0x5b0] sm:$0xff]
    %v1022 = vld [vmem:[#allocation2 + $0x5b8] sm:$0xff]
    %v1023 = vld [vmem:[#allocation2 + $0x5c0] sm:$0xff]
    %v1024 = vld [vmem:[#allocation2 + $0x5c8] sm:$0xff]
    %v1025 = vld [vmem:[#allocation2 + $0x5d0] sm:$0xff]
    %v1026 = vld [vmem:[#allocation2 + $0x5d8] sm:$0xff]
    %v1027 = vld [vmem:[#allocation2 + $0x5e0] sm:$0xff]
    %v1028 = vld [vmem:[#allocation2 + $0x5e8] sm:$0xff]
    %v1029 = vld [vmem:[#allocation2 + $0x5f0] sm:$0xff]
    %v1030 = vld [vmem:[#allocation2 + $0x5f8] sm:$0xff]
    %v1031 = vld [vmem:[#allocation2 + $0x600] sm:$0xff]
    %v1032 = vld [vmem:[#allocation2 + $0x608] sm:$0xff]
    %v1033 = vld [vmem:[#allocation2 + $0x610] sm:$0xff]
    %v1034 = vld [vmem:[#allocation2 + $0x618] sm:$0xff]
    %v1035 = vld [vmem:[#allocation2 + $0x620] sm:$0xff]
    %v1036 = vld [vmem:[#allocation2 + $0x628] sm:$0xff]
    %v1037 = vld [vmem:[#allocation2 + $0x630] sm:$0xff]
    %v1038 = vld [vmem:[#allocation2 + $0x638] sm:$0xff]
    %v1039 = vld [vmem:[#allocation2 + $0x640] sm:$0xff]
    %v1040 = vld [vmem:[#allocation2 + $0x648] sm:$0xff]
    %v1041 = vld [vmem:[#allocation2 + $0x650] sm:$0xff]
    %v1042 = vld [vmem:[#allocation2 + $0x658] sm:$0xff]
    %v1043 = vld [vmem:[#allocation2 + $0x660] sm:$0xff]
    %v1044 = vld [vmem:[#allocation2 + $0x668] sm:$0xff]
    %v1045 = vld [vmem:[#allocation2 + $0x670] sm:$0xff]
    %v1046 = vld [vmem:[#allocation2 + $0x678] sm:$0xff]
    %v1047 = vld [vmem:[#allocation2 + $0x680] sm:$0xff]
    %v1048 = vld [vmem:[#allocation2 + $0x688] sm:$0xff]
    %v1049 = vld [vmem:[#allocation2 + $0x690] sm:$0xff]
    %v1050 = vld [vmem:[#allocation2 + $0x698] sm:$0xff]
    %v1051 = vld [vmem:[#allocation2 + $0x6a0] sm:$0xff]
    %v1052 = vld [vmem:[#allocation2 + $0x6a8] sm:$0xff]
    %v1053 = vld [vmem:[#allocation2 + $0x6b0] sm:$0xff]
    %v1054 = vld [vmem:[#allocation2 + $0x6b8] sm:$0xff]
    %v1055 = vld [vmem:[#allocation2 + $0x6c0] sm:$0xff]
    %v1056 = vld [vmem:[#allocation2 + $0x6c8] sm:$0xff]
    %v1057 = vld [vmem:[#allocation2 + $0x6d0] sm:$0xff]
    %v1058 = vld [vmem:[#allocation2 + $0x6d8] sm:$0xff]
    %v1059 = vld [vmem:[#allocation2 + $0x6e0] sm:$0xff]
    %v1060 = vld [vmem:[#allocation2 + $0x6e8] sm:$0xff]
    %v1061 = vld [vmem:[#allocation2 + $0x6f0] sm:$0xff]
    %v1062 = vld [vmem:[#allocation2 + $0x6f8] sm:$0xff]
    %v1063 = vld [vmem:[#allocation2 + $0x700] sm:$0xff]
    %v1064 = vld [vmem:[#allocation2 + $0x708] sm:$0xff]
    %v1065 = vld [vmem:[#allocation2 + $0x710] sm:$0xff]
    %v1066 = vld [vmem:[#allocation2 + $0x718] sm:$0xff]
    %v1067 = vld [vmem:[#allocation2 + $0x720] sm:$0xff]
    %v1068 = vld [vmem:[#allocation2 + $0x728] sm:$0xff]
    %v1069 = vld [vmem:[#allocation2 + $0x730] sm:$0xff]
    %v1070 = vld [vmem:[#allocation2 + $0x738] sm:$0xff]
    %v1071 = vld [vmem:[#allocation2 + $0x740] sm:$0xff]
    %v1072 = vld [vmem:[#allocation2 + $0x748] sm:$0xff]
    %v1073 = vld [vmem:[#allocation2 + $0x750] sm:$0xff]
    %v1074 = vld [vmem:[#allocation2 + $0x758] sm:$0xff]
    %v1075 = vld [vmem:[#allocation2 + $0x760] sm:$0xff]
    %v1076 = vld [vmem:[#allocation2 + $0x768] sm:$0xff]
    %v1077 = vld [vmem:[#allocation2 + $0x770] sm:$0xff]
    %v1078 = vld [vmem:[#allocation2 + $0x778] sm:$0xff]
    %v1079 = vld [vmem:[#allocation2 + $0x780] sm:$0xff]
    %v1080 = vld [vmem:[#allocation2 + $0x788] sm:$0xff]
    %v1081 = vld [vmem:[#allocation2 + $0x790] sm:$0xff]
    %v1082 = vld [vmem:[#allocation2 + $0x798] sm:$0xff]
    %v1083 = vld [vmem:[#allocation2 + $0x7a0] sm:$0xff]
    %v1084 = vld [vmem:[#allocation2 + $0x7a8] sm:$0xff]
    %v1085 = vld [vmem:[#allocation2 + $0x7b0] sm:$0xff]
    %v1086 = vld [vmem:[#allocation2 + $0x7b8] sm:$0xff]
    %v1087 = vld [vmem:[#allocation2 + $0x7c0] sm:$0xff]
    %v1088 = vld [vmem:[#allocation2 + $0x7c8] sm:$0xff]
    %v1089 = vld [vmem:[#allocation2 + $0x7d0] sm:$0xff]
    %v1090 = vld [vmem:[#allocation2 + $0x7d8] sm:$0xff]
    %v1091 = vld [vmem:[#allocation2 + $0x7e0] sm:$0xff]
    %v1092 = vld [vmem:[#allocation2 + $0x7e8] sm:$0xff]
    %v1093 = vld [vmem:[#allocation2 + $0x7f0] sm:$0xff]
    %v1094 = vld [vmem:[#allocation2 + $0x7f8] sm:$0xff]
    %v1095 = vld [vmem:[#allocation13] sm:$0xf]
    %v1097 = vperm.slane %v1095, 0
    %v1098 = vperm.slane %v1095, 1
    %v1099 = vperm.slane %v1095, 2
    %v1100 = vperm.slane %v1095, 3
    %v1361 = vunpack.c.l.b16 %v839
    %v1362 = vunpack.c.h.b16 %v839
    %v1363 = vunpack.c.l.b16 %v840
    %v1364 = vunpack.c.h.b16 %v840
    %v1365 = vunpack.c.l.b16 %v841
    %v1366 = vunpack.c.h.b16 %v841
    %v1367 = vunpack.c.l.b16 %v842
    %v1368 = vunpack.c.h.b16 %v842
    %v1369 = vunpack.c.l.b16 %v843
    %v1370 = vunpack.c.h.b16 %v843
    %v1371 = vunpack.c.l.b16 %v844
    %v1372 = vunpack.c.h.b16 %v844
    %v1373 = vunpack.c.l.b16 %v845
    %v1374 = vunpack.c.h.b16 %v845
    %v1375 = vunpack.c.l.b16 %v846
    %v1376 = vunpack.c.h.b16 %v846
    %v1377 = vunpack.c.l.b16 %v847
    %v1378 = vunpack.c.h.b16 %v847
    %v1379 = vunpack.c.l.b16 %v848
    %v1380 = vunpack.c.h.b16 %v848
    %v1381 = vunpack.c.l.b16 %v849
    %v1382 = vunpack.c.h.b16 %v849
    %v1383 = vunpack.c.l.b16 %v850
    %v1384 = vunpack.c.h.b16 %v850
    %v1385 = vunpack.c.l.b16 %v851
    %v1386 = vunpack.c.h.b16 %v851
    %v1387 = vunpack.c.l.b16 %v852
    %v1388 = vunpack.c.h.b16 %v852
    %v1389 = vunpack.c.l.b16 %v853
    %v1390 = vunpack.c.h.b16 %v853
    %v1391 = vunpack.c.l.b16 %v854
    %v1392 = vunpack.c.h.b16 %v854
    %v1393 = vunpack.c.l.b16 %v855
    %v1394 = vunpack.c.h.b16 %v855
    %v1395 = vunpack.c.l.b16 %v856
    %v1396 = vunpack.c.h.b16 %v856
    %v1397 = vunpack.c.l.b16 %v857
    %v1398 = vunpack.c.h.b16 %v857
    %v1399 = vunpack.c.l.b16 %v858
    %v1400 = vunpack.c.h.b16 %v858
    %v1401 = vunpack.c.l.b16 %v859
    %v1402 = vunpack.c.h.b16 %v859
    %v1403 = vunpack.c.l.b16 %v860
    %v1404 = vunpack.c.h.b16 %v860
    %v1405 = vunpack.c.l.b16 %v861
    %v1406 = vunpack.c.h.b16 %v861
    %v1407 = vunpack.c.l.b16 %v862
    %v1408 = vunpack.c.h.b16 %v862
    %v1409 = vunpack.c.l.b16 %v863
    %v1410 = vunpack.c.h.b16 %v863
    %v1411 = vunpack.c.l.b16 %v864
    %v1412 = vunpack.c.h.b16 %v864
    %v1413 = vunpack.c.l.b16 %v865
    %v1414 = vunpack.c.h.b16 %v865
    %v1415 = vunpack.c.l.b16 %v866
    %v1416 = vunpack.c.h.b16 %v866
    %v1417 = vunpack.c.l.b16 %v867
    %v1418 = vunpack.c.h.b16 %v867
    %v1419 = vunpack.c.l.b16 %v868
    %v1420 = vunpack.c.h.b16 %v868
    %v1421 = vunpack.c.l.b16 %v869
    %v1422 = vunpack.c.h.b16 %v869
    %v1423 = vunpack.c.l.b16 %v870
    %v1424 = vunpack.c.h.b16 %v870
    %v1425 = vunpack.c.l.b16 %v871
    %v1426 = vunpack.c.h.b16 %v871
    %v1427 = vunpack.c.l.b16 %v872
    %v1428 = vunpack.c.h.b16 %v872
    %v1429 = vunpack.c.l.b16 %v873
    %v1430 = vunpack.c.h.b16 %v873
    %v1431 = vunpack.c.l.b16 %v874
    %v1432 = vunpack.c.h.b16 %v874
    %v1433 = vunpack.c.l.b16 %v875
    %v1434 = vunpack.c.h.b16 %v875
    %v1435 = vunpack.c.l.b16 %v876
    %v1436 = vunpack.c.h.b16 %v876
    %v1437 = vunpack.c.l.b16 %v877
    %v1438 = vunpack.c.h.b16 %v877
    %v1439 = vunpack.c.l.b16 %v878
    %v1440 = vunpack.c.h.b16 %v878
    %v1441 = vunpack.c.l.b16 %v879
    %v1442 = vunpack.c.h.b16 %v879
    %v1443 = vunpack.c.l.b16 %v880
    %v1444 = vunpack.c.h.b16 %v880
    %v1445 = vunpack.c.l.b16 %v881
    %v1446 = vunpack.c.h.b16 %v881
    %v1447 = vunpack.c.l.b16 %v882
    %v1448 = vunpack.c.h.b16 %v882
    %v1449 = vunpack.c.l.b16 %v883
    %v1450 = vunpack.c.h.b16 %v883
    %v1451 = vunpack.c.l.b16 %v884
    %v1452 = vunpack.c.h.b16 %v884
    %v1453 = vunpack.c.l.b16 %v885
    %v1454 = vunpack.c.h.b16 %v885
    %v1455 = vunpack.c.l.b16 %v886
    %v1456 = vunpack.c.h.b16 %v886
    %v1457 = vunpack.c.l.b16 %v887
    %v1458 = vunpack.c.h.b16 %v887
    %v1459 = vunpack.c.l.b16 %v888
    %v1460 = vunpack.c.h.b16 %v888
    %v1461 = vunpack.c.l.b16 %v889
    %v1462 = vunpack.c.h.b16 %v889
    %v1463 = vunpack.c.l.b16 %v890
    %v1464 = vunpack.c.h.b16 %v890
    %v1465 = vunpack.c.l.b16 %v891
    %v1466 = vunpack.c.h.b16 %v891
    %v1467 = vunpack.c.l.b16 %v892
    %v1468 = vunpack.c.h.b16 %v892
    %v1469 = vunpack.c.l.b16 %v893
    %v1470 = vunpack.c.h.b16 %v893
    %v1471 = vunpack.c.l.b16 %v894
    %v1472 = vunpack.c.h.b16 %v894
    %v1473 = vunpack.c.l.b16 %v895
    %v1474 = vunpack.c.h.b16 %v895
    %v1475 = vunpack.c.l.b16 %v896
    %v1476 = vunpack.c.h.b16 %v896
    %v1477 = vunpack.c.l.b16 %v897
    %v1478 = vunpack.c.h.b16 %v897
    %v1479 = vunpack.c.l.b16 %v898
    %v1480 = vunpack.c.h.b16 %v898
    %v1481 = vunpack.c.l.b16 %v899
    %v1482 = vunpack.c.h.b16 %v899
    %v1483 = vunpack.c.l.b16 %v900
    %v1484 = vunpack.c.h.b16 %v900
    %v1485 = vunpack.c.l.b16 %v901
    %v1486 = vunpack.c.h.b16 %v901
    %v1487 = vunpack.c.l.b16 %v902
    %v1488 = vunpack.c.h.b16 %v902
    %v1489 = vunpack.c.l.b16 %v903
    %v1490 = vunpack.c.h.b16 %v903
    %v1491 = vunpack.c.l.b16 %v904
    %v1492 = vunpack.c.h.b16 %v904
    %v1493 = vunpack.c.l.b16 %v905
    %v1494 = vunpack.c.h.b16 %v905
    %v1495 = vunpack.c.l.b16 %v906
    %v1496 = vunpack.c.h.b16 %v906
    %v1497 = vunpack.c.l.b16 %v907
    %v1498 = vunpack.c.h.b16 %v907
    %v1499 = vunpack.c.l.b16 %v908
    %v1500 = vunpack.c.h.b16 %v908
    %v1501 = vunpack.c.l.b16 %v909
    %v1502 = vunpack.c.h.b16 %v909
    %v1503 = vunpack.c.l.b16 %v910
    %v1504 = vunpack.c.h.b16 %v910
    %v1505 = vunpack.c.l.b16 %v911
    %v1506 = vunpack.c.h.b16 %v911
    %v1507 = vunpack.c.l.b16 %v912
    %v1508 = vunpack.c.h.b16 %v912
    %v1509 = vunpack.c.l.b16 %v913
    %v1510 = vunpack.c.h.b16 %v913
    %v1511 = vunpack.c.l.b16 %v914
    %v1512 = vunpack.c.h.b16 %v914
    %v1513 = vunpack.c.l.b16 %v915
    %v1514 = vunpack.c.h.b16 %v915
    %v1515 = vunpack.c.l.b16 %v916
    %v1516 = vunpack.c.h.b16 %v916
    %v1517 = vunpack.c.l.b16 %v917
    %v1518 = vunpack.c.h.b16 %v917
    %v1519 = vunpack.c.l.b16 %v918
    %v1520 = vunpack.c.h.b16 %v918
    %v1521 = vunpack.c.l.b16 %v919
    %v1522 = vunpack.c.h.b16 %v919
    %v1523 = vunpack.c.l.b16 %v920
    %v1524 = vunpack.c.h.b16 %v920
    %v1525 = vunpack.c.l.b16 %v921
    %v1526 = vunpack.c.h.b16 %v921
    %v1527 = vunpack.c.l.b16 %v922
    %v1528 = vunpack.c.h.b16 %v922
    %v1529 = vunpack.c.l.b16 %v923
    %v1530 = vunpack.c.h.b16 %v923
    %v1531 = vunpack.c.l.b16 %v924
    %v1532 = vunpack.c.h.b16 %v924
    %v1533 = vunpack.c.l.b16 %v925
    %v1534 = vunpack.c.h.b16 %v925
    %v1535 = vunpack.c.l.b16 %v926
    %v1536 = vunpack.c.h.b16 %v926
    %v1537 = vunpack.c.l.b16 %v927
    %v1538 = vunpack.c.h.b16 %v927
    %v1539 = vunpack.c.l.b16 %v928
    %v1540 = vunpack.c.h.b16 %v928
    %v1541 = vunpack.c.l.b16 %v929
    %v1542 = vunpack.c.h.b16 %v929
    %v1543 = vunpack.c.l.b16 %v930
    %v1544 = vunpack.c.h.b16 %v930
    %v1545 = vunpack.c.l.b16 %v931
    %v1546 = vunpack.c.h.b16 %v931
    %v1547 = vunpack.c.l.b16 %v932
    %v1548 = vunpack.c.h.b16 %v932
    %v1549 = vunpack.c.l.b16 %v933
    %v1550 = vunpack.c.h.b16 %v933
    %v1551 = vunpack.c.l.b16 %v934
    %v1552 = vunpack.c.h.b16 %v934
    %v1553 = vunpack.c.l.b16 %v935
    %v1554 = vunpack.c.h.b16 %v935
    %v1555 = vunpack.c.l.b16 %v936
    %v1556 = vunpack.c.h.b16 %v936
    %v1557 = vunpack.c.l.b16 %v937
    %v1558 = vunpack.c.h.b16 %v937
    %v1559 = vunpack.c.l.b16 %v938
    %v1560 = vunpack.c.h.b16 %v938
    %v1561 = vunpack.c.l.b16 %v939
    %v1562 = vunpack.c.h.b16 %v939
    %v1563 = vunpack.c.l.b16 %v940
    %v1564 = vunpack.c.h.b16 %v940
    %v1565 = vunpack.c.l.b16 %v941
    %v1566 = vunpack.c.h.b16 %v941
    %v1567 = vunpack.c.l.b16 %v942
    %v1568 = vunpack.c.h.b16 %v942
    %v1569 = vunpack.c.l.b16 %v943
    %v1570 = vunpack.c.h.b16 %v943
    %v1571 = vunpack.c.l.b16 %v944
    %v1572 = vunpack.c.h.b16 %v944
    %v1573 = vunpack.c.l.b16 %v945
    %v1574 = vunpack.c.h.b16 %v945
    %v1575 = vunpack.c.l.b16 %v946
    %v1576 = vunpack.c.h.b16 %v946
    %v1577 = vunpack.c.l.b16 %v947
    %v1578 = vunpack.c.h.b16 %v947
    %v1579 = vunpack.c.l.b16 %v948
    %v1580 = vunpack.c.h.b16 %v948
    %v1581 = vunpack.c.l.b16 %v949
    %v1582 = vunpack.c.h.b16 %v949
    %v1583 = vunpack.c.l.b16 %v950
    %v1584 = vunpack.c.h.b16 %v950
    %v1585 = vunpack.c.l.b16 %v951
    %v1586 = vunpack.c.h.b16 %v951
    %v1587 = vunpack.c.l.b16 %v952
    %v1588 = vunpack.c.h.b16 %v952
    %v1589 = vunpack.c.l.b16 %v953
    %v1590 = vunpack.c.h.b16 %v953
    %v1591 = vunpack.c.l.b16 %v954
    %v1592 = vunpack.c.h.b16 %v954
    %v1593 = vunpack.c.l.b16 %v955
    %v1594 = vunpack.c.h.b16 %v955
    %v1595 = vunpack.c.l.b16 %v956
    %v1596 = vunpack.c.h.b16 %v956
    %v1597 = vunpack.c.l.b16 %v957
    %v1598 = vunpack.c.h.b16 %v957
    %v1599 = vunpack.c.l.b16 %v958
    %v1600 = vunpack.c.h.b16 %v958
    %v1601 = vunpack.c.l.b16 %v959
    %v1602 = vunpack.c.h.b16 %v959
    %v1603 = vunpack.c.l.b16 %v960
    %v1604 = vunpack.c.h.b16 %v960
    %v1605 = vunpack.c.l.b16 %v961
    %v1606 = vunpack.c.h.b16 %v961
    %v1607 = vunpack.c.l.b16 %v962
    %v1608 = vunpack.c.h.b16 %v962
    %v1609 = vunpack.c.l.b16 %v963
    %v1610 = vunpack.c.h.b16 %v963
    %v1611 = vunpack.c.l.b16 %v964
    %v1612 = vunpack.c.h.b16 %v964
    %v1613 = vunpack.c.l.b16 %v965
    %v1614 = vunpack.c.h.b16 %v965
    %v1615 = vunpack.c.l.b16 %v966
    %v1616 = vunpack.c.h.b16 %v966
    %v1617 = vunpack.c.l.b16 %v967
    %v1618 = vunpack.c.h.b16 %v967
    %v1619 = vunpack.c.l.b16 %v968
    %v1620 = vunpack.c.h.b16 %v968
    %v1621 = vunpack.c.l.b16 %v969
    %v1622 = vunpack.c.h.b16 %v969
    %v1623 = vunpack.c.l.b16 %v970
    %v1624 = vunpack.c.h.b16 %v970
    %v1625 = vunpack.c.l.b16 %v971
    %v1626 = vunpack.c.h.b16 %v971
    %v1627 = vunpack.c.l.b16 %v972
    %v1628 = vunpack.c.h.b16 %v972
    %v1629 = vunpack.c.l.b16 %v973
    %v1630 = vunpack.c.h.b16 %v973
    %v1631 = vunpack.c.l.b16 %v974
    %v1632 = vunpack.c.h.b16 %v974
    %v1633 = vunpack.c.l.b16 %v975
    %v1634 = vunpack.c.h.b16 %v975
    %v1635 = vunpack.c.l.b16 %v976
    %v1636 = vunpack.c.h.b16 %v976
    %v1637 = vunpack.c.l.b16 %v977
    %v1638 = vunpack.c.h.b16 %v977
    %v1639 = vunpack.c.l.b16 %v978
    %v1640 = vunpack.c.h.b16 %v978
    %v1641 = vunpack.c.l.b16 %v979
    %v1642 = vunpack.c.h.b16 %v979
    %v1643 = vunpack.c.l.b16 %v980
    %v1644 = vunpack.c.h.b16 %v980
    %v1645 = vunpack.c.l.b16 %v981
    %v1646 = vunpack.c.h.b16 %v981
    %v1647 = vunpack.c.l.b16 %v982
    %v1648 = vunpack.c.h.b16 %v982
    %v1649 = vunpack.c.l.b16 %v983
    %v1650 = vunpack.c.h.b16 %v983
    %v1651 = vunpack.c.l.b16 %v984
    %v1652 = vunpack.c.h.b16 %v984
    %v1653 = vunpack.c.l.b16 %v985
    %v1654 = vunpack.c.h.b16 %v985
    %v1655 = vunpack.c.l.b16 %v986
    %v1656 = vunpack.c.h.b16 %v986
    %v1657 = vunpack.c.l.b16 %v987
    %v1658 = vunpack.c.h.b16 %v987
    %v1659 = vunpack.c.l.b16 %v988
    %v1660 = vunpack.c.h.b16 %v988
    %v1661 = vunpack.c.l.b16 %v989
    %v1662 = vunpack.c.h.b16 %v989
    %v1663 = vunpack.c.l.b16 %v990
    %v1664 = vunpack.c.h.b16 %v990
    %v1665 = vunpack.c.l.b16 %v991
    %v1666 = vunpack.c.h.b16 %v991
    %v1667 = vunpack.c.l.b16 %v992
    %v1668 = vunpack.c.h.b16 %v992
    %v1669 = vunpack.c.l.b16 %v993
    %v1670 = vunpack.c.h.b16 %v993
    %v1671 = vunpack.c.l.b16 %v994
    %v1672 = vunpack.c.h.b16 %v994
    %v1673 = vunpack.c.l.b16 %v995
    %v1674 = vunpack.c.h.b16 %v995
    %v1675 = vunpack.c.l.b16 %v996
    %v1676 = vunpack.c.h.b16 %v996
    %v1677 = vunpack.c.l.b16 %v997
    %v1678 = vunpack.c.h.b16 %v997
    %v1679 = vunpack.c.l.b16 %v998
    %v1680 = vunpack.c.h.b16 %v998
    %v1681 = vunpack.c.l.b16 %v999
    %v1682 = vunpack.c.h.b16 %v999
    %v1683 = vunpack.c.l.b16 %v1000
    %v1684 = vunpack.c.h.b16 %v1000
    %v1685 = vunpack.c.l.b16 %v1001
    %v1686 = vunpack.c.h.b16 %v1001
    %v1687 = vunpack.c.l.b16 %v1002
    %v1688 = vunpack.c.h.b16 %v1002
    %v1689 = vunpack.c.l.b16 %v1003
    %v1690 = vunpack.c.h.b16 %v1003
    %v1691 = vunpack.c.l.b16 %v1004
    %v1692 = vunpack.c.h.b16 %v1004
    %v1693 = vunpack.c.l.b16 %v1005
    %v1694 = vunpack.c.h.b16 %v1005
    %v1695 = vunpack.c.l.b16 %v1006
    %v1696 = vunpack.c.h.b16 %v1006
    %v1697 = vunpack.c.l.b16 %v1007
    %v1698 = vunpack.c.h.b16 %v1007
    %v1699 = vunpack.c.l.b16 %v1008
    %v1700 = vunpack.c.h.b16 %v1008
    %v1701 = vunpack.c.l.b16 %v1009
    %v1702 = vunpack.c.h.b16 %v1009
    %v1703 = vunpack.c.l.b16 %v1010
    %v1704 = vunpack.c.h.b16 %v1010
    %v1705 = vunpack.c.l.b16 %v1011
    %v1706 = vunpack.c.h.b16 %v1011
    %v1707 = vunpack.c.l.b16 %v1012
    %v1708 = vunpack.c.h.b16 %v1012
    %v1709 = vunpack.c.l.b16 %v1013
    %v1710 = vunpack.c.h.b16 %v1013
    %v1711 = vunpack.c.l.b16 %v1014
    %v1712 = vunpack.c.h.b16 %v1014
    %v1713 = vunpack.c.l.b16 %v1015
    %v1714 = vunpack.c.h.b16 %v1015
    %v1715 = vunpack.c.l.b16 %v1016
    %v1716 = vunpack.c.h.b16 %v1016
    %v1717 = vunpack.c.l.b16 %v1017
    %v1718 = vunpack.c.h.b16 %v1017
    %v1719 = vunpack.c.l.b16 %v1018
    %v1720 = vunpack.c.h.b16 %v1018
    %v1721 = vunpack.c.l.b16 %v1019
    %v1722 = vunpack.c.h.b16 %v1019
    %v1723 = vunpack.c.l.b16 %v1020
    %v1724 = vunpack.c.h.b16 %v1020
    %v1725 = vunpack.c.l.b16 %v1021
    %v1726 = vunpack.c.h.b16 %v1021
    %v1727 = vunpack.c.l.b16 %v1022
    %v1728 = vunpack.c.h.b16 %v1022
    %v1729 = vunpack.c.l.b16 %v1023
    %v1730 = vunpack.c.h.b16 %v1023
    %v1731 = vunpack.c.l.b16 %v1024
    %v1732 = vunpack.c.h.b16 %v1024
    %v1733 = vunpack.c.l.b16 %v1025
    %v1734 = vunpack.c.h.b16 %v1025
    %v1735 = vunpack.c.l.b16 %v1026
    %v1736 = vunpack.c.h.b16 %v1026
    %v1737 = vunpack.c.l.b16 %v1027
    %v1738 = vunpack.c.h.b16 %v1027
    %v1739 = vunpack.c.l.b16 %v1028
    %v1740 = vunpack.c.h.b16 %v1028
    %v1741 = vunpack.c.l.b16 %v1029
    %v1742 = vunpack.c.h.b16 %v1029
    %v1743 = vunpack.c.l.b16 %v1030
    %v1744 = vunpack.c.h.b16 %v1030
    %v1745 = vunpack.c.l.b16 %v1031
    %v1746 = vunpack.c.h.b16 %v1031
    %v1747 = vunpack.c.l.b16 %v1032
    %v1748 = vunpack.c.h.b16 %v1032
    %v1749 = vunpack.c.l.b16 %v1033
    %v1750 = vunpack.c.h.b16 %v1033
    %v1751 = vunpack.c.l.b16 %v1034
    %v1752 = vunpack.c.h.b16 %v1034
    %v1753 = vunpack.c.l.b16 %v1035
    %v1754 = vunpack.c.h.b16 %v1035
    %v1755 = vunpack.c.l.b16 %v1036
    %v1756 = vunpack.c.h.b16 %v1036
    %v1757 = vunpack.c.l.b16 %v1037
    %v1758 = vunpack.c.h.b16 %v1037
    %v1759 = vunpack.c.l.b16 %v1038
    %v1760 = vunpack.c.h.b16 %v1038
    %v1761 = vunpack.c.l.b16 %v1039
    %v1762 = vunpack.c.h.b16 %v1039
    %v1763 = vunpack.c.l.b16 %v1040
    %v1764 = vunpack.c.h.b16 %v1040
    %v1765 = vunpack.c.l.b16 %v1041
    %v1766 = vunpack.c.h.b16 %v1041
    %v1767 = vunpack.c.l.b16 %v1042
    %v1768 = vunpack.c.h.b16 %v1042
    %v1769 = vunpack.c.l.b16 %v1043
    %v1770 = vunpack.c.h.b16 %v1043
    %v1771 = vunpack.c.l.b16 %v1044
    %v1772 = vunpack.c.h.b16 %v1044
    %v1773 = vunpack.c.l.b16 %v1045
    %v1774 = vunpack.c.h.b16 %v1045
    %v1775 = vunpack.c.l.b16 %v1046
    %v1776 = vunpack.c.h.b16 %v1046
    %v1777 = vunpack.c.l.b16 %v1047
    %v1778 = vunpack.c.h.b16 %v1047
    %v1779 = vunpack.c.l.b16 %v1048
    %v1780 = vunpack.c.h.b16 %v1048
    %v1781 = vunpack.c.l.b16 %v1049
    %v1782 = vunpack.c.h.b16 %v1049
    %v1783 = vunpack.c.l.b16 %v1050
    %v1784 = vunpack.c.h.b16 %v1050
    %v1785 = vunpack.c.l.b16 %v1051
    %v1786 = vunpack.c.h.b16 %v1051
    %v1787 = vunpack.c.l.b16 %v1052
    %v1788 = vunpack.c.h.b16 %v1052
    %v1789 = vunpack.c.l.b16 %v1053
    %v1790 = vunpack.c.h.b16 %v1053
    %v1791 = vunpack.c.l.b16 %v1054
    %v1792 = vunpack.c.h.b16 %v1054
    %v1793 = vunpack.c.l.b16 %v1055
    %v1794 = vunpack.c.h.b16 %v1055
    %v1795 = vunpack.c.l.b16 %v1056
    %v1796 = vunpack.c.h.b16 %v1056
    %v1797 = vunpack.c.l.b16 %v1057
    %v1798 = vunpack.c.h.b16 %v1057
    %v1799 = vunpack.c.l.b16 %v1058
    %v1800 = vunpack.c.h.b16 %v1058
    %v1801 = vunpack.c.l.b16 %v1059
    %v1802 = vunpack.c.h.b16 %v1059
    %v1803 = vunpack.c.l.b16 %v1060
    %v1804 = vunpack.c.h.b16 %v1060
    %v1805 = vunpack.c.l.b16 %v1061
    %v1806 = vunpack.c.h.b16 %v1061
    %v1807 = vunpack.c.l.b16 %v1062
    %v1808 = vunpack.c.h.b16 %v1062
    %v1809 = vunpack.c.l.b16 %v1063
    %v1810 = vunpack.c.h.b16 %v1063
    %v1811 = vunpack.c.l.b16 %v1064
    %v1812 = vunpack.c.h.b16 %v1064
    %v1813 = vunpack.c.l.b16 %v1065
    %v1814 = vunpack.c.h.b16 %v1065
    %v1815 = vunpack.c.l.b16 %v1066
    %v1816 = vunpack.c.h.b16 %v1066
    %v1817 = vunpack.c.l.b16 %v1067
    %v1818 = vunpack.c.h.b16 %v1067
    %v1819 = vunpack.c.l.b16 %v1068
    %v1820 = vunpack.c.h.b16 %v1068
    %v1821 = vunpack.c.l.b16 %v1069
    %v1822 = vunpack.c.h.b16 %v1069
    %v1823 = vunpack.c.l.b16 %v1070
    %v1824 = vunpack.c.h.b16 %v1070
    %v1825 = vunpack.c.l.b16 %v1071
    %v1826 = vunpack.c.h.b16 %v1071
    %v1827 = vunpack.c.l.b16 %v1072
    %v1828 = vunpack.c.h.b16 %v1072
    %v1829 = vunpack.c.l.b16 %v1073
    %v1830 = vunpack.c.h.b16 %v1073
    %v1831 = vunpack.c.l.b16 %v1074
    %v1832 = vunpack.c.h.b16 %v1074
    %v1833 = vunpack.c.l.b16 %v1075
    %v1834 = vunpack.c.h.b16 %v1075
    %v1835 = vunpack.c.l.b16 %v1076
    %v1836 = vunpack.c.h.b16 %v1076
    %v1837 = vunpack.c.l.b16 %v1077
    %v1838 = vunpack.c.h.b16 %v1077
    %v1839 = vunpack.c.l.b16 %v1078
    %v1840 = vunpack.c.h.b16 %v1078
    %v1841 = vunpack.c.l.b16 %v1079
    %v1842 = vunpack.c.h.b16 %v1079
    %v1843 = vunpack.c.l.b16 %v1080
    %v1844 = vunpack.c.h.b16 %v1080
    %v1845 = vunpack.c.l.b16 %v1081
    %v1846 = vunpack.c.h.b16 %v1081
    %v1847 = vunpack.c.l.b16 %v1082
    %v1848 = vunpack.c.h.b16 %v1082
    %v1849 = vunpack.c.l.b16 %v1083
    %v1850 = vunpack.c.h.b16 %v1083
    %v1851 = vunpack.c.l.b16 %v1084
    %v1852 = vunpack.c.h.b16 %v1084
    %v1853 = vunpack.c.l.b16 %v1085
    %v1854 = vunpack.c.h.b16 %v1085
    %v1855 = vunpack.c.l.b16 %v1086
    %v1856 = vunpack.c.h.b16 %v1086
    %v1857 = vunpack.c.l.b16 %v1087
    %v1858 = vunpack.c.h.b16 %v1087
    %v1859 = vunpack.c.l.b16 %v1088
    %v1860 = vunpack.c.h.b16 %v1088
    %v1861 = vunpack.c.l.b16 %v1089
    %v1862 = vunpack.c.h.b16 %v1089
    %v1863 = vunpack.c.l.b16 %v1090
    %v1864 = vunpack.c.h.b16 %v1090
    %v1865 = vunpack.c.l.b16 %v1091
    %v1866 = vunpack.c.h.b16 %v1091
    %v1867 = vunpack.c.l.b16 %v1092
    %v1868 = vunpack.c.h.b16 %v1092
    %v1869 = vunpack.c.l.b16 %v1093
    %v1870 = vunpack.c.h.b16 %v1093
    %v1871 = vunpack.c.l.b16 %v1094
    %v1872 = vunpack.c.h.b16 %v1094
    %v1873 = vpack.c.b16 %v1365, %v1361
    %v1874 = vpack.c.b16 %v1366, %v1362
    %v1875 = vpack.c.b16 %v1367, %v1363
    %v1876 = vpack.c.b16 %v1368, %v1364
    %v1877 = vpack.c.b16 %v1373, %v1369
    %v1878 = vpack.c.b16 %v1374, %v1370
    %v1879 = vpack.c.b16 %v1375, %v1371
    %v1880 = vpack.c.b16 %v1376, %v1372
    %v1881 = vpack.c.b16 %v1381, %v1377
    %v1882 = vpack.c.b16 %v1382, %v1378
    %v1883 = vpack.c.b16 %v1383, %v1379
    %v1884 = vpack.c.b16 %v1384, %v1380
    %v1885 = vpack.c.b16 %v1389, %v1385
    %v1886 = vpack.c.b16 %v1390, %v1386
    %v1887 = vpack.c.b16 %v1391, %v1387
    %v1888 = vpack.c.b16 %v1392, %v1388
    %v1889 = vpack.c.b16 %v1397, %v1393
    %v1890 = vpack.c.b16 %v1398, %v1394
    %v1891 = vpack.c.b16 %v1399, %v1395
    %v1892 = vpack.c.b16 %v1400, %v1396
    %v1893 = vpack.c.b16 %v1405, %v1401
    %v1894 = vpack.c.b16 %v1406, %v1402
    %v1895 = vpack.c.b16 %v1407, %v1403
    %v1896 = vpack.c.b16 %v1408, %v1404
    %v1897 = vpack.c.b16 %v1413, %v1409
    %v1898 = vpack.c.b16 %v1414, %v1410
    %v1899 = vpack.c.b16 %v1415, %v1411
    %v1900 = vpack.c.b16 %v1416, %v1412
    %v1901 = vpack.c.b16 %v1421, %v1417
    %v1902 = vpack.c.b16 %v1422, %v1418
    %v1903 = vpack.c.b16 %v1423, %v1419
    %v1904 = vpack.c.b16 %v1424, %v1420
    %v1905 = vpack.c.b16 %v1429, %v1425
    %v1906 = vpack.c.b16 %v1430, %v1426
    %v1907 = vpack.c.b16 %v1431, %v1427
    %v1908 = vpack.c.b16 %v1432, %v1428
    %v1909 = vpack.c.b16 %v1437, %v1433
    %v1910 = vpack.c.b16 %v1438, %v1434
    %v1911 = vpack.c.b16 %v1439, %v1435
    %v1912 = vpack.c.b16 %v1440, %v1436
    %v1913 = vpack.c.b16 %v1445, %v1441
    %v1914 = vpack.c.b16 %v1446, %v1442
    %v1915 = vpack.c.b16 %v1447, %v1443
    %v1916 = vpack.c.b16 %v1448, %v1444
    %v1917 = vpack.c.b16 %v1453, %v1449
    %v1918 = vpack.c.b16 %v1454, %v1450
    %v1919 = vpack.c.b16 %v1455, %v1451
    %v1920 = vpack.c.b16 %v1456, %v1452
    %v1921 = vpack.c.b16 %v1461, %v1457
    %v1922 = vpack.c.b16 %v1462, %v1458
    %v1923 = vpack.c.b16 %v1463, %v1459
    %v1924 = vpack.c.b16 %v1464, %v1460
    %v1925 = vpack.c.b16 %v1469, %v1465
    %v1926 = vpack.c.b16 %v1470, %v1466
    %v1927 = vpack.c.b16 %v1471, %v1467
    %v1928 = vpack.c.b16 %v1472, %v1468
    %v1929 = vpack.c.b16 %v1477, %v1473
    %v1930 = vpack.c.b16 %v1478, %v1474
    %v1931 = vpack.c.b16 %v1479, %v1475
    %v1932 = vpack.c.b16 %v1480, %v1476
    %v1933 = vpack.c.b16 %v1485, %v1481
    %v1934 = vpack.c.b16 %v1486, %v1482
    %v1935 = vpack.c.b16 %v1487, %v1483
    %v1936 = vpack.c.b16 %v1488, %v1484
    %v1937 = vpack.c.b16 %v1493, %v1489
    %v1938 = vpack.c.b16 %v1494, %v1490
    %v1939 = vpack.c.b16 %v1495, %v1491
    %v1940 = vpack.c.b16 %v1496, %v1492
    %v1941 = vpack.c.b16 %v1501, %v1497
    %v1942 = vpack.c.b16 %v1502, %v1498
    %v1943 = vpack.c.b16 %v1503, %v1499
    %v1944 = vpack.c.b16 %v1504, %v1500
    %v1945 = vpack.c.b16 %v1509, %v1505
    %v1946 = vpack.c.b16 %v1510, %v1506
    %v1947 = vpack.c.b16 %v1511, %v1507
    %v1948 = vpack.c.b16 %v1512, %v1508
    %v1949 = vpack.c.b16 %v1517, %v1513
    %v1950 = vpack.c.b16 %v1518, %v1514
    %v1951 = vpack.c.b16 %v1519, %v1515
    %v1952 = vpack.c.b16 %v1520, %v1516
    %v1953 = vpack.c.b16 %v1525, %v1521
    %v1954 = vpack.c.b16 %v1526, %v1522
    %v1955 = vpack.c.b16 %v1527, %v1523
    %v1956 = vpack.c.b16 %v1528, %v1524
    %v1957 = vpack.c.b16 %v1533, %v1529
    %v1958 = vpack.c.b16 %v1534, %v1530
    %v1959 = vpack.c.b16 %v1535, %v1531
    %v1960 = vpack.c.b16 %v1536, %v1532
    %v1961 = vpack.c.b16 %v1541, %v1537
    %v1962 = vpack.c.b16 %v1542, %v1538
    %v1963 = vpack.c.b16 %v1543, %v1539
    %v1964 = vpack.c.b16 %v1544, %v1540
    %v1965 = vpack.c.b16 %v1549, %v1545
    %v1966 = vpack.c.b16 %v1550, %v1546
    %v1967 = vpack.c.b16 %v1551, %v1547
    %v1968 = vpack.c.b16 %v1552, %v1548
    %v1969 = vpack.c.b16 %v1557, %v1553
    %v1970 = vpack.c.b16 %v1558, %v1554
    %v1971 = vpack.c.b16 %v1559, %v1555
    %v1972 = vpack.c.b16 %v1560, %v1556
    %v1973 = vpack.c.b16 %v1565, %v1561
    %v1974 = vpack.c.b16 %v1566, %v1562
    %v1975 = vpack.c.b16 %v1567, %v1563
    %v1976 = vpack.c.b16 %v1568, %v1564
    %v1977 = vpack.c.b16 %v1573, %v1569
    %v1978 = vpack.c.b16 %v1574, %v1570
    %v1979 = vpack.c.b16 %v1575, %v1571
    %v1980 = vpack.c.b16 %v1576, %v1572
    %v1981 = vpack.c.b16 %v1581, %v1577
    %v1982 = vpack.c.b16 %v1582, %v1578
    %v1983 = vpack.c.b16 %v1583, %v1579
    %v1984 = vpack.c.b16 %v1584, %v1580
    %v1985 = vpack.c.b16 %v1589, %v1585
    %v1986 = vpack.c.b16 %v1590, %v1586
    %v1987 = vpack.c.b16 %v1591, %v1587
    %v1988 = vpack.c.b16 %v1592, %v1588
    %v1989 = vpack.c.b16 %v1597, %v1593
    %v1990 = vpack.c.b16 %v1598, %v1594
    %v1991 = vpack.c.b16 %v1599, %v1595
    %v1992 = vpack.c.b16 %v1600, %v1596
    %v1993 = vpack.c.b16 %v1605, %v1601
    %v1994 = vpack.c.b16 %v1606, %v1602
    %v1995 = vpack.c.b16 %v1607, %v1603
    %v1996 = vpack.c.b16 %v1608, %v1604
    %v1997 = vpack.c.b16 %v1613, %v1609
    %v1998 = vpack.c.b16 %v1614, %v1610
    %v1999 = vpack.c.b16 %v1615, %v1611
    %v2000 = vpack.c.b16 %v1616, %v1612
    %v2001 = vpack.c.b16 %v1621, %v1617
    %v2002 = vpack.c.b16 %v1622, %v1618
    %v2003 = vpack.c.b16 %v1623, %v1619
    %v2004 = vpack.c.b16 %v1624, %v1620
    %v2005 = vpack.c.b16 %v1629, %v1625
    %v2006 = vpack.c.b16 %v1630, %v1626
    %v2007 = vpack.c.b16 %v1631, %v1627
    %v2008 = vpack.c.b16 %v1632, %v1628
    %v2009 = vpack.c.b16 %v1637, %v1633
    %v2010 = vpack.c.b16 %v1638, %v1634
    %v2011 = vpack.c.b16 %v1639, %v1635
    %v2012 = vpack.c.b16 %v1640, %v1636
    %v2013 = vpack.c.b16 %v1645, %v1641
    %v2014 = vpack.c.b16 %v1646, %v1642
    %v2015 = vpack.c.b16 %v1647, %v1643
    %v2016 = vpack.c.b16 %v1648, %v1644
    %v2017 = vpack.c.b16 %v1653, %v1649
    %v2018 = vpack.c.b16 %v1654, %v1650
    %v2019 = vpack.c.b16 %v1655, %v1651
    %v2020 = vpack.c.b16 %v1656, %v1652
    %v2021 = vpack.c.b16 %v1661, %v1657
    %v2022 = vpack.c.b16 %v1662, %v1658
    %v2023 = vpack.c.b16 %v1663, %v1659
    %v2024 = vpack.c.b16 %v1664, %v1660
    %v2025 = vpack.c.b16 %v1669, %v1665
    %v2026 = vpack.c.b16 %v1670, %v1666
    %v2027 = vpack.c.b16 %v1671, %v1667
    %v2028 = vpack.c.b16 %v1672, %v1668
    %v2029 = vpack.c.b16 %v1677, %v1673
    %v2030 = vpack.c.b16 %v1678, %v1674
    %v2031 = vpack.c.b16 %v1679, %v1675
    %v2032 = vpack.c.b16 %v1680, %v1676
    %v2033 = vpack.c.b16 %v1685, %v1681
    %v2034 = vpack.c.b16 %v1686, %v1682
    %v2035 = vpack.c.b16 %v1687, %v1683
    %v2036 = vpack.c.b16 %v1688, %v1684
    %v2037 = vpack.c.b16 %v1693, %v1689
    %v2038 = vpack.c.b16 %v1694, %v1690
    %v2039 = vpack.c.b16 %v1695, %v1691
    %v2040 = vpack.c.b16 %v1696, %v1692
    %v2041 = vpack.c.b16 %v1701, %v1697
    %v2042 = vpack.c.b16 %v1702, %v1698
    %v2043 = vpack.c.b16 %v1703, %v1699
    %v2044 = vpack.c.b16 %v1704, %v1700
    %v2045 = vpack.c.b16 %v1709, %v1705
    %v2046 = vpack.c.b16 %v1710, %v1706
    %v2047 = vpack.c.b16 %v1711, %v1707
    %v2048 = vpack.c.b16 %v1712, %v1708
    %v2049 = vpack.c.b16 %v1717, %v1713
    %v2050 = vpack.c.b16 %v1718, %v1714
    %v2051 = vpack.c.b16 %v1719, %v1715
    %v2052 = vpack.c.b16 %v1720, %v1716
    %v2053 = vpack.c.b16 %v1725, %v1721
    %v2054 = vpack.c.b16 %v1726, %v1722
    %v2055 = vpack.c.b16 %v1727, %v1723
    %v2056 = vpack.c.b16 %v1728, %v1724
    %v2057 = vpack.c.b16 %v1733, %v1729
    %v2058 = vpack.c.b16 %v1734, %v1730
    %v2059 = vpack.c.b16 %v1735, %v1731
    %v2060 = vpack.c.b16 %v1736, %v1732
    %v2061 = vpack.c.b16 %v1741, %v1737
    %v2062 = vpack.c.b16 %v1742, %v1738
    %v2063 = vpack.c.b16 %v1743, %v1739
    %v2064 = vpack.c.b16 %v1744, %v1740
    %v2065 = vpack.c.b16 %v1749, %v1745
    %v2066 = vpack.c.b16 %v1750, %v1746
    %v2067 = vpack.c.b16 %v1751, %v1747
    %v2068 = vpack.c.b16 %v1752, %v1748
    %v2069 = vpack.c.b16 %v1757, %v1753
    %v2070 = vpack.c.b16 %v1758, %v1754
    %v2071 = vpack.c.b16 %v1759, %v1755
    %v2072 = vpack.c.b16 %v1760, %v1756
    %v2073 = vpack.c.b16 %v1765, %v1761
    %v2074 = vpack.c.b16 %v1766, %v1762
    %v2075 = vpack.c.b16 %v1767, %v1763
    %v2076 = vpack.c.b16 %v1768, %v1764
    %v2077 = vpack.c.b16 %v1773, %v1769
    %v2078 = vpack.c.b16 %v1774, %v1770
    %v2079 = vpack.c.b16 %v1775, %v1771
    %v2080 = vpack.c.b16 %v1776, %v1772
    %v2081 = vpack.c.b16 %v1781, %v1777
    %v2082 = vpack.c.b16 %v1782, %v1778
    %v2083 = vpack.c.b16 %v1783, %v1779
    %v2084 = vpack.c.b16 %v1784, %v1780
    %v2085 = vpack.c.b16 %v1789, %v1785
    %v2086 = vpack.c.b16 %v1790, %v1786
    %v2087 = vpack.c.b16 %v1791, %v1787
    %v2088 = vpack.c.b16 %v1792, %v1788
    %v2089 = vpack.c.b16 %v1797, %v1793
    %v2090 = vpack.c.b16 %v1798, %v1794
    %v2091 = vpack.c.b16 %v1799, %v1795
    %v2092 = vpack.c.b16 %v1800, %v1796
    %v2093 = vpack.c.b16 %v1805, %v1801
    %v2094 = vpack.c.b16 %v1806, %v1802
    %v2095 = vpack.c.b16 %v1807, %v1803
    %v2096 = vpack.c.b16 %v1808, %v1804
    %v2097 = vpack.c.b16 %v1813, %v1809
    %v2098 = vpack.c.b16 %v1814, %v1810
    %v2099 = vpack.c.b16 %v1815, %v1811
    %v2100 = vpack.c.b16 %v1816, %v1812
    %v2101 = vpack.c.b16 %v1821, %v1817
    %v2102 = vpack.c.b16 %v1822, %v1818
    %v2103 = vpack.c.b16 %v1823, %v1819
    %v2104 = vpack.c.b16 %v1824, %v1820
    %v2105 = vpack.c.b16 %v1829, %v1825
    %v2106 = vpack.c.b16 %v1830, %v1826
    %v2107 = vpack.c.b16 %v1831, %v1827
    %v2108 = vpack.c.b16 %v1832, %v1828
    %v2109 = vpack.c.b16 %v1837, %v1833
    %v2110 = vpack.c.b16 %v1838, %v1834
    %v2111 = vpack.c.b16 %v1839, %v1835
    %v2112 = vpack.c.b16 %v1840, %v1836
    %v2113 = vpack.c.b16 %v1845, %v1841
    %v2114 = vpack.c.b16 %v1846, %v1842
    %v2115 = vpack.c.b16 %v1847, %v1843
    %v2116 = vpack.c.b16 %v1848, %v1844
    %v2117 = vpack.c.b16 %v1853, %v1849
    %v2118 = vpack.c.b16 %v1854, %v1850
    %v2119 = vpack.c.b16 %v1855, %v1851
    %v2120 = vpack.c.b16 %v1856, %v1852
    %v2121 = vpack.c.b16 %v1861, %v1857
    %v2122 = vpack.c.b16 %v1862, %v1858
    %v2123 = vpack.c.b16 %v1863, %v1859
    %v2124 = vpack.c.b16 %v1864, %v1860
    %v2125 = vpack.c.b16 %v1869, %v1865
    %v2126 = vpack.c.b16 %v1870, %v1866
    %v2127 = vpack.c.b16 %v1871, %v1867
    %v2128 = vpack.c.b16 %v1872, %v1868
    %2385 = vmatpush.bf16.msra.mxu0 %v1901
    %2386 = vmatpush.bf16.msra.mxu0 %v1897
    %2387 = vmatpush.bf16.msra.mxu0 %v1893
    %2388 = vmatpush.bf16.msra.mxu0 %v1889
    %2389 = vmatpush.bf16.msra.mxu0 %v1885
    %2390 = vmatpush.bf16.msra.mxu0 %v1881
    %2391 = vmatpush.bf16.msra.mxu0 %v1877
    %2392 = vmatpush.bf16.msra.mxu0 %v1873
    %2393 = vmatmul.bf16.gmra.mxu0 %v831
    %v2394 = vpop.f32.mrf.mxu0
    %v2395 = vadd.f32 %v1097, %v2394
    %v2396 = vpop.f32.mrf.mxu0
    %2397 = vdwg.mxu0
    %2398 = vmatpush.bf16.msra.mxu0 %v1933
    %2399 = vmatpush.bf16.msra.mxu0 %v1929
    %2400 = vmatpush.bf16.msra.mxu0 %v1925
    %2401 = vmatpush.bf16.msra.mxu0 %v1921
    %2402 = vmatpush.bf16.msra.mxu0 %v1917
    %2403 = vmatpush.bf16.msra.mxu0 %v1913
    %2404 = vmatpush.bf16.msra.mxu0 %v1909
    %2405 = vmatpush.bf16.msra.mxu0 %v1905
    %2406 = vmatmul.bf16.gmra.mxu0 %v832
    %v2407 = vpop.f32.mrf.mxu0
    %v2408 = vadd.f32 %v2395, %v2407
    %v2409 = vpop.f32.mrf.mxu0
    %2410 = vdwg.mxu0
    %2411 = vmatpush.bf16.msra.mxu0 %v1965
    %2412 = vmatpush.bf16.msra.mxu0 %v1961
    %2413 = vmatpush.bf16.msra.mxu0 %v1957
    %2414 = vmatpush.bf16.msra.mxu0 %v1953
    %2415 = vmatpush.bf16.msra.mxu0 %v1949
    %2416 = vmatpush.bf16.msra.mxu0 %v1945
    %2417 = vmatpush.bf16.msra.mxu0 %v1941
    %2418 = vmatpush.bf16.msra.mxu0 %v1937
    %2419 = vmatmul.bf16.gmra.mxu0 %v833
    %v2420 = vpop.f32.mrf.mxu0
    %v2421 = vadd.f32 %v2408, %v2420
    %v2422 = vpop.f32.mrf.mxu0
    %2423 = vdwg.mxu0
    %2424 = vmatpush.bf16.msra.mxu0 %v1997
    %2425 = vmatpush.bf16.msra.mxu0 %v1993
    %2426 = vmatpush.bf16.msra.mxu0 %v1989
    %2427 = vmatpush.bf16.msra.mxu0 %v1985
    %2428 = vmatpush.bf16.msra.mxu0 %v1981
    %2429 = vmatpush.bf16.msra.mxu0 %v1977
    %2430 = vmatpush.bf16.msra.mxu0 %v1973
    %2431 = vmatpush.bf16.msra.mxu0 %v1969
    %2432 = vmatmul.bf16.gmra.mxu0 %v834
    %v2433 = vpop.f32.mrf.mxu0
    %v2434 = vadd.f32 %v2421, %v2433
    %v2435 = vpop.f32.mrf.mxu0
    %2436 = vdwg.mxu0
    %2437 = vmatpush.bf16.msra.mxu0 %v2029
    %2438 = vmatpush.bf16.msra.mxu0 %v2025
    %2439 = vmatpush.bf16.msra.mxu0 %v2021
    %2440 = vmatpush.bf16.msra.mxu0 %v2017
    %2441 = vmatpush.bf16.msra.mxu0 %v2013
    %2442 = vmatpush.bf16.msra.mxu0 %v2009
    %2443 = vmatpush.bf16.msra.mxu0 %v2005
    %2444 = vmatpush.bf16.msra.mxu0 %v2001
    %2445 = vmatmul.bf16.gmra.mxu0 %v835
    %v2446 = vpop.f32.mrf.mxu0
    %v2447 = vadd.f32 %v2434, %v2446
    %v2448 = vpop.f32.mrf.mxu0
    %2449 = vdwg.mxu0
    %2450 = vmatpush.bf16.msra.mxu0 %v2061
    %2451 = vmatpush.bf16.msra.mxu0 %v2057
    %2452 = vmatpush.bf16.msra.mxu0 %v2053
    %2453 = vmatpush.bf16.msra.mxu0 %v2049
    %2454 = vmatpush.bf16.msra.mxu0 %v2045
    %2455 = vmatpush.bf16.msra.mxu0 %v2041
    %2456 = vmatpush.bf16.msra.mxu0 %v2037
    %2457 = vmatpush.bf16.msra.mxu0 %v2033
    %2458 = vmatmul.bf16.gmra.mxu0 %v836
    %v2459 = vpop.f32.mrf.mxu0
    %v2460 = vadd.f32 %v2447, %v2459
    %v2461 = vpop.f32.mrf.mxu0
    %2462 = vdwg.mxu0
    %2463 = vmatpush.bf16.msra.mxu0 %v2093
    %2464 = vmatpush.bf16.msra.mxu0 %v2089
    %2465 = vmatpush.bf16.msra.mxu0 %v2085
    %2466 = vmatpush.bf16.msra.mxu0 %v2081
    %2467 = vmatpush.bf16.msra.mxu0 %v2077
    %2468 = vmatpush.bf16.msra.mxu0 %v2073
    %2469 = vmatpush.bf16.msra.mxu0 %v2069
    %2470 = vmatpush.bf16.msra.mxu0 %v2065
    %2471 = vmatmul.bf16.gmra.mxu0 %v837
    %v2472 = vpop.f32.mrf.mxu0
    %v2473 = vadd.f32 %v2460, %v2472
    %v2474 = vpop.f32.mrf.mxu0
    %2475 = vdwg.mxu0
    %2476 = vmatpush.bf16.msra.mxu0 %v2125
    %2477 = vmatpush.bf16.msra.mxu0 %v2121
    %2478 = vmatpush.bf16.msra.mxu0 %v2117
    %2479 = vmatpush.bf16.msra.mxu0 %v2113
    %2480 = vmatpush.bf16.msra.mxu0 %v2109
    %2481 = vmatpush.bf16.msra.mxu0 %v2105
    %2482 = vmatpush.bf16.msra.mxu0 %v2101
    %2483 = vmatpush.bf16.msra.mxu0 %v2097
    %2484 = vmatmul.bf16.gmra.mxu0 %v838
    %v2485 = vpop.f32.mrf.mxu0
    %v2486 = vadd.f32 %v2473, %v2485
    %v2487 = vpop.f32.mrf.mxu0
    %2488 = vdwg.mxu0
    %2489 = vmatpush.bf16.msra.mxu0 %v1902
    %2490 = vmatpush.bf16.msra.mxu0 %v1898
    %2491 = vmatpush.bf16.msra.mxu0 %v1894
    %2492 = vmatpush.bf16.msra.mxu0 %v1890
    %2493 = vmatpush.bf16.msra.mxu0 %v1886
    %2494 = vmatpush.bf16.msra.mxu0 %v1882
    %2495 = vmatpush.bf16.msra.mxu0 %v1878
    %2496 = vmatpush.bf16.msra.mxu0 %v1874
    %2497 = vmatmul.bf16.gmra.mxu0 %v831
    %v2498 = vpop.f32.mrf.mxu0
    %v2499 = vadd.f32 %v1098, %v2498
    %v2500 = vpop.f32.mrf.mxu0
    %2501 = vdwg.mxu0
    %2502 = vmatpush.bf16.msra.mxu0 %v1934
    %2503 = vmatpush.bf16.msra.mxu0 %v1930
    %2504 = vmatpush.bf16.msra.mxu0 %v1926
    %2505 = vmatpush.bf16.msra.mxu0 %v1922
    %2506 = vmatpush.bf16.msra.mxu0 %v1918
    %2507 = vmatpush.bf16.msra.mxu0 %v1914
    %2508 = vmatpush.bf16.msra.mxu0 %v1910
    %2509 = vmatpush.bf16.msra.mxu0 %v1906
    %2510 = vmatmul.bf16.gmra.mxu0 %v832
    %v2511 = vpop.f32.mrf.mxu0
    %v2512 = vadd.f32 %v2499, %v2511
    %v2513 = vpop.f32.mrf.mxu0
    %2514 = vdwg.mxu0
    %2515 = vmatpush.bf16.msra.mxu0 %v1966
    %2516 = vmatpush.bf16.msra.mxu0 %v1962
    %2517 = vmatpush.bf16.msra.mxu0 %v1958
    %2518 = vmatpush.bf16.msra.mxu0 %v1954
    %2519 = vmatpush.bf16.msra.mxu0 %v1950
    %2520 = vmatpush.bf16.msra.mxu0 %v1946
    %2521 = vmatpush.bf16.msra.mxu0 %v1942
    %2522 = vmatpush.bf16.msra.mxu0 %v1938
    %2523 = vmatmul.bf16.gmra.mxu0 %v833
    %v2524 = vpop.f32.mrf.mxu0
    %v2525 = vadd.f32 %v2512, %v2524
    %v2526 = vpop.f32.mrf.mxu0
    %2527 = vdwg.mxu0
    %2528 = vmatpush.bf16.msra.mxu0 %v1998
    %2529 = vmatpush.bf16.msra.mxu0 %v1994
    %2530 = vmatpush.bf16.msra.mxu0 %v1990
    %2531 = vmatpush.bf16.msra.mxu0 %v1986
    %2532 = vmatpush.bf16.msra.mxu0 %v1982
    %2533 = vmatpush.bf16.msra.mxu0 %v1978
    %2534 = vmatpush.bf16.msra.mxu0 %v1974
    %2535 = vmatpush.bf16.msra.mxu0 %v1970
    %2536 = vmatmul.bf16.gmra.mxu0 %v834
    %v2537 = vpop.f32.mrf.mxu0
    %v2538 = vadd.f32 %v2525, %v2537
    %v2539 = vpop.f32.mrf.mxu0
    %2540 = vdwg.mxu0
    %2541 = vmatpush.bf16.msra.mxu0 %v2030
    %2542 = vmatpush.bf16.msra.mxu0 %v2026
    %2543 = vmatpush.bf16.msra.mxu0 %v2022
    %2544 = vmatpush.bf16.msra.mxu0 %v2018
    %2545 = vmatpush.bf16.msra.mxu0 %v2014
    %2546 = vmatpush.bf16.msra.mxu0 %v2010
    %2547 = vmatpush.bf16.msra.mxu0 %v2006
    %2548 = vmatpush.bf16.msra.mxu0 %v2002
    %2549 = vmatmul.bf16.gmra.mxu0 %v835
    %v2550 = vpop.f32.mrf.mxu0
    %v2551 = vadd.f32 %v2538, %v2550
    %v2552 = vpop.f32.mrf.mxu0
    %2553 = vdwg.mxu0
    %2554 = vmatpush.bf16.msra.mxu0 %v2062
    %2555 = vmatpush.bf16.msra.mxu0 %v2058
    %2556 = vmatpush.bf16.msra.mxu0 %v2054
    %2557 = vmatpush.bf16.msra.mxu0 %v2050
    %2558 = vmatpush.bf16.msra.mxu0 %v2046
    %2559 = vmatpush.bf16.msra.mxu0 %v2042
    %2560 = vmatpush.bf16.msra.mxu0 %v2038
    %2561 = vmatpush.bf16.msra.mxu0 %v2034
    %2562 = vmatmul.bf16.gmra.mxu0 %v836
    %v2563 = vpop.f32.mrf.mxu0
    %v2564 = vadd.f32 %v2551, %v2563
    %v2565 = vpop.f32.mrf.mxu0
    %2566 = vdwg.mxu0
    %2567 = vmatpush.bf16.msra.mxu0 %v2094
    %2568 = vmatpush.bf16.msra.mxu0 %v2090
    %2569 = vmatpush.bf16.msra.mxu0 %v2086
    %2570 = vmatpush.bf16.msra.mxu0 %v2082
    %2571 = vmatpush.bf16.msra.mxu0 %v2078
    %2572 = vmatpush.bf16.msra.mxu0 %v2074
    %2573 = vmatpush.bf16.msra.mxu0 %v2070
    %2574 = vmatpush.bf16.msra.mxu0 %v2066
    %2575 = vmatmul.bf16.gmra.mxu0 %v837
    %v2576 = vpop.f32.mrf.mxu0
    %v2577 = vadd.f32 %v2564, %v2576
    %v2578 = vpop.f32.mrf.mxu0
    %2579 = vdwg.mxu0
    %2580 = vmatpush.bf16.msra.mxu0 %v2126
    %2581 = vmatpush.bf16.msra.mxu0 %v2122
    %2582 = vmatpush.bf16.msra.mxu0 %v2118
    %2583 = vmatpush.bf16.msra.mxu0 %v2114
    %2584 = vmatpush.bf16.msra.mxu0 %v2110
    %2585 = vmatpush.bf16.msra.mxu0 %v2106
    %2586 = vmatpush.bf16.msra.mxu0 %v2102
    %2587 = vmatpush.bf16.msra.mxu0 %v2098
    %2588 = vmatmul.bf16.gmra.mxu0 %v838
    %v2589 = vpop.f32.mrf.mxu0
    %v2590 = vadd.f32 %v2577, %v2589
    %v2591 = vpop.f32.mrf.mxu0
    %2592 = vdwg.mxu0
    %2593 = vmatpush.bf16.msra.mxu0 %v1903
    %2594 = vmatpush.bf16.msra.mxu0 %v1899
    %2595 = vmatpush.bf16.msra.mxu0 %v1895
    %2596 = vmatpush.bf16.msra.mxu0 %v1891
    %2597 = vmatpush.bf16.msra.mxu0 %v1887
    %2598 = vmatpush.bf16.msra.mxu0 %v1883
    %2599 = vmatpush.bf16.msra.mxu0 %v1879
    %2600 = vmatpush.bf16.msra.mxu0 %v1875
    %2601 = vmatmul.bf16.gmra.mxu0 %v831
    %v2602 = vpop.f32.mrf.mxu0
    %v2603 = vadd.f32 %v1099, %v2602
    %v2604 = vpop.f32.mrf.mxu0
    %2605 = vdwg.mxu0
    %2606 = vmatpush.bf16.msra.mxu0 %v1935
    %2607 = vmatpush.bf16.msra.mxu0 %v1931
    %2608 = vmatpush.bf16.msra.mxu0 %v1927
    %2609 = vmatpush.bf16.msra.mxu0 %v1923
    %2610 = vmatpush.bf16.msra.mxu0 %v1919
    %2611 = vmatpush.bf16.msra.mxu0 %v1915
    %2612 = vmatpush.bf16.msra.mxu0 %v1911
    %2613 = vmatpush.bf16.msra.mxu0 %v1907
    %2614 = vmatmul.bf16.gmra.mxu0 %v832
    %v2615 = vpop.f32.mrf.mxu0
    %v2616 = vadd.f32 %v2603, %v2615
    %v2617 = vpop.f32.mrf.mxu0
    %2618 = vdwg.mxu0
    %2619 = vmatpush.bf16.msra.mxu0 %v1967
    %2620 = vmatpush.bf16.msra.mxu0 %v1963
    %2621 = vmatpush.bf16.msra.mxu0 %v1959
    %2622 = vmatpush.bf16.msra.mxu0 %v1955
    %2623 = vmatpush.bf16.msra.mxu0 %v1951
    %2624 = vmatpush.bf16.msra.mxu0 %v1947
    %2625 = vmatpush.bf16.msra.mxu0 %v1943
    %2626 = vmatpush.bf16.msra.mxu0 %v1939
    %2627 = vmatmul.bf16.gmra.mxu0 %v833
    %v2628 = vpop.f32.mrf.mxu0
    %v2629 = vadd.f32 %v2616, %v2628
    %v2630 = vpop.f32.mrf.mxu0
    %2631 = vdwg.mxu0
    %2632 = vmatpush.bf16.msra.mxu0 %v1999
    %2633 = vmatpush.bf16.msra.mxu0 %v1995
    %2634 = vmatpush.bf16.msra.mxu0 %v1991
    %2635 = vmatpush.bf16.msra.mxu0 %v1987
    %2636 = vmatpush.bf16.msra.mxu0 %v1983
    %2637 = vmatpush.bf16.msra.mxu0 %v1979
    %2638 = vmatpush.bf16.msra.mxu0 %v1975
    %2639 = vmatpush.bf16.msra.mxu0 %v1971
    %2640 = vmatmul.bf16.gmra.mxu0 %v834
    %v2641 = vpop.f32.mrf.mxu0
    %v2642 = vadd.f32 %v2629, %v2641
    %v2643 = vpop.f32.mrf.mxu0
    %2644 = vdwg.mxu0
    %2645 = vmatpush.bf16.msra.mxu0 %v2031
    %2646 = vmatpush.bf16.msra.mxu0 %v2027
    %2647 = vmatpush.bf16.msra.mxu0 %v2023
    %2648 = vmatpush.bf16.msra.mxu0 %v2019
    %2649 = vmatpush.bf16.msra.mxu0 %v2015
    %2650 = vmatpush.bf16.msra.mxu0 %v2011
    %2651 = vmatpush.bf16.msra.mxu0 %v2007
    %2652 = vmatpush.bf16.msra.mxu0 %v2003
    %2653 = vmatmul.bf16.gmra.mxu0 %v835
    %v2654 = vpop.f32.mrf.mxu0
    %v2655 = vadd.f32 %v2642, %v2654
    %v2656 = vpop.f32.mrf.mxu0
    %2657 = vdwg.mxu0
    %2658 = vmatpush.bf16.msra.mxu0 %v2063
    %2659 = vmatpush.bf16.msra.mxu0 %v2059
    %2660 = vmatpush.bf16.msra.mxu0 %v2055
    %2661 = vmatpush.bf16.msra.mxu0 %v2051
    %2662 = vmatpush.bf16.msra.mxu0 %v2047
    %2663 = vmatpush.bf16.msra.mxu0 %v2043
    %2664 = vmatpush.bf16.msra.mxu0 %v2039
    %2665 = vmatpush.bf16.msra.mxu0 %v2035
    %2666 = vmatmul.bf16.gmra.mxu0 %v836
    %v2667 = vpop.f32.mrf.mxu0
    %v2668 = vadd.f32 %v2655, %v2667
    %v2669 = vpop.f32.mrf.mxu0
    %2670 = vdwg.mxu0
    %2671 = vmatpush.bf16.msra.mxu0 %v2095
    %2672 = vmatpush.bf16.msra.mxu0 %v2091
    %2673 = vmatpush.bf16.msra.mxu0 %v2087
    %2674 = vmatpush.bf16.msra.mxu0 %v2083
    %2675 = vmatpush.bf16.msra.mxu0 %v2079
    %2676 = vmatpush.bf16.msra.mxu0 %v2075
    %2677 = vmatpush.bf16.msra.mxu0 %v2071
    %2678 = vmatpush.bf16.msra.mxu0 %v2067
    %2679 = vmatmul.bf16.gmra.mxu0 %v837
    %v2680 = vpop.f32.mrf.mxu0
    %v2681 = vadd.f32 %v2668, %v2680
    %v2682 = vpop.f32.mrf.mxu0
    %2683 = vdwg.mxu0
    %2684 = vmatpush.bf16.msra.mxu0 %v2127
    %2685 = vmatpush.bf16.msra.mxu0 %v2123
    %2686 = vmatpush.bf16.msra.mxu0 %v2119
    %2687 = vmatpush.bf16.msra.mxu0 %v2115
    %2688 = vmatpush.bf16.msra.mxu0 %v2111
    %2689 = vmatpush.bf16.msra.mxu0 %v2107
    %2690 = vmatpush.bf16.msra.mxu0 %v2103
    %2691 = vmatpush.bf16.msra.mxu0 %v2099
    %2692 = vmatmul.bf16.gmra.mxu0 %v838
    %v2693 = vpop.f32.mrf.mxu0
    %v2694 = vadd.f32 %v2681, %v2693
    %v2695 = vpop.f32.mrf.mxu0
    %2696 = vdwg.mxu0
    %2697 = vmatpush.bf16.msra.mxu0 %v1904
    %2698 = vmatpush.bf16.msra.mxu0 %v1900
    %2699 = vmatpush.bf16.msra.mxu0 %v1896
    %2700 = vmatpush.bf16.msra.mxu0 %v1892
    %2701 = vmatpush.bf16.msra.mxu0 %v1888
    %2702 = vmatpush.bf16.msra.mxu0 %v1884
    %2703 = vmatpush.bf16.msra.mxu0 %v1880
    %2704 = vmatpush.bf16.msra.mxu0 %v1876
    %2705 = vmatmul.bf16.gmra.mxu0 %v831
    %v2706 = vpop.f32.mrf.mxu0
    %v2707 = vadd.f32 %v1100, %v2706
    %v2708 = vpop.f32.mrf.mxu0
    %2709 = vdwg.mxu0
    %2710 = vmatpush.bf16.msra.mxu0 %v1936
    %2711 = vmatpush.bf16.msra.mxu0 %v1932
    %2712 = vmatpush.bf16.msra.mxu0 %v1928
    %2713 = vmatpush.bf16.msra.mxu0 %v1924
    %2714 = vmatpush.bf16.msra.mxu0 %v1920
    %2715 = vmatpush.bf16.msra.mxu0 %v1916
    %2716 = vmatpush.bf16.msra.mxu0 %v1912
    %2717 = vmatpush.bf16.msra.mxu0 %v1908
    %2718 = vmatmul.bf16.gmra.mxu0 %v832
    %v2719 = vpop.f32.mrf.mxu0
    %v2720 = vadd.f32 %v2707, %v2719
    %v2721 = vpop.f32.mrf.mxu0
    %2722 = vdwg.mxu0
    %2723 = vmatpush.bf16.msra.mxu0 %v1968
    %2724 = vmatpush.bf16.msra.mxu0 %v1964
    %2725 = vmatpush.bf16.msra.mxu0 %v1960
    %2726 = vmatpush.bf16.msra.mxu0 %v1956
    %2727 = vmatpush.bf16.msra.mxu0 %v1952
    %2728 = vmatpush.bf16.msra.mxu0 %v1948
    %2729 = vmatpush.bf16.msra.mxu0 %v1944
    %2730 = vmatpush.bf16.msra.mxu0 %v1940
    %2731 = vmatmul.bf16.gmra.mxu0 %v833
    %v2732 = vpop.f32.mrf.mxu0
    %v2733 = vadd.f32 %v2720, %v2732
    %v2734 = vpop.f32.mrf.mxu0
    %2735 = vdwg.mxu0
    %2736 = vmatpush.bf16.msra.mxu0 %v2000
    %2737 = vmatpush.bf16.msra.mxu0 %v1996
    %2738 = vmatpush.bf16.msra.mxu0 %v1992
    %2739 = vmatpush.bf16.msra.mxu0 %v1988
    %2740 = vmatpush.bf16.msra.mxu0 %v1984
    %2741 = vmatpush.bf16.msra.mxu0 %v1980
    %2742 = vmatpush.bf16.msra.mxu0 %v1976
    %2743 = vmatpush.bf16.msra.mxu0 %v1972
    %2744 = vmatmul.bf16.gmra.mxu0 %v834
    %v2745 = vpop.f32.mrf.mxu0
    %v2746 = vadd.f32 %v2733, %v2745
    %v2747 = vpop.f32.mrf.mxu0
    %2748 = vdwg.mxu0
    %2749 = vmatpush.bf16.msra.mxu0 %v2032
    %2750 = vmatpush.bf16.msra.mxu0 %v2028
    %2751 = vmatpush.bf16.msra.mxu0 %v2024
    %2752 = vmatpush.bf16.msra.mxu0 %v2020
    %2753 = vmatpush.bf16.msra.mxu0 %v2016
    %2754 = vmatpush.bf16.msra.mxu0 %v2012
    %2755 = vmatpush.bf16.msra.mxu0 %v2008
    %2756 = vmatpush.bf16.msra.mxu0 %v2004
    %2757 = vmatmul.bf16.gmra.mxu0 %v835
    %v2758 = vpop.f32.mrf.mxu0
    %v2759 = vadd.f32 %v2746, %v2758
    %v2760 = vpop.f32.mrf.mxu0
    %2761 = vdwg.mxu0
    %2762 = vmatpush.bf16.msra.mxu0 %v2064
    %2763 = vmatpush.bf16.msra.mxu0 %v2060
    %2764 = vmatpush.bf16.msra.mxu0 %v2056
    %2765 = vmatpush.bf16.msra.mxu0 %v2052
    %2766 = vmatpush.bf16.msra.mxu0 %v2048
    %2767 = vmatpush.bf16.msra.mxu0 %v2044
    %2768 = vmatpush.bf16.msra.mxu0 %v2040
    %2769 = vmatpush.bf16.msra.mxu0 %v2036
    %2770 = vmatmul.bf16.gmra.mxu0 %v836
    %v2771 = vpop.f32.mrf.mxu0
    %v2772 = vadd.f32 %v2759, %v2771
    %v2773 = vpop.f32.mrf.mxu0
    %2774 = vdwg.mxu0
    %2775 = vmatpush.bf16.msra.mxu0 %v2096
    %2776 = vmatpush.bf16.msra.mxu0 %v2092
    %2777 = vmatpush.bf16.msra.mxu0 %v2088
    %2778 = vmatpush.bf16.msra.mxu0 %v2084
    %2779 = vmatpush.bf16.msra.mxu0 %v2080
    %2780 = vmatpush.bf16.msra.mxu0 %v2076
    %2781 = vmatpush.bf16.msra.mxu0 %v2072
    %2782 = vmatpush.bf16.msra.mxu0 %v2068
    %2783 = vmatmul.bf16.gmra.mxu0 %v837
    %v2784 = vpop.f32.mrf.mxu0
    %v2785 = vadd.f32 %v2772, %v2784
    %v2786 = vpop.f32.mrf.mxu0
    %2787 = vdwg.mxu0
    %2788 = vmatpush.bf16.msra.mxu0 %v2128
    %2789 = vmatpush.bf16.msra.mxu0 %v2124
    %2790 = vmatpush.bf16.msra.mxu0 %v2120
    %2791 = vmatpush.bf16.msra.mxu0 %v2116
    %2792 = vmatpush.bf16.msra.mxu0 %v2112
    %2793 = vmatpush.bf16.msra.mxu0 %v2108
    %2794 = vmatpush.bf16.msra.mxu0 %v2104
    %2795 = vmatpush.bf16.msra.mxu0 %v2100
    %2796 = vmatmul.bf16.gmra.mxu0 %v838
    %v2797 = vpop.f32.mrf.mxu0
    %v2798 = vadd.f32 %v2785, %v2797
    %v2799 = vpop.f32.mrf.mxu0
    %2800 = vdwg.mxu0
    %vm2801 = vcmp.gt.f32.partialorder %v2486, 0.0
    %vm2802 = vcmp.gt.f32.partialorder %v2590, 0.0
    %vm2803 = vcmp.gt.f32.partialorder %v2694, 0.0
    %vm2804 = vcmp.gt.f32.partialorder %v2798, 0.0
    %v2805 = vmul.f32 %v2486, 0.2
    %v2806 = vmul.f32 %v2590, 0.2
    %v2807 = vmul.f32 %v2694, 0.2
    %v2808 = vmul.f32 %v2798, 0.2
    %v2809 = vsel %vm2801, %v2486, %v2805
    %v2810 = vsel %vm2802, %v2590, %v2806
    %v2811 = vsel %vm2803, %v2694, %v2807
    %v2812 = vsel %vm2804, %v2798, %v2808
    // Predicated region
    $region66: #{tpu_custom_call.1} parent=1 // pred_check
      %p2813 = pneg %p102
    $region67: #{tpu_custom_call.1} parent=1 // pred_check_branch
      %2815 = sbr.rel (%p2813) target = $region69
    $region68: #{tpu_custom_call.1} parent=1 // pred_region
      %s2816 = scalar_lea.sflag [#allocation6], 1
      %s2817 = smul.u32 4, 64
      %s2818 = smul.u32 %s2817, 4
      %s2819 = sshll.u32 %s2818, 4
      %2820 = dma.done %s2816, %s2819
      %s2821 = scalar_lea.sflag [#allocation6], 2
      // Predicated region
      $region70: #{tpu_custom_call.1} parent=68 // pred_check
        _
      $region71: #{tpu_custom_call.1} parent=68 // pred_check_branch
        %2823 = sbr.rel target = $region73
      $region72: #{tpu_custom_call.1} parent=68 // pred_region
        %2824 = sst [smem:[#allocation19]] [#allocation24]
        %2825 = sst [smem:[#allocation20]] [#allocation23]
      $region73: #{tpu_custom_call.1} parent=68 // pred_fallthru
        _
      %2827 = shalt.err (0)
      %s2829 = sshll.u32 %s7, 4
      %s2830 = int_to_ptr.hbm [resolvable:$true] %s2829
      %s2831 = sshll.u32 [#allocation4], 4
      %s2832 = int_to_ptr.vmem [resolvable:$true] %s2831
      %2834 = dma.hbm_to_vmem [thread:$0]  %s2830, 16384, %s2832, %s2821
    $region69: #{tpu_custom_call.1} parent=1 // pred_fallthru
      _
    %v2835 = vpack.c.bf16 %v2809, %v2809
    %v2836 = vpack.c.bf16 %v2810, %v2810
    %v2837 = vpack.c.bf16 %v2811, %v2811
    %v2838 = vpack.c.bf16 %v2812, %v2812
    %v2839 = vld [vmem:[#allocation3] sm:$0xff]
    %v2840 = vld [vmem:[#allocation3 + $0x8] sm:$0xff]
    %v2841 = vld [vmem:[#allocation3 + $0x10] sm:$0xff]
    %v2842 = vld [vmem:[#allocation3 + $0x18] sm:$0xff]
    %v2843 = vld [vmem:[#allocation3 + $0x20] sm:$0xff]
    %v2844 = vld [vmem:[#allocation3 + $0x28] sm:$0xff]
    %v2845 = vld [vmem:[#allocation3 + $0x30] sm:$0xff]
    %v2846 = vld [vmem:[#allocation3 + $0x38] sm:$0xff]
    %v2847 = vld [vmem:[#allocation3 + $0x40] sm:$0xff]
    %v2848 = vld [vmem:[#allocation3 + $0x48] sm:$0xff]
    %v2849 = vld [vmem:[#allocation3 + $0x50] sm:$0xff]
    %v2850 = vld [vmem:[#allocation3 + $0x58] sm:$0xff]
    %v2851 = vld [vmem:[#allocation3 + $0x60] sm:$0xff]
    %v2852 = vld [vmem:[#allocation3 + $0x68] sm:$0xff]
    %v2853 = vld [vmem:[#allocation3 + $0x70] sm:$0xff]
    %v2854 = vld [vmem:[#allocation3 + $0x78] sm:$0xff]
    %v2855 = vld [vmem:[#allocation3 + $0x80] sm:$0xff]
    %v2856 = vld [vmem:[#allocation3 + $0x88] sm:$0xff]
    %v2857 = vld [vmem:[#allocation3 + $0x90] sm:$0xff]
    %v2858 = vld [vmem:[#allocation3 + $0x98] sm:$0xff]
    %v2859 = vld [vmem:[#allocation3 + $0xa0] sm:$0xff]
    %v2860 = vld [vmem:[#allocation3 + $0xa8] sm:$0xff]
    %v2861 = vld [vmem:[#allocation3 + $0xb0] sm:$0xff]
    %v2862 = vld [vmem:[#allocation3 + $0xb8] sm:$0xff]
    %v2863 = vld [vmem:[#allocation3 + $0xc0] sm:$0xff]
    %v2864 = vld [vmem:[#allocation3 + $0xc8] sm:$0xff]
    %v2865 = vld [vmem:[#allocation3 + $0xd0] sm:$0xff]
    %v2866 = vld [vmem:[#allocation3 + $0xd8] sm:$0xff]
    %v2867 = vld [vmem:[#allocation3 + $0xe0] sm:$0xff]
    %v2868 = vld [vmem:[#allocation3 + $0xe8] sm:$0xff]
    %v2869 = vld [vmem:[#allocation3 + $0xf0] sm:$0xff]
    %v2870 = vld [vmem:[#allocation3 + $0xf8] sm:$0xff]
    %v2871 = vld [vmem:[#allocation3 + $0x100] sm:$0xff]
    %v2872 = vld [vmem:[#allocation3 + $0x108] sm:$0xff]
    %v2873 = vld [vmem:[#allocation3 + $0x110] sm:$0xff]
    %v2874 = vld [vmem:[#allocation3 + $0x118] sm:$0xff]
    %v2875 = vld [vmem:[#allocation3 + $0x120] sm:$0xff]
    %v2876 = vld [vmem:[#allocation3 + $0x128] sm:$0xff]
    %v2877 = vld [vmem:[#allocation3 + $0x130] sm:$0xff]
    %v2878 = vld [vmem:[#allocation3 + $0x138] sm:$0xff]
    %v2879 = vld [vmem:[#allocation3 + $0x140] sm:$0xff]
    %v2880 = vld [vmem:[#allocation3 + $0x148] sm:$0xff]
    %v2881 = vld [vmem:[#allocation3 + $0x150] sm:$0xff]
    %v2882 = vld [vmem:[#allocation3 + $0x158] sm:$0xff]
    %v2883 = vld [vmem:[#allocation3 + $0x160] sm:$0xff]
    %v2884 = vld [vmem:[#allocation3 + $0x168] sm:$0xff]
    %v2885 = vld [vmem:[#allocation3 + $0x170] sm:$0xff]
    %v2886 = vld [vmem:[#allocation3 + $0x178] sm:$0xff]
    %v2887 = vld [vmem:[#allocation3 + $0x180] sm:$0xff]
    %v2888 = vld [vmem:[#allocation3 + $0x188] sm:$0xff]
    %v2889 = vld [vmem:[#allocation3 + $0x190] sm:$0xff]
    %v2890 = vld [vmem:[#allocation3 + $0x198] sm:$0xff]
    %v2891 = vld [vmem:[#allocation3 + $0x1a0] sm:$0xff]
    %v2892 = vld [vmem:[#allocation3 + $0x1a8] sm:$0xff]
    %v2893 = vld [vmem:[#allocation3 + $0x1b0] sm:$0xff]
    %v2894 = vld [vmem:[#allocation3 + $0x1b8] sm:$0xff]
    %v2895 = vld [vmem:[#allocation3 + $0x1c0] sm:$0xff]
    %v2896 = vld [vmem:[#allocation3 + $0x1c8] sm:$0xff]
    %v2897 = vld [vmem:[#allocation3 + $0x1d0] sm:$0xff]
    %v2898 = vld [vmem:[#allocation3 + $0x1d8] sm:$0xff]
    %v2899 = vld [vmem:[#allocation3 + $0x1e0] sm:$0xff]
    %v2900 = vld [vmem:[#allocation3 + $0x1e8] sm:$0xff]
    %v2901 = vld [vmem:[#allocation3 + $0x1f0] sm:$0xff]
    %v2902 = vld [vmem:[#allocation3 + $0x1f8] sm:$0xff]
    %v2903 = vld [vmem:[#allocation3 + $0x200] sm:$0xff]
    %v2904 = vld [vmem:[#allocation3 + $0x208] sm:$0xff]
    %v2905 = vld [vmem:[#allocation3 + $0x210] sm:$0xff]
    %v2906 = vld [vmem:[#allocation3 + $0x218] sm:$0xff]
    %v2907 = vld [vmem:[#allocation3 + $0x220] sm:$0xff]
    %v2908 = vld [vmem:[#allocation3 + $0x228] sm:$0xff]
    %v2909 = vld [vmem:[#allocation3 + $0x230] sm:$0xff]
    %v2910 = vld [vmem:[#allocation3 + $0x238] sm:$0xff]
    %v2911 = vld [vmem:[#allocation3 + $0x240] sm:$0xff]
    %v2912 = vld [vmem:[#allocation3 + $0x248] sm:$0xff]
    %v2913 = vld [vmem:[#allocation3 + $0x250] sm:$0xff]
    %v2914 = vld [vmem:[#allocation3 + $0x258] sm:$0xff]
    %v2915 = vld [vmem:[#allocation3 + $0x260] sm:$0xff]
    %v2916 = vld [vmem:[#allocation3 + $0x268] sm:$0xff]
    %v2917 = vld [vmem:[#allocation3 + $0x270] sm:$0xff]
    %v2918 = vld [vmem:[#allocation3 + $0x278] sm:$0xff]
    %v2919 = vld [vmem:[#allocation3 + $0x280] sm:$0xff]
    %v2920 = vld [vmem:[#allocation3 + $0x288] sm:$0xff]
    %v2921 = vld [vmem:[#allocation3 + $0x290] sm:$0xff]
    %v2922 = vld [vmem:[#allocation3 + $0x298] sm:$0xff]
    %v2923 = vld [vmem:[#allocation3 + $0x2a0] sm:$0xff]
    %v2924 = vld [vmem:[#allocation3 + $0x2a8] sm:$0xff]
    %v2925 = vld [vmem:[#allocation3 + $0x2b0] sm:$0xff]
    %v2926 = vld [vmem:[#allocation3 + $0x2b8] sm:$0xff]
    %v2927 = vld [vmem:[#allocation3 + $0x2c0] sm:$0xff]
    %v2928 = vld [vmem:[#allocation3 + $0x2c8] sm:$0xff]
    %v2929 = vld [vmem:[#allocation3 + $0x2d0] sm:$0xff]
    %v2930 = vld [vmem:[#allocation3 + $0x2d8] sm:$0xff]
    %v2931 = vld [vmem:[#allocation3 + $0x2e0] sm:$0xff]
    %v2932 = vld [vmem:[#allocation3 + $0x2e8] sm:$0xff]
    %v2933 = vld [vmem:[#allocation3 + $0x2f0] sm:$0xff]
    %v2934 = vld [vmem:[#allocation3 + $0x2f8] sm:$0xff]
    %v2935 = vld [vmem:[#allocation3 + $0x300] sm:$0xff]
    %v2936 = vld [vmem:[#allocation3 + $0x308] sm:$0xff]
    %v2937 = vld [vmem:[#allocation3 + $0x310] sm:$0xff]
    %v2938 = vld [vmem:[#allocation3 + $0x318] sm:$0xff]
    %v2939 = vld [vmem:[#allocation3 + $0x320] sm:$0xff]
    %v2940 = vld [vmem:[#allocation3 + $0x328] sm:$0xff]
    %v2941 = vld [vmem:[#allocation3 + $0x330] sm:$0xff]
    %v2942 = vld [vmem:[#allocation3 + $0x338] sm:$0xff]
    %v2943 = vld [vmem:[#allocation3 + $0x340] sm:$0xff]
    %v2944 = vld [vmem:[#allocation3 + $0x348] sm:$0xff]
    %v2945 = vld [vmem:[#allocation3 + $0x350] sm:$0xff]
    %v2946 = vld [vmem:[#allocation3 + $0x358] sm:$0xff]
    %v2947 = vld [vmem:[#allocation3 + $0x360] sm:$0xff]
    %v2948 = vld [vmem:[#allocation3 + $0x368] sm:$0xff]
    %v2949 = vld [vmem:[#allocation3 + $0x370] sm:$0xff]
    %v2950 = vld [vmem:[#allocation3 + $0x378] sm:$0xff]
    %v2951 = vld [vmem:[#allocation3 + $0x380] sm:$0xff]
    %v2952 = vld [vmem:[#allocation3 + $0x388] sm:$0xff]
    %v2953 = vld [vmem:[#allocation3 + $0x390] sm:$0xff]
    %v2954 = vld [vmem:[#allocation3 + $0x398] sm:$0xff]
    %v2955 = vld [vmem:[#allocation3 + $0x3a0] sm:$0xff]
    %v2956 = vld [vmem:[#allocation3 + $0x3a8] sm:$0xff]
    %v2957 = vld [vmem:[#allocation3 + $0x3b0] sm:$0xff]
    %v2958 = vld [vmem:[#allocation3 + $0x3b8] sm:$0xff]
    %v2959 = vld [vmem:[#allocation3 + $0x3c0] sm:$0xff]
    %v2960 = vld [vmem:[#allocation3 + $0x3c8] sm:$0xff]
    %v2961 = vld [vmem:[#allocation3 + $0x3d0] sm:$0xff]
    %v2962 = vld [vmem:[#allocation3 + $0x3d8] sm:$0xff]
    %v2963 = vld [vmem:[#allocation3 + $0x3e0] sm:$0xff]
    %v2964 = vld [vmem:[#allocation3 + $0x3e8] sm:$0xff]
    %v2965 = vld [vmem:[#allocation3 + $0x3f0] sm:$0xff]
    %v2966 = vld [vmem:[#allocation3 + $0x3f8] sm:$0xff]
    %v2967 = vld [vmem:[%s6] sm:$0xf]
    %v2969 = vperm.slane %v2967, 0
    %v2970 = vperm.slane %v2967, 1
    %v2971 = vperm.slane %v2967, 2
    %v2972 = vperm.slane %v2967, 3
    %v3105 = vunpack.c.l.b16 %v2839
    %v3106 = vunpack.c.h.b16 %v2839
    %v3107 = vunpack.c.l.b16 %v2840
    %v3108 = vunpack.c.h.b16 %v2840
    %v3109 = vunpack.c.l.b16 %v2841
    %v3110 = vunpack.c.h.b16 %v2841
    %v3111 = vunpack.c.l.b16 %v2842
    %v3112 = vunpack.c.h.b16 %v2842
    %v3113 = vunpack.c.l.b16 %v2843
    %v3114 = vunpack.c.h.b16 %v2843
    %v3115 = vunpack.c.l.b16 %v2844
    %v3116 = vunpack.c.h.b16 %v2844
    %v3117 = vunpack.c.l.b16 %v2845
    %v3118 = vunpack.c.h.b16 %v2845
    %v3119 = vunpack.c.l.b16 %v2846
    %v3120 = vunpack.c.h.b16 %v2846
    %v3121 = vunpack.c.l.b16 %v2847
    %v3122 = vunpack.c.h.b16 %v2847
    %v3123 = vunpack.c.l.b16 %v2848
    %v3124 = vunpack.c.h.b16 %v2848
    %v3125 = vunpack.c.l.b16 %v2849
    %v3126 = vunpack.c.h.b16 %v2849
    %v3127 = vunpack.c.l.b16 %v2850
    %v3128 = vunpack.c.h.b16 %v2850
    %v3129 = vunpack.c.l.b16 %v2851
    %v3130 = vunpack.c.h.b16 %v2851
    %v3131 = vunpack.c.l.b16 %v2852
    %v3132 = vunpack.c.h.b16 %v2852
    %v3133 = vunpack.c.l.b16 %v2853
    %v3134 = vunpack.c.h.b16 %v2853
    %v3135 = vunpack.c.l.b16 %v2854
    %v3136 = vunpack.c.h.b16 %v2854
    %v3137 = vunpack.c.l.b16 %v2855
    %v3138 = vunpack.c.h.b16 %v2855
    %v3139 = vunpack.c.l.b16 %v2856
    %v3140 = vunpack.c.h.b16 %v2856
    %v3141 = vunpack.c.l.b16 %v2857
    %v3142 = vunpack.c.h.b16 %v2857
    %v3143 = vunpack.c.l.b16 %v2858
    %v3144 = vunpack.c.h.b16 %v2858
    %v3145 = vunpack.c.l.b16 %v2859
    %v3146 = vunpack.c.h.b16 %v2859
    %v3147 = vunpack.c.l.b16 %v2860
    %v3148 = vunpack.c.h.b16 %v2860
    %v3149 = vunpack.c.l.b16 %v2861
    %v3150 = vunpack.c.h.b16 %v2861
    %v3151 = vunpack.c.l.b16 %v2862
    %v3152 = vunpack.c.h.b16 %v2862
    %v3153 = vunpack.c.l.b16 %v2863
    %v3154 = vunpack.c.h.b16 %v2863
    %v3155 = vunpack.c.l.b16 %v2864
    %v3156 = vunpack.c.h.b16 %v2864
    %v3157 = vunpack.c.l.b16 %v2865
    %v3158 = vunpack.c.h.b16 %v2865
    %v3159 = vunpack.c.l.b16 %v2866
    %v3160 = vunpack.c.h.b16 %v2866
    %v3161 = vunpack.c.l.b16 %v2867
    %v3162 = vunpack.c.h.b16 %v2867
    %v3163 = vunpack.c.l.b16 %v2868
    %v3164 = vunpack.c.h.b16 %v2868
    %v3165 = vunpack.c.l.b16 %v2869
    %v3166 = vunpack.c.h.b16 %v2869
    %v3167 = vunpack.c.l.b16 %v2870
    %v3168 = vunpack.c.h.b16 %v2870
    %v3169 = vunpack.c.l.b16 %v2871
    %v3170 = vunpack.c.h.b16 %v2871
    %v3171 = vunpack.c.l.b16 %v2872
    %v3172 = vunpack.c.h.b16 %v2872
    %v3173 = vunpack.c.l.b16 %v2873
    %v3174 = vunpack.c.h.b16 %v2873
    %v3175 = vunpack.c.l.b16 %v2874
    %v3176 = vunpack.c.h.b16 %v2874
    %v3177 = vunpack.c.l.b16 %v2875
    %v3178 = vunpack.c.h.b16 %v2875
    %v3179 = vunpack.c.l.b16 %v2876
    %v3180 = vunpack.c.h.b16 %v2876
    %v3181 = vunpack.c.l.b16 %v2877
    %v3182 = vunpack.c.h.b16 %v2877
    %v3183 = vunpack.c.l.b16 %v2878
    %v3184 = vunpack.c.h.b16 %v2878
    %v3185 = vunpack.c.l.b16 %v2879
    %v3186 = vunpack.c.h.b16 %v2879
    %v3187 = vunpack.c.l.b16 %v2880
    %v3188 = vunpack.c.h.b16 %v2880
    %v3189 = vunpack.c.l.b16 %v2881
    %v3190 = vunpack.c.h.b16 %v2881
    %v3191 = vunpack.c.l.b16 %v2882
    %v3192 = vunpack.c.h.b16 %v2882
    %v3193 = vunpack.c.l.b16 %v2883
    %v3194 = vunpack.c.h.b16 %v2883
    %v3195 = vunpack.c.l.b16 %v2884
    %v3196 = vunpack.c.h.b16 %v2884
    %v3197 = vunpack.c.l.b16 %v2885
    %v3198 = vunpack.c.h.b16 %v2885
    %v3199 = vunpack.c.l.b16 %v2886
    %v3200 = vunpack.c.h.b16 %v2886
    %v3201 = vunpack.c.l.b16 %v2887
    %v3202 = vunpack.c.h.b16 %v2887
    %v3203 = vunpack.c.l.b16 %v2888
    %v3204 = vunpack.c.h.b16 %v2888
    %v3205 = vunpack.c.l.b16 %v2889
    %v3206 = vunpack.c.h.b16 %v2889
    %v3207 = vunpack.c.l.b16 %v2890
    %v3208 = vunpack.c.h.b16 %v2890
    %v3209 = vunpack.c.l.b16 %v2891
    %v3210 = vunpack.c.h.b16 %v2891
    %v3211 = vunpack.c.l.b16 %v2892
    %v3212 = vunpack.c.h.b16 %v2892
    %v3213 = vunpack.c.l.b16 %v2893
    %v3214 = vunpack.c.h.b16 %v2893
    %v3215 = vunpack.c.l.b16 %v2894
    %v3216 = vunpack.c.h.b16 %v2894
    %v3217 = vunpack.c.l.b16 %v2895
    %v3218 = vunpack.c.h.b16 %v2895
    %v3219 = vunpack.c.l.b16 %v2896
    %v3220 = vunpack.c.h.b16 %v2896
    %v3221 = vunpack.c.l.b16 %v2897
    %v3222 = vunpack.c.h.b16 %v2897
    %v3223 = vunpack.c.l.b16 %v2898
    %v3224 = vunpack.c.h.b16 %v2898
    %v3225 = vunpack.c.l.b16 %v2899
    %v3226 = vunpack.c.h.b16 %v2899
    %v3227 = vunpack.c.l.b16 %v2900
    %v3228 = vunpack.c.h.b16 %v2900
    %v3229 = vunpack.c.l.b16 %v2901
    %v3230 = vunpack.c.h.b16 %v2901
    %v3231 = vunpack.c.l.b16 %v2902
    %v3232 = vunpack.c.h.b16 %v2902
    %v3233 = vunpack.c.l.b16 %v2903
    %v3234 = vunpack.c.h.b16 %v2903
    %v3235 = vunpack.c.l.b16 %v2904
    %v3236 = vunpack.c.h.b16 %v2904
    %v3237 = vunpack.c.l.b16 %v2905
    %v3238 = vunpack.c.h.b16 %v2905
    %v3239 = vunpack.c.l.b16 %v2906
    %v3240 = vunpack.c.h.b16 %v2906
    %v3241 = vunpack.c.l.b16 %v2907
    %v3242 = vunpack.c.h.b16 %v2907
    %v3243 = vunpack.c.l.b16 %v2908
    %v3244 = vunpack.c.h.b16 %v2908
    %v3245 = vunpack.c.l.b16 %v2909
    %v3246 = vunpack.c.h.b16 %v2909
    %v3247 = vunpack.c.l.b16 %v2910
    %v3248 = vunpack.c.h.b16 %v2910
    %v3249 = vunpack.c.l.b16 %v2911
    %v3250 = vunpack.c.h.b16 %v2911
    %v3251 = vunpack.c.l.b16 %v2912
    %v3252 = vunpack.c.h.b16 %v2912
    %v3253 = vunpack.c.l.b16 %v2913
    %v3254 = vunpack.c.h.b16 %v2913
    %v3255 = vunpack.c.l.b16 %v2914
    %v3256 = vunpack.c.h.b16 %v2914
    %v3257 = vunpack.c.l.b16 %v2915
    %v3258 = vunpack.c.h.b16 %v2915
    %v3259 = vunpack.c.l.b16 %v2916
    %v3260 = vunpack.c.h.b16 %v2916
    %v3261 = vunpack.c.l.b16 %v2917
    %v3262 = vunpack.c.h.b16 %v2917
    %v3263 = vunpack.c.l.b16 %v2918
    %v3264 = vunpack.c.h.b16 %v2918
    %v3265 = vunpack.c.l.b16 %v2919
    %v3266 = vunpack.c.h.b16 %v2919
    %v3267 = vunpack.c.l.b16 %v2920
    %v3268 = vunpack.c.h.b16 %v2920
    %v3269 = vunpack.c.l.b16 %v2921
    %v3270 = vunpack.c.h.b16 %v2921
    %v3271 = vunpack.c.l.b16 %v2922
    %v3272 = vunpack.c.h.b16 %v2922
    %v3273 = vunpack.c.l.b16 %v2923
    %v3274 = vunpack.c.h.b16 %v2923
    %v3275 = vunpack.c.l.b16 %v2924
    %v3276 = vunpack.c.h.b16 %v2924
    %v3277 = vunpack.c.l.b16 %v2925
    %v3278 = vunpack.c.h.b16 %v2925
    %v3279 = vunpack.c.l.b16 %v2926
    %v3280 = vunpack.c.h.b16 %v2926
    %v3281 = vunpack.c.l.b16 %v2927
    %v3282 = vunpack.c.h.b16 %v2927
    %v3283 = vunpack.c.l.b16 %v2928
    %v3284 = vunpack.c.h.b16 %v2928
    %v3285 = vunpack.c.l.b16 %v2929
    %v3286 = vunpack.c.h.b16 %v2929
    %v3287 = vunpack.c.l.b16 %v2930
    %v3288 = vunpack.c.h.b16 %v2930
    %v3289 = vunpack.c.l.b16 %v2931
    %v3290 = vunpack.c.h.b16 %v2931
    %v3291 = vunpack.c.l.b16 %v2932
    %v3292 = vunpack.c.h.b16 %v2932
    %v3293 = vunpack.c.l.b16 %v2933
    %v3294 = vunpack.c.h.b16 %v2933
    %v3295 = vunpack.c.l.b16 %v2934
    %v3296 = vunpack.c.h.b16 %v2934
    %v3297 = vunpack.c.l.b16 %v2935
    %v3298 = vunpack.c.h.b16 %v2935
    %v3299 = vunpack.c.l.b16 %v2936
    %v3300 = vunpack.c.h.b16 %v2936
    %v3301 = vunpack.c.l.b16 %v2937
    %v3302 = vunpack.c.h.b16 %v2937
    %v3303 = vunpack.c.l.b16 %v2938
    %v3304 = vunpack.c.h.b16 %v2938
    %v3305 = vunpack.c.l.b16 %v2939
    %v3306 = vunpack.c.h.b16 %v2939
    %v3307 = vunpack.c.l.b16 %v2940
    %v3308 = vunpack.c.h.b16 %v2940
    %v3309 = vunpack.c.l.b16 %v2941
    %v3310 = vunpack.c.h.b16 %v2941
    %v3311 = vunpack.c.l.b16 %v2942
    %v3312 = vunpack.c.h.b16 %v2942
    %v3313 = vunpack.c.l.b16 %v2943
    %v3314 = vunpack.c.h.b16 %v2943
    %v3315 = vunpack.c.l.b16 %v2944
    %v3316 = vunpack.c.h.b16 %v2944
    %v3317 = vunpack.c.l.b16 %v2945
    %v3318 = vunpack.c.h.b16 %v2945
    %v3319 = vunpack.c.l.b16 %v2946
    %v3320 = vunpack.c.h.b16 %v2946
    %v3321 = vunpack.c.l.b16 %v2947
    %v3322 = vunpack.c.h.b16 %v2947
    %v3323 = vunpack.c.l.b16 %v2948
    %v3324 = vunpack.c.h.b16 %v2948
    %v3325 = vunpack.c.l.b16 %v2949
    %v3326 = vunpack.c.h.b16 %v2949
    %v3327 = vunpack.c.l.b16 %v2950
    %v3328 = vunpack.c.h.b16 %v2950
    %v3329 = vunpack.c.l.b16 %v2951
    %v3330 = vunpack.c.h.b16 %v2951
    %v3331 = vunpack.c.l.b16 %v2952
    %v3332 = vunpack.c.h.b16 %v2952
    %v3333 = vunpack.c.l.b16 %v2953
    %v3334 = vunpack.c.h.b16 %v2953
    %v3335 = vunpack.c.l.b16 %v2954
    %v3336 = vunpack.c.h.b16 %v2954
    %v3337 = vunpack.c.l.b16 %v2955
    %v3338 = vunpack.c.h.b16 %v2955
    %v3339 = vunpack.c.l.b16 %v2956
    %v3340 = vunpack.c.h.b16 %v2956
    %v3341 = vunpack.c.l.b16 %v2957
    %v3342 = vunpack.c.h.b16 %v2957
    %v3343 = vunpack.c.l.b16 %v2958
    %v3344 = vunpack.c.h.b16 %v2958
    %v3345 = vunpack.c.l.b16 %v2959
    %v3346 = vunpack.c.h.b16 %v2959
    %v3347 = vunpack.c.l.b16 %v2960
    %v3348 = vunpack.c.h.b16 %v2960
    %v3349 = vunpack.c.l.b16 %v2961
    %v3350 = vunpack.c.h.b16 %v2961
    %v3351 = vunpack.c.l.b16 %v2962
    %v3352 = vunpack.c.h.b16 %v2962
    %v3353 = vunpack.c.l.b16 %v2963
    %v3354 = vunpack.c.h.b16 %v2963
    %v3355 = vunpack.c.l.b16 %v2964
    %v3356 = vunpack.c.h.b16 %v2964
    %v3357 = vunpack.c.l.b16 %v2965
    %v3358 = vunpack.c.h.b16 %v2965
    %v3359 = vunpack.c.l.b16 %v2966
    %v3360 = vunpack.c.h.b16 %v2966
    %v3361 = vpack.c.b16 %v3109, %v3105
    %v3362 = vpack.c.b16 %v3110, %v3106
    %v3363 = vpack.c.b16 %v3111, %v3107
    %v3364 = vpack.c.b16 %v3112, %v3108
    %v3365 = vpack.c.b16 %v3117, %v3113
    %v3366 = vpack.c.b16 %v3118, %v3114
    %v3367 = vpack.c.b16 %v3119, %v3115
    %v3368 = vpack.c.b16 %v3120, %v3116
    %v3369 = vpack.c.b16 %v3125, %v3121
    %v3370 = vpack.c.b16 %v3126, %v3122
    %v3371 = vpack.c.b16 %v3127, %v3123
    %v3372 = vpack.c.b16 %v3128, %v3124
    %v3373 = vpack.c.b16 %v3133, %v3129
    %v3374 = vpack.c.b16 %v3134, %v3130
    %v3375 = vpack.c.b16 %v3135, %v3131
    %v3376 = vpack.c.b16 %v3136, %v3132
    %v3377 = vpack.c.b16 %v3141, %v3137
    %v3378 = vpack.c.b16 %v3142, %v3138
    %v3379 = vpack.c.b16 %v3143, %v3139
    %v3380 = vpack.c.b16 %v3144, %v3140
    %v3381 = vpack.c.b16 %v3149, %v3145
    %v3382 = vpack.c.b16 %v3150, %v3146
    %v3383 = vpack.c.b16 %v3151, %v3147
    %v3384 = vpack.c.b16 %v3152, %v3148
    %v3385 = vpack.c.b16 %v3157, %v3153
    %v3386 = vpack.c.b16 %v3158, %v3154
    %v3387 = vpack.c.b16 %v3159, %v3155
    %v3388 = vpack.c.b16 %v3160, %v3156
    %v3389 = vpack.c.b16 %v3165, %v3161
    %v3390 = vpack.c.b16 %v3166, %v3162
    %v3391 = vpack.c.b16 %v3167, %v3163
    %v3392 = vpack.c.b16 %v3168, %v3164
    %v3393 = vpack.c.b16 %v3173, %v3169
    %v3394 = vpack.c.b16 %v3174, %v3170
    %v3395 = vpack.c.b16 %v3175, %v3171
    %v3396 = vpack.c.b16 %v3176, %v3172
    %v3397 = vpack.c.b16 %v3181, %v3177
    %v3398 = vpack.c.b16 %v3182, %v3178
    %v3399 = vpack.c.b16 %v3183, %v3179
    %v3400 = vpack.c.b16 %v3184, %v3180
    %v3401 = vpack.c.b16 %v3189, %v3185
    %v3402 = vpack.c.b16 %v3190, %v3186
    %v3403 = vpack.c.b16 %v3191, %v3187
    %v3404 = vpack.c.b16 %v3192, %v3188
    %v3405 = vpack.c.b16 %v3197, %v3193
    %v3406 = vpack.c.b16 %v3198, %v3194
    %v3407 = vpack.c.b16 %v3199, %v3195
    %v3408 = vpack.c.b16 %v3200, %v3196
    %v3409 = vpack.c.b16 %v3205, %v3201
    %v3410 = vpack.c.b16 %v3206, %v3202
    %v3411 = vpack.c.b16 %v3207, %v3203
    %v3412 = vpack.c.b16 %v3208, %v3204
    %v3413 = vpack.c.b16 %v3213, %v3209
    %v3414 = vpack.c.b16 %v3214, %v3210
    %v3415 = vpack.c.b16 %v3215, %v3211
    %v3416 = vpack.c.b16 %v3216, %v3212
    %v3417 = vpack.c.b16 %v3221, %v3217
    %v3418 = vpack.c.b16 %v3222, %v3218
    %v3419 = vpack.c.b16 %v3223, %v3219
    %v3420 = vpack.c.b16 %v3224, %v3220
    %v3421 = vpack.c.b16 %v3229, %v3225
    %v3422 = vpack.c.b16 %v3230, %v3226
    %v3423 = vpack.c.b16 %v3231, %v3227
    %v3424 = vpack.c.b16 %v3232, %v3228
    %v3425 = vpack.c.b16 %v3237, %v3233
    %v3426 = vpack.c.b16 %v3238, %v3234
    %v3427 = vpack.c.b16 %v3239, %v3235
    %v3428 = vpack.c.b16 %v3240, %v3236
    %v3429 = vpack.c.b16 %v3245, %v3241
    %v3430 = vpack.c.b16 %v3246, %v3242
    %v3431 = vpack.c.b16 %v3247, %v3243
    %v3432 = vpack.c.b16 %v3248, %v3244
    %v3433 = vpack.c.b16 %v3253, %v3249
    %v3434 = vpack.c.b16 %v3254, %v3250
    %v3435 = vpack.c.b16 %v3255, %v3251
    %v3436 = vpack.c.b16 %v3256, %v3252
    %v3437 = vpack.c.b16 %v3261, %v3257
    %v3438 = vpack.c.b16 %v3262, %v3258
    %v3439 = vpack.c.b16 %v3263, %v3259
    %v3440 = vpack.c.b16 %v3264, %v3260
    %v3441 = vpack.c.b16 %v3269, %v3265
    %v3442 = vpack.c.b16 %v3270, %v3266
    %v3443 = vpack.c.b16 %v3271, %v3267
    %v3444 = vpack.c.b16 %v3272, %v3268
    %v3445 = vpack.c.b16 %v3277, %v3273
    %v3446 = vpack.c.b16 %v3278, %v3274
    %v3447 = vpack.c.b16 %v3279, %v3275
    %v3448 = vpack.c.b16 %v3280, %v3276
    %v3449 = vpack.c.b16 %v3285, %v3281
    %v3450 = vpack.c.b16 %v3286, %v3282
    %v3451 = vpack.c.b16 %v3287, %v3283
    %v3452 = vpack.c.b16 %v3288, %v3284
    %v3453 = vpack.c.b16 %v3293, %v3289
    %v3454 = vpack.c.b16 %v3294, %v3290
    %v3455 = vpack.c.b16 %v3295, %v3291
    %v3456 = vpack.c.b16 %v3296, %v3292
    %v3457 = vpack.c.b16 %v3301, %v3297
    %v3458 = vpack.c.b16 %v3302, %v3298
    %v3459 = vpack.c.b16 %v3303, %v3299
    %v3460 = vpack.c.b16 %v3304, %v3300
    %v3461 = vpack.c.b16 %v3309, %v3305
    %v3462 = vpack.c.b16 %v3310, %v3306
    %v3463 = vpack.c.b16 %v3311, %v3307
    %v3464 = vpack.c.b16 %v3312, %v3308
    %v3465 = vpack.c.b16 %v3317, %v3313
    %v3466 = vpack.c.b16 %v3318, %v3314
    %v3467 = vpack.c.b16 %v3319, %v3315
    %v3468 = vpack.c.b16 %v3320, %v3316
    %v3469 = vpack.c.b16 %v3325, %v3321
    %v3470 = vpack.c.b16 %v3326, %v3322
    %v3471 = vpack.c.b16 %v3327, %v3323
    %v3472 = vpack.c.b16 %v3328, %v3324
    %v3473 = vpack.c.b16 %v3333, %v3329
    %v3474 = vpack.c.b16 %v3334, %v3330
    %v3475 = vpack.c.b16 %v3335, %v3331
    %v3476 = vpack.c.b16 %v3336, %v3332
    %v3477 = vpack.c.b16 %v3341, %v3337
    %v3478 = vpack.c.b16 %v3342, %v3338
    %v3479 = vpack.c.b16 %v3343, %v3339
    %v3480 = vpack.c.b16 %v3344, %v3340
    %v3481 = vpack.c.b16 %v3349, %v3345
    %v3482 = vpack.c.b16 %v3350, %v3346
    %v3483 = vpack.c.b16 %v3351, %v3347
    %v3484 = vpack.c.b16 %v3352, %v3348
    %v3485 = vpack.c.b16 %v3357, %v3353
    %v3486 = vpack.c.b16 %v3358, %v3354
    %v3487 = vpack.c.b16 %v3359, %v3355
    %v3488 = vpack.c.b16 %v3360, %v3356
    %3617 = vmatpush.bf16.msra.mxu0 %v3389
    %3618 = vmatpush.bf16.msra.mxu0 %v3385
    %3619 = vmatpush.bf16.msra.mxu0 %v3381
    %3620 = vmatpush.bf16.msra.mxu0 %v3377
    %3621 = vmatpush.bf16.msra.mxu0 %v3373
    %3622 = vmatpush.bf16.msra.mxu0 %v3369
    %3623 = vmatpush.bf16.msra.mxu0 %v3365
    %3624 = vmatpush.bf16.msra.mxu0 %v3361
    %3625 = vmatmul.bf16.gmra.mxu0 %v2835
    %v3626 = vpop.f32.mrf.mxu0
    %v3627 = vadd.f32 %v2969, %v3626
    %v3628 = vpop.f32.mrf.mxu0
    %3629 = vdwg.mxu0
    %3630 = vmatpush.bf16.msra.mxu0 %v3421
    %3631 = vmatpush.bf16.msra.mxu0 %v3417
    %3632 = vmatpush.bf16.msra.mxu0 %v3413
    %3633 = vmatpush.bf16.msra.mxu0 %v3409
    %3634 = vmatpush.bf16.msra.mxu0 %v3405
    %3635 = vmatpush.bf16.msra.mxu0 %v3401
    %3636 = vmatpush.bf16.msra.mxu0 %v3397
    %3637 = vmatpush.bf16.msra.mxu0 %v3393
    %3638 = vmatmul.bf16.gmra.mxu0 %v2836
    %v3639 = vpop.f32.mrf.mxu0
    %v3640 = vadd.f32 %v3627, %v3639
    %v3641 = vpop.f32.mrf.mxu0
    %3642 = vdwg.mxu0
    %3643 = vmatpush.bf16.msra.mxu0 %v3453
    %3644 = vmatpush.bf16.msra.mxu0 %v3449
    %3645 = vmatpush.bf16.msra.mxu0 %v3445
    %3646 = vmatpush.bf16.msra.mxu0 %v3441
    %3647 = vmatpush.bf16.msra.mxu0 %v3437
    %3648 = vmatpush.bf16.msra.mxu0 %v3433
    %3649 = vmatpush.bf16.msra.mxu0 %v3429
    %3650 = vmatpush.bf16.msra.mxu0 %v3425
    %3651 = vmatmul.bf16.gmra.mxu0 %v2837
    %v3652 = vpop.f32.mrf.mxu0
    %v3653 = vadd.f32 %v3640, %v3652
    %v3654 = vpop.f32.mrf.mxu0
    %3655 = vdwg.mxu0
    %3656 = vmatpush.bf16.msra.mxu0 %v3485
    %3657 = vmatpush.bf16.msra.mxu0 %v3481
    %3658 = vmatpush.bf16.msra.mxu0 %v3477
    %3659 = vmatpush.bf16.msra.mxu0 %v3473
    %3660 = vmatpush.bf16.msra.mxu0 %v3469
    %3661 = vmatpush.bf16.msra.mxu0 %v3465
    %3662 = vmatpush.bf16.msra.mxu0 %v3461
    %3663 = vmatpush.bf16.msra.mxu0 %v3457
    %3664 = vmatmul.bf16.gmra.mxu0 %v2838
    %v3665 = vpop.f32.mrf.mxu0
    %v3666 = vadd.f32 %v3653, %v3665
    %v3667 = vpop.f32.mrf.mxu0
    %3668 = vdwg.mxu0
    %3669 = vmatpush.bf16.msra.mxu0 %v3390
    %3670 = vmatpush.bf16.msra.mxu0 %v3386
    %3671 = vmatpush.bf16.msra.mxu0 %v3382
    %3672 = vmatpush.bf16.msra.mxu0 %v3378
    %3673 = vmatpush.bf16.msra.mxu0 %v3374
    %3674 = vmatpush.bf16.msra.mxu0 %v3370
    %3675 = vmatpush.bf16.msra.mxu0 %v3366
    %3676 = vmatpush.bf16.msra.mxu0 %v3362
    %3677 = vmatmul.bf16.gmra.mxu0 %v2835
    %v3678 = vpop.f32.mrf.mxu0
    %v3679 = vadd.f32 %v2970, %v3678
    %v3680 = vpop.f32.mrf.mxu0
    %3681 = vdwg.mxu0
    %3682 = vmatpush.bf16.msra.mxu0 %v3422
    %3683 = vmatpush.bf16.msra.mxu0 %v3418
    %3684 = vmatpush.bf16.msra.mxu0 %v3414
    %3685 = vmatpush.bf16.msra.mxu0 %v3410
    %3686 = vmatpush.bf16.msra.mxu0 %v3406
    %3687 = vmatpush.bf16.msra.mxu0 %v3402
    %3688 = vmatpush.bf16.msra.mxu0 %v3398
    %3689 = vmatpush.bf16.msra.mxu0 %v3394
    %3690 = vmatmul.bf16.gmra.mxu0 %v2836
    %v3691 = vpop.f32.mrf.mxu0
    %v3692 = vadd.f32 %v3679, %v3691
    %v3693 = vpop.f32.mrf.mxu0
    %3694 = vdwg.mxu0
    %3695 = vmatpush.bf16.msra.mxu0 %v3454
    %3696 = vmatpush.bf16.msra.mxu0 %v3450
    %3697 = vmatpush.bf16.msra.mxu0 %v3446
    %3698 = vmatpush.bf16.msra.mxu0 %v3442
    %3699 = vmatpush.bf16.msra.mxu0 %v3438
    %3700 = vmatpush.bf16.msra.mxu0 %v3434
    %3701 = vmatpush.bf16.msra.mxu0 %v3430
    %3702 = vmatpush.bf16.msra.mxu0 %v3426
    %3703 = vmatmul.bf16.gmra.mxu0 %v2837
    %v3704 = vpop.f32.mrf.mxu0
    %v3705 = vadd.f32 %v3692, %v3704
    %v3706 = vpop.f32.mrf.mxu0
    %3707 = vdwg.mxu0
    %3708 = vmatpush.bf16.msra.mxu0 %v3486
    %3709 = vmatpush.bf16.msra.mxu0 %v3482
    %3710 = vmatpush.bf16.msra.mxu0 %v3478
    %3711 = vmatpush.bf16.msra.mxu0 %v3474
    %3712 = vmatpush.bf16.msra.mxu0 %v3470
    %3713 = vmatpush.bf16.msra.mxu0 %v3466
    %3714 = vmatpush.bf16.msra.mxu0 %v3462
    %3715 = vmatpush.bf16.msra.mxu0 %v3458
    %3716 = vmatmul.bf16.gmra.mxu0 %v2838
    %v3717 = vpop.f32.mrf.mxu0
    %v3718 = vadd.f32 %v3705, %v3717
    %v3719 = vpop.f32.mrf.mxu0
    %3720 = vdwg.mxu0
    %3721 = vmatpush.bf16.msra.mxu0 %v3391
    %3722 = vmatpush.bf16.msra.mxu0 %v3387
    %3723 = vmatpush.bf16.msra.mxu0 %v3383
    %3724 = vmatpush.bf16.msra.mxu0 %v3379
    %3725 = vmatpush.bf16.msra.mxu0 %v3375
    %3726 = vmatpush.bf16.msra.mxu0 %v3371
    %3727 = vmatpush.bf16.msra.mxu0 %v3367
    %3728 = vmatpush.bf16.msra.mxu0 %v3363
    %3729 = vmatmul.bf16.gmra.mxu0 %v2835
    %v3730 = vpop.f32.mrf.mxu0
    %v3731 = vadd.f32 %v2971, %v3730
    %v3732 = vpop.f32.mrf.mxu0
    %3733 = vdwg.mxu0
    %3734 = vmatpush.bf16.msra.mxu0 %v3423
    %3735 = vmatpush.bf16.msra.mxu0 %v3419
    %3736 = vmatpush.bf16.msra.mxu0 %v3415
    %3737 = vmatpush.bf16.msra.mxu0 %v3411
    %3738 = vmatpush.bf16.msra.mxu0 %v3407
    %3739 = vmatpush.bf16.msra.mxu0 %v3403
    %3740 = vmatpush.bf16.msra.mxu0 %v3399
    %3741 = vmatpush.bf16.msra.mxu0 %v3395
    %3742 = vmatmul.bf16.gmra.mxu0 %v2836
    %v3743 = vpop.f32.mrf.mxu0
    %v3744 = vadd.f32 %v3731, %v3743
    %v3745 = vpop.f32.mrf.mxu0
    %3746 = vdwg.mxu0
    %3747 = vmatpush.bf16.msra.mxu0 %v3455
    %3748 = vmatpush.bf16.msra.mxu0 %v3451
    %3749 = vmatpush.bf16.msra.mxu0 %v3447
    %3750 = vmatpush.bf16.msra.mxu0 %v3443
    %3751 = vmatpush.bf16.msra.mxu0 %v3439
    %3752 = vmatpush.bf16.msra.mxu0 %v3435
    %3753 = vmatpush.bf16.msra.mxu0 %v3431
    %3754 = vmatpush.bf16.msra.mxu0 %v3427
    %3755 = vmatmul.bf16.gmra.mxu0 %v2837
    %v3756 = vpop.f32.mrf.mxu0
    %v3757 = vadd.f32 %v3744, %v3756
    %v3758 = vpop.f32.mrf.mxu0
    %3759 = vdwg.mxu0
    %3760 = vmatpush.bf16.msra.mxu0 %v3487
    %3761 = vmatpush.bf16.msra.mxu0 %v3483
    %3762 = vmatpush.bf16.msra.mxu0 %v3479
    %3763 = vmatpush.bf16.msra.mxu0 %v3475
    %3764 = vmatpush.bf16.msra.mxu0 %v3471
    %3765 = vmatpush.bf16.msra.mxu0 %v3467
    %3766 = vmatpush.bf16.msra.mxu0 %v3463
    %3767 = vmatpush.bf16.msra.mxu0 %v3459
    %3768 = vmatmul.bf16.gmra.mxu0 %v2838
    %v3769 = vpop.f32.mrf.mxu0
    %v3770 = vadd.f32 %v3757, %v3769
    %v3771 = vpop.f32.mrf.mxu0
    %3772 = vdwg.mxu0
    %3773 = vmatpush.bf16.msra.mxu0 %v3392
    %3774 = vmatpush.bf16.msra.mxu0 %v3388
    %3775 = vmatpush.bf16.msra.mxu0 %v3384
    %3776 = vmatpush.bf16.msra.mxu0 %v3380
    %3777 = vmatpush.bf16.msra.mxu0 %v3376
    %3778 = vmatpush.bf16.msra.mxu0 %v3372
    %3779 = vmatpush.bf16.msra.mxu0 %v3368
    %3780 = vmatpush.bf16.msra.mxu0 %v3364
    %3781 = vmatmul.bf16.gmra.mxu0 %v2835
    %v3782 = vpop.f32.mrf.mxu0
    %v3783 = vadd.f32 %v2972, %v3782
    %v3784 = vpop.f32.mrf.mxu0
    %3785 = vdwg.mxu0
    %3786 = vmatpush.bf16.msra.mxu0 %v3424
    %3787 = vmatpush.bf16.msra.mxu0 %v3420
    %3788 = vmatpush.bf16.msra.mxu0 %v3416
    %3789 = vmatpush.bf16.msra.mxu0 %v3412
    %3790 = vmatpush.bf16.msra.mxu0 %v3408
    %3791 = vmatpush.bf16.msra.mxu0 %v3404
    %3792 = vmatpush.bf16.msra.mxu0 %v3400
    %3793 = vmatpush.bf16.msra.mxu0 %v3396
    %3794 = vmatmul.bf16.gmra.mxu0 %v2836
    %v3795 = vpop.f32.mrf.mxu0
    %v3796 = vadd.f32 %v3783, %v3795
    %v3797 = vpop.f32.mrf.mxu0
    %3798 = vdwg.mxu0
    %3799 = vmatpush.bf16.msra.mxu0 %v3456
    %3800 = vmatpush.bf16.msra.mxu0 %v3452
    %3801 = vmatpush.bf16.msra.mxu0 %v3448
    %3802 = vmatpush.bf16.msra.mxu0 %v3444
    %3803 = vmatpush.bf16.msra.mxu0 %v3440
    %3804 = vmatpush.bf16.msra.mxu0 %v3436
    %3805 = vmatpush.bf16.msra.mxu0 %v3432
    %3806 = vmatpush.bf16.msra.mxu0 %v3428
    %3807 = vmatmul.bf16.gmra.mxu0 %v2837
    %v3808 = vpop.f32.mrf.mxu0
    %v3809 = vadd.f32 %v3796, %v3808
    %v3810 = vpop.f32.mrf.mxu0
    %3811 = vdwg.mxu0
    %3812 = vmatpush.bf16.msra.mxu0 %v3488
    %3813 = vmatpush.bf16.msra.mxu0 %v3484
    %3814 = vmatpush.bf16.msra.mxu0 %v3480
    %3815 = vmatpush.bf16.msra.mxu0 %v3476
    %3816 = vmatpush.bf16.msra.mxu0 %v3472
    %3817 = vmatpush.bf16.msra.mxu0 %v3468
    %3818 = vmatpush.bf16.msra.mxu0 %v3464
    %3819 = vmatpush.bf16.msra.mxu0 %v3460
    %3820 = vmatmul.bf16.gmra.mxu0 %v2838
    %v3821 = vpop.f32.mrf.mxu0
    %v3822 = vadd.f32 %v3809, %v3821
    %v3823 = vpop.f32.mrf.mxu0
    %3824 = vdwg.mxu0
    %vm3825 = vcmp.gt.f32.partialorder %v3666, 0.0
    %vm3826 = vcmp.gt.f32.partialorder %v3718, 0.0
    %vm3827 = vcmp.gt.f32.partialorder %v3770, 0.0
    %vm3828 = vcmp.gt.f32.partialorder %v3822, 0.0
    %v3829 = vmul.f32 %v3666, 0.2
    %v3830 = vmul.f32 %v3718, 0.2
    %v3831 = vmul.f32 %v3770, 0.2
    %v3832 = vmul.f32 %v3822, 0.2
    %v3833 = vsel %vm3825, %v3666, %v3829
    %v3834 = vsel %vm3826, %v3718, %v3830
    %v3835 = vsel %vm3827, %v3770, %v3831
    %v3836 = vsel %vm3828, %v3822, %v3832
    // Predicated region
    $region74: #{tpu_custom_call.1} parent=1 // pred_check
      %p3837 = pneg %p102
    $region75: #{tpu_custom_call.1} parent=1 // pred_check_branch
      %3839 = sbr.rel (%p3837) target = $region77
    $region76: #{tpu_custom_call.1} parent=1 // pred_region
      %s3840 = scalar_lea.sflag [#allocation6], 2
      %s3841 = smul.u32 4, 64
      %s3842 = smul.u32 %s3841, 4
      %s3843 = sshll.u32 %s3842, 4
      %3844 = dma.done %s3840, %s3843
      %s3845 = scalar_lea.sflag [#allocation6], 3
      // Predicated region
      $region78: #{tpu_custom_call.1} parent=76 // pred_check
        _
      $region79: #{tpu_custom_call.1} parent=76 // pred_check_branch
        %3847 = sbr.rel target = $region81
      $region80: #{tpu_custom_call.1} parent=76 // pred_region
        %3848 = sst [smem:[#allocation19]] [#allocation26]
        %3849 = sst [smem:[#allocation20]] [#allocation25]
      $region81: #{tpu_custom_call.1} parent=76 // pred_fallthru
        _
      %3851 = shalt.err (0)
      %s3853 = sshll.u32 %s9, 4
      %s3854 = int_to_ptr.hbm [resolvable:$true] %s3853
      %s3855 = sshll.u32 [#allocation5], 4
      %s3856 = int_to_ptr.vmem [resolvable:$true] %s3855
      %3858 = dma.hbm_to_vmem [thread:$0]  %s3854, 4096, %s3856, %s3845
    $region77: #{tpu_custom_call.1} parent=1 // pred_fallthru
      _
    %v3859 = vpack.c.bf16 %v3833, %v3833
    %v3860 = vpack.c.bf16 %v3834, %v3834
    %v3861 = vpack.c.bf16 %v3835, %v3835
    %v3862 = vpack.c.bf16 %v3836, %v3836
    %v3863 = vld [vmem:[#allocation4] sm:$0xff]
    %v3864 = vld [vmem:[#allocation4 + $0x8] sm:$0xff]
    %v3865 = vld [vmem:[#allocation4 + $0x10] sm:$0xff]
    %v3866 = vld [vmem:[#allocation4 + $0x18] sm:$0xff]
    %v3867 = vld [vmem:[#allocation4 + $0x20] sm:$0xff]
    %v3868 = vld [vmem:[#allocation4 + $0x28] sm:$0xff]
    %v3869 = vld [vmem:[#allocation4 + $0x30] sm:$0xff]
    %v3870 = vld [vmem:[#allocation4 + $0x38] sm:$0xff]
    %v3871 = vld [vmem:[#allocation4 + $0x40] sm:$0xff]
    %v3872 = vld [vmem:[#allocation4 + $0x48] sm:$0xff]
    %v3873 = vld [vmem:[#allocation4 + $0x50] sm:$0xff]
    %v3874 = vld [vmem:[#allocation4 + $0x58] sm:$0xff]
    %v3875 = vld [vmem:[#allocation4 + $0x60] sm:$0xff]
    %v3876 = vld [vmem:[#allocation4 + $0x68] sm:$0xff]
    %v3877 = vld [vmem:[#allocation4 + $0x70] sm:$0xff]
    %v3878 = vld [vmem:[#allocation4 + $0x78] sm:$0xff]
    %v3879 = vld [vmem:[#allocation4 + $0x80] sm:$0xff]
    %v3880 = vld [vmem:[#allocation4 + $0x88] sm:$0xff]
    %v3881 = vld [vmem:[#allocation4 + $0x90] sm:$0xff]
    %v3882 = vld [vmem:[#allocation4 + $0x98] sm:$0xff]
    %v3883 = vld [vmem:[#allocation4 + $0xa0] sm:$0xff]
    %v3884 = vld [vmem:[#allocation4 + $0xa8] sm:$0xff]
    %v3885 = vld [vmem:[#allocation4 + $0xb0] sm:$0xff]
    %v3886 = vld [vmem:[#allocation4 + $0xb8] sm:$0xff]
    %v3887 = vld [vmem:[#allocation4 + $0xc0] sm:$0xff]
    %v3888 = vld [vmem:[#allocation4 + $0xc8] sm:$0xff]
    %v3889 = vld [vmem:[#allocation4 + $0xd0] sm:$0xff]
    %v3890 = vld [vmem:[#allocation4 + $0xd8] sm:$0xff]
    %v3891 = vld [vmem:[#allocation4 + $0xe0] sm:$0xff]
    %v3892 = vld [vmem:[#allocation4 + $0xe8] sm:$0xff]
    %v3893 = vld [vmem:[#allocation4 + $0xf0] sm:$0xff]
    %v3894 = vld [vmem:[#allocation4 + $0xf8] sm:$0xff]
    %v3895 = vld [vmem:[#allocation4 + $0x100] sm:$0xff]
    %v3896 = vld [vmem:[#allocation4 + $0x108] sm:$0xff]
    %v3897 = vld [vmem:[#allocation4 + $0x110] sm:$0xff]
    %v3898 = vld [vmem:[#allocation4 + $0x118] sm:$0xff]
    %v3899 = vld [vmem:[#allocation4 + $0x120] sm:$0xff]
    %v3900 = vld [vmem:[#allocation4 + $0x128] sm:$0xff]
    %v3901 = vld [vmem:[#allocation4 + $0x130] sm:$0xff]
    %v3902 = vld [vmem:[#allocation4 + $0x138] sm:$0xff]
    %v3903 = vld [vmem:[#allocation4 + $0x140] sm:$0xff]
    %v3904 = vld [vmem:[#allocation4 + $0x148] sm:$0xff]
    %v3905 = vld [vmem:[#allocation4 + $0x150] sm:$0xff]
    %v3906 = vld [vmem:[#allocation4 + $0x158] sm:$0xff]
    %v3907 = vld [vmem:[#allocation4 + $0x160] sm:$0xff]
    %v3908 = vld [vmem:[#allocation4 + $0x168] sm:$0xff]
    %v3909 = vld [vmem:[#allocation4 + $0x170] sm:$0xff]
    %v3910 = vld [vmem:[#allocation4 + $0x178] sm:$0xff]
    %v3911 = vld [vmem:[#allocation4 + $0x180] sm:$0xff]
    %v3912 = vld [vmem:[#allocation4 + $0x188] sm:$0xff]
    %v3913 = vld [vmem:[#allocation4 + $0x190] sm:$0xff]
    %v3914 = vld [vmem:[#allocation4 + $0x198] sm:$0xff]
    %v3915 = vld [vmem:[#allocation4 + $0x1a0] sm:$0xff]
    %v3916 = vld [vmem:[#allocation4 + $0x1a8] sm:$0xff]
    %v3917 = vld [vmem:[#allocation4 + $0x1b0] sm:$0xff]
    %v3918 = vld [vmem:[#allocation4 + $0x1b8] sm:$0xff]
    %v3919 = vld [vmem:[#allocation4 + $0x1c0] sm:$0xff]
    %v3920 = vld [vmem:[#allocation4 + $0x1c8] sm:$0xff]
    %v3921 = vld [vmem:[#allocation4 + $0x1d0] sm:$0xff]
    %v3922 = vld [vmem:[#allocation4 + $0x1d8] sm:$0xff]
    %v3923 = vld [vmem:[#allocation4 + $0x1e0] sm:$0xff]
    %v3924 = vld [vmem:[#allocation4 + $0x1e8] sm:$0xff]
    %v3925 = vld [vmem:[#allocation4 + $0x1f0] sm:$0xff]
    %v3926 = vld [vmem:[#allocation4 + $0x1f8] sm:$0xff]
    %v3927 = vld [vmem:[#allocation4 + $0x200] sm:$0xff]
    %v3928 = vld [vmem:[#allocation4 + $0x208] sm:$0xff]
    %v3929 = vld [vmem:[#allocation4 + $0x210] sm:$0xff]
    %v3930 = vld [vmem:[#allocation4 + $0x218] sm:$0xff]
    %v3931 = vld [vmem:[#allocation4 + $0x220] sm:$0xff]
    %v3932 = vld [vmem:[#allocation4 + $0x228] sm:$0xff]
    %v3933 = vld [vmem:[#allocation4 + $0x230] sm:$0xff]
    %v3934 = vld [vmem:[#allocation4 + $0x238] sm:$0xff]
    %v3935 = vld [vmem:[#allocation4 + $0x240] sm:$0xff]
    %v3936 = vld [vmem:[#allocation4 + $0x248] sm:$0xff]
    %v3937 = vld [vmem:[#allocation4 + $0x250] sm:$0xff]
    %v3938 = vld [vmem:[#allocation4 + $0x258] sm:$0xff]
    %v3939 = vld [vmem:[#allocation4 + $0x260] sm:$0xff]
    %v3940 = vld [vmem:[#allocation4 + $0x268] sm:$0xff]
    %v3941 = vld [vmem:[#allocation4 + $0x270] sm:$0xff]
    %v3942 = vld [vmem:[#allocation4 + $0x278] sm:$0xff]
    %v3943 = vld [vmem:[#allocation4 + $0x280] sm:$0xff]
    %v3944 = vld [vmem:[#allocation4 + $0x288] sm:$0xff]
    %v3945 = vld [vmem:[#allocation4 + $0x290] sm:$0xff]
    %v3946 = vld [vmem:[#allocation4 + $0x298] sm:$0xff]
    %v3947 = vld [vmem:[#allocation4 + $0x2a0] sm:$0xff]
    %v3948 = vld [vmem:[#allocation4 + $0x2a8] sm:$0xff]
    %v3949 = vld [vmem:[#allocation4 + $0x2b0] sm:$0xff]
    %v3950 = vld [vmem:[#allocation4 + $0x2b8] sm:$0xff]
    %v3951 = vld [vmem:[#allocation4 + $0x2c0] sm:$0xff]
    %v3952 = vld [vmem:[#allocation4 + $0x2c8] sm:$0xff]
    %v3953 = vld [vmem:[#allocation4 + $0x2d0] sm:$0xff]
    %v3954 = vld [vmem:[#allocation4 + $0x2d8] sm:$0xff]
    %v3955 = vld [vmem:[#allocation4 + $0x2e0] sm:$0xff]
    %v3956 = vld [vmem:[#allocation4 + $0x2e8] sm:$0xff]
    %v3957 = vld [vmem:[#allocation4 + $0x2f0] sm:$0xff]
    %v3958 = vld [vmem:[#allocation4 + $0x2f8] sm:$0xff]
    %v3959 = vld [vmem:[#allocation4 + $0x300] sm:$0xff]
    %v3960 = vld [vmem:[#allocation4 + $0x308] sm:$0xff]
    %v3961 = vld [vmem:[#allocation4 + $0x310] sm:$0xff]
    %v3962 = vld [vmem:[#allocation4 + $0x318] sm:$0xff]
    %v3963 = vld [vmem:[#allocation4 + $0x320] sm:$0xff]
    %v3964 = vld [vmem:[#allocation4 + $0x328] sm:$0xff]
    %v3965 = vld [vmem:[#allocation4 + $0x330] sm:$0xff]
    %v3966 = vld [vmem:[#allocation4 + $0x338] sm:$0xff]
    %v3967 = vld [vmem:[#allocation4 + $0x340] sm:$0xff]
    %v3968 = vld [vmem:[#allocation4 + $0x348] sm:$0xff]
    %v3969 = vld [vmem:[#allocation4 + $0x350] sm:$0xff]
    %v3970 = vld [vmem:[#allocation4 + $0x358] sm:$0xff]
    %v3971 = vld [vmem:[#allocation4 + $0x360] sm:$0xff]
    %v3972 = vld [vmem:[#allocation4 + $0x368] sm:$0xff]
    %v3973 = vld [vmem:[#allocation4 + $0x370] sm:$0xff]
    %v3974 = vld [vmem:[#allocation4 + $0x378] sm:$0xff]
    %v3975 = vld [vmem:[#allocation4 + $0x380] sm:$0xff]
    %v3976 = vld [vmem:[#allocation4 + $0x388] sm:$0xff]
    %v3977 = vld [vmem:[#allocation4 + $0x390] sm:$0xff]
    %v3978 = vld [vmem:[#allocation4 + $0x398] sm:$0xff]
    %v3979 = vld [vmem:[#allocation4 + $0x3a0] sm:$0xff]
    %v3980 = vld [vmem:[#allocation4 + $0x3a8] sm:$0xff]
    %v3981 = vld [vmem:[#allocation4 + $0x3b0] sm:$0xff]
    %v3982 = vld [vmem:[#allocation4 + $0x3b8] sm:$0xff]
    %v3983 = vld [vmem:[#allocation4 + $0x3c0] sm:$0xff]
    %v3984 = vld [vmem:[#allocation4 + $0x3c8] sm:$0xff]
    %v3985 = vld [vmem:[#allocation4 + $0x3d0] sm:$0xff]
    %v3986 = vld [vmem:[#allocation4 + $0x3d8] sm:$0xff]
    %v3987 = vld [vmem:[#allocation4 + $0x3e0] sm:$0xff]
    %v3988 = vld [vmem:[#allocation4 + $0x3e8] sm:$0xff]
    %v3989 = vld [vmem:[#allocation4 + $0x3f0] sm:$0xff]
    %v3990 = vld [vmem:[#allocation4 + $0x3f8] sm:$0xff]
    %v3991 = vld [vmem:[#allocation15] sm:$0xf]
    %v3993 = vperm.slane %v3991, 0
    %v3994 = vperm.slane %v3991, 1
    %v3995 = vperm.slane %v3991, 2
    %v3996 = vperm.slane %v3991, 3
    %v4129 = vunpack.c.l.b16 %v3863
    %v4130 = vunpack.c.h.b16 %v3863
    %v4131 = vunpack.c.l.b16 %v3864
    %v4132 = vunpack.c.h.b16 %v3864
    %v4133 = vunpack.c.l.b16 %v3865
    %v4134 = vunpack.c.h.b16 %v3865
    %v4135 = vunpack.c.l.b16 %v3866
    %v4136 = vunpack.c.h.b16 %v3866
    %v4137 = vunpack.c.l.b16 %v3867
    %v4138 = vunpack.c.h.b16 %v3867
    %v4139 = vunpack.c.l.b16 %v3868
    %v4140 = vunpack.c.h.b16 %v3868
    %v4141 = vunpack.c.l.b16 %v3869
    %v4142 = vunpack.c.h.b16 %v3869
    %v4143 = vunpack.c.l.b16 %v3870
    %v4144 = vunpack.c.h.b16 %v3870
    %v4145 = vunpack.c.l.b16 %v3871
    %v4146 = vunpack.c.h.b16 %v3871
    %v4147 = vunpack.c.l.b16 %v3872
    %v4148 = vunpack.c.h.b16 %v3872
    %v4149 = vunpack.c.l.b16 %v3873
    %v4150 = vunpack.c.h.b16 %v3873
    %v4151 = vunpack.c.l.b16 %v3874
    %v4152 = vunpack.c.h.b16 %v3874
    %v4153 = vunpack.c.l.b16 %v3875
    %v4154 = vunpack.c.h.b16 %v3875
    %v4155 = vunpack.c.l.b16 %v3876
    %v4156 = vunpack.c.h.b16 %v3876
    %v4157 = vunpack.c.l.b16 %v3877
    %v4158 = vunpack.c.h.b16 %v3877
    %v4159 = vunpack.c.l.b16 %v3878
    %v4160 = vunpack.c.h.b16 %v3878
    %v4161 = vunpack.c.l.b16 %v3879
    %v4162 = vunpack.c.h.b16 %v3879
    %v4163 = vunpack.c.l.b16 %v3880
    %v4164 = vunpack.c.h.b16 %v3880
    %v4165 = vunpack.c.l.b16 %v3881
    %v4166 = vunpack.c.h.b16 %v3881
    %v4167 = vunpack.c.l.b16 %v3882
    %v4168 = vunpack.c.h.b16 %v3882
    %v4169 = vunpack.c.l.b16 %v3883
    %v4170 = vunpack.c.h.b16 %v3883
    %v4171 = vunpack.c.l.b16 %v3884
    %v4172 = vunpack.c.h.b16 %v3884
    %v4173 = vunpack.c.l.b16 %v3885
    %v4174 = vunpack.c.h.b16 %v3885
    %v4175 = vunpack.c.l.b16 %v3886
    %v4176 = vunpack.c.h.b16 %v3886
    %v4177 = vunpack.c.l.b16 %v3887
    %v4178 = vunpack.c.h.b16 %v3887
    %v4179 = vunpack.c.l.b16 %v3888
    %v4180 = vunpack.c.h.b16 %v3888
    %v4181 = vunpack.c.l.b16 %v3889
    %v4182 = vunpack.c.h.b16 %v3889
    %v4183 = vunpack.c.l.b16 %v3890
    %v4184 = vunpack.c.h.b16 %v3890
    %v4185 = vunpack.c.l.b16 %v3891
    %v4186 = vunpack.c.h.b16 %v3891
    %v4187 = vunpack.c.l.b16 %v3892
    %v4188 = vunpack.c.h.b16 %v3892
    %v4189 = vunpack.c.l.b16 %v3893
    %v4190 = vunpack.c.h.b16 %v3893
    %v4191 = vunpack.c.l.b16 %v3894
    %v4192 = vunpack.c.h.b16 %v3894
    %v4193 = vunpack.c.l.b16 %v3895
    %v4194 = vunpack.c.h.b16 %v3895
    %v4195 = vunpack.c.l.b16 %v3896
    %v4196 = vunpack.c.h.b16 %v3896
    %v4197 = vunpack.c.l.b16 %v3897
    %v4198 = vunpack.c.h.b16 %v3897
    %v4199 = vunpack.c.l.b16 %v3898
    %v4200 = vunpack.c.h.b16 %v3898
    %v4201 = vunpack.c.l.b16 %v3899
    %v4202 = vunpack.c.h.b16 %v3899
    %v4203 = vunpack.c.l.b16 %v3900
    %v4204 = vunpack.c.h.b16 %v3900
    %v4205 = vunpack.c.l.b16 %v3901
    %v4206 = vunpack.c.h.b16 %v3901
    %v4207 = vunpack.c.l.b16 %v3902
    %v4208 = vunpack.c.h.b16 %v3902
    %v4209 = vunpack.c.l.b16 %v3903
    %v4210 = vunpack.c.h.b16 %v3903
    %v4211 = vunpack.c.l.b16 %v3904
    %v4212 = vunpack.c.h.b16 %v3904
    %v4213 = vunpack.c.l.b16 %v3905
    %v4214 = vunpack.c.h.b16 %v3905
    %v4215 = vunpack.c.l.b16 %v3906
    %v4216 = vunpack.c.h.b16 %v3906
    %v4217 = vunpack.c.l.b16 %v3907
    %v4218 = vunpack.c.h.b16 %v3907
    %v4219 = vunpack.c.l.b16 %v3908
    %v4220 = vunpack.c.h.b16 %v3908
    %v4221 = vunpack.c.l.b16 %v3909
    %v4222 = vunpack.c.h.b16 %v3909
    %v4223 = vunpack.c.l.b16 %v3910
    %v4224 = vunpack.c.h.b16 %v3910
    %v4225 = vunpack.c.l.b16 %v3911
    %v4226 = vunpack.c.h.b16 %v3911
    %v4227 = vunpack.c.l.b16 %v3912
    %v4228 = vunpack.c.h.b16 %v3912
    %v4229 = vunpack.c.l.b16 %v3913
    %v4230 = vunpack.c.h.b16 %v3913
    %v4231 = vunpack.c.l.b16 %v3914
    %v4232 = vunpack.c.h.b16 %v3914
    %v4233 = vunpack.c.l.b16 %v3915
    %v4234 = vunpack.c.h.b16 %v3915
    %v4235 = vunpack.c.l.b16 %v3916
    %v4236 = vunpack.c.h.b16 %v3916
    %v4237 = vunpack.c.l.b16 %v3917
    %v4238 = vunpack.c.h.b16 %v3917
    %v4239 = vunpack.c.l.b16 %v3918
    %v4240 = vunpack.c.h.b16 %v3918
    %v4241 = vunpack.c.l.b16 %v3919
    %v4242 = vunpack.c.h.b16 %v3919
    %v4243 = vunpack.c.l.b16 %v3920
    %v4244 = vunpack.c.h.b16 %v3920
    %v4245 = vunpack.c.l.b16 %v3921
    %v4246 = vunpack.c.h.b16 %v3921
    %v4247 = vunpack.c.l.b16 %v3922
    %v4248 = vunpack.c.h.b16 %v3922
    %v4249 = vunpack.c.l.b16 %v3923
    %v4250 = vunpack.c.h.b16 %v3923
    %v4251 = vunpack.c.l.b16 %v3924
    %v4252 = vunpack.c.h.b16 %v3924
    %v4253 = vunpack.c.l.b16 %v3925
    %v4254 = vunpack.c.h.b16 %v3925
    %v4255 = vunpack.c.l.b16 %v3926
    %v4256 = vunpack.c.h.b16 %v3926
    %v4257 = vunpack.c.l.b16 %v3927
    %v4258 = vunpack.c.h.b16 %v3927
    %v4259 = vunpack.c.l.b16 %v3928
    %v4260 = vunpack.c.h.b16 %v3928
    %v4261 = vunpack.c.l.b16 %v3929
    %v4262 = vunpack.c.h.b16 %v3929
    %v4263 = vunpack.c.l.b16 %v3930
    %v4264 = vunpack.c.h.b16 %v3930
    %v4265 = vunpack.c.l.b16 %v3931
    %v4266 = vunpack.c.h.b16 %v3931
    %v4267 = vunpack.c.l.b16 %v3932
    %v4268 = vunpack.c.h.b16 %v3932
    %v4269 = vunpack.c.l.b16 %v3933
    %v4270 = vunpack.c.h.b16 %v3933
    %v4271 = vunpack.c.l.b16 %v3934
    %v4272 = vunpack.c.h.b16 %v3934
    %v4273 = vunpack.c.l.b16 %v3935
    %v4274 = vunpack.c.h.b16 %v3935
    %v4275 = vunpack.c.l.b16 %v3936
    %v4276 = vunpack.c.h.b16 %v3936
    %v4277 = vunpack.c.l.b16 %v3937
    %v4278 = vunpack.c.h.b16 %v3937
    %v4279 = vunpack.c.l.b16 %v3938
    %v4280 = vunpack.c.h.b16 %v3938
    %v4281 = vunpack.c.l.b16 %v3939
    %v4282 = vunpack.c.h.b16 %v3939
    %v4283 = vunpack.c.l.b16 %v3940
    %v4284 = vunpack.c.h.b16 %v3940
    %v4285 = vunpack.c.l.b16 %v3941
    %v4286 = vunpack.c.h.b16 %v3941
    %v4287 = vunpack.c.l.b16 %v3942
    %v4288 = vunpack.c.h.b16 %v3942
    %v4289 = vunpack.c.l.b16 %v3943
    %v4290 = vunpack.c.h.b16 %v3943
    %v4291 = vunpack.c.l.b16 %v3944
    %v4292 = vunpack.c.h.b16 %v3944
    %v4293 = vunpack.c.l.b16 %v3945
    %v4294 = vunpack.c.h.b16 %v3945
    %v4295 = vunpack.c.l.b16 %v3946
    %v4296 = vunpack.c.h.b16 %v3946
    %v4297 = vunpack.c.l.b16 %v3947
    %v4298 = vunpack.c.h.b16 %v3947
    %v4299 = vunpack.c.l.b16 %v3948
    %v4300 = vunpack.c.h.b16 %v3948
    %v4301 = vunpack.c.l.b16 %v3949
    %v4302 = vunpack.c.h.b16 %v3949
    %v4303 = vunpack.c.l.b16 %v3950
    %v4304 = vunpack.c.h.b16 %v3950
    %v4305 = vunpack.c.l.b16 %v3951
    %v4306 = vunpack.c.h.b16 %v3951
    %v4307 = vunpack.c.l.b16 %v3952
    %v4308 = vunpack.c.h.b16 %v3952
    %v4309 = vunpack.c.l.b16 %v3953
    %v4310 = vunpack.c.h.b16 %v3953
    %v4311 = vunpack.c.l.b16 %v3954
    %v4312 = vunpack.c.h.b16 %v3954
    %v4313 = vunpack.c.l.b16 %v3955
    %v4314 = vunpack.c.h.b16 %v3955
    %v4315 = vunpack.c.l.b16 %v3956
    %v4316 = vunpack.c.h.b16 %v3956
    %v4317 = vunpack.c.l.b16 %v3957
    %v4318 = vunpack.c.h.b16 %v3957
    %v4319 = vunpack.c.l.b16 %v3958
    %v4320 = vunpack.c.h.b16 %v3958
    %v4321 = vunpack.c.l.b16 %v3959
    %v4322 = vunpack.c.h.b16 %v3959
    %v4323 = vunpack.c.l.b16 %v3960
    %v4324 = vunpack.c.h.b16 %v3960
    %v4325 = vunpack.c.l.b16 %v3961
    %v4326 = vunpack.c.h.b16 %v3961
    %v4327 = vunpack.c.l.b16 %v3962
    %v4328 = vunpack.c.h.b16 %v3962
    %v4329 = vunpack.c.l.b16 %v3963
    %v4330 = vunpack.c.h.b16 %v3963
    %v4331 = vunpack.c.l.b16 %v3964
    %v4332 = vunpack.c.h.b16 %v3964
    %v4333 = vunpack.c.l.b16 %v3965
    %v4334 = vunpack.c.h.b16 %v3965
    %v4335 = vunpack.c.l.b16 %v3966
    %v4336 = vunpack.c.h.b16 %v3966
    %v4337 = vunpack.c.l.b16 %v3967
    %v4338 = vunpack.c.h.b16 %v3967
    %v4339 = vunpack.c.l.b16 %v3968
    %v4340 = vunpack.c.h.b16 %v3968
    %v4341 = vunpack.c.l.b16 %v3969
    %v4342 = vunpack.c.h.b16 %v3969
    %v4343 = vunpack.c.l.b16 %v3970
    %v4344 = vunpack.c.h.b16 %v3970
    %v4345 = vunpack.c.l.b16 %v3971
    %v4346 = vunpack.c.h.b16 %v3971
    %v4347 = vunpack.c.l.b16 %v3972
    %v4348 = vunpack.c.h.b16 %v3972
    %v4349 = vunpack.c.l.b16 %v3973
    %v4350 = vunpack.c.h.b16 %v3973
    %v4351 = vunpack.c.l.b16 %v3974
    %v4352 = vunpack.c.h.b16 %v3974
    %v4353 = vunpack.c.l.b16 %v3975
    %v4354 = vunpack.c.h.b16 %v3975
    %v4355 = vunpack.c.l.b16 %v3976
    %v4356 = vunpack.c.h.b16 %v3976
    %v4357 = vunpack.c.l.b16 %v3977
    %v4358 = vunpack.c.h.b16 %v3977
    %v4359 = vunpack.c.l.b16 %v3978
    %v4360 = vunpack.c.h.b16 %v3978
    %v4361 = vunpack.c.l.b16 %v3979
    %v4362 = vunpack.c.h.b16 %v3979
    %v4363 = vunpack.c.l.b16 %v3980
    %v4364 = vunpack.c.h.b16 %v3980
    %v4365 = vunpack.c.l.b16 %v3981
    %v4366 = vunpack.c.h.b16 %v3981
    %v4367 = vunpack.c.l.b16 %v3982
    %v4368 = vunpack.c.h.b16 %v3982
    %v4369 = vunpack.c.l.b16 %v3983
    %v4370 = vunpack.c.h.b16 %v3983
    %v4371 = vunpack.c.l.b16 %v3984
    %v4372 = vunpack.c.h.b16 %v3984
    %v4373 = vunpack.c.l.b16 %v3985
    %v4374 = vunpack.c.h.b16 %v3985
    %v4375 = vunpack.c.l.b16 %v3986
    %v4376 = vunpack.c.h.b16 %v3986
    %v4377 = vunpack.c.l.b16 %v3987
    %v4378 = vunpack.c.h.b16 %v3987
    %v4379 = vunpack.c.l.b16 %v3988
    %v4380 = vunpack.c.h.b16 %v3988
    %v4381 = vunpack.c.l.b16 %v3989
    %v4382 = vunpack.c.h.b16 %v3989
    %v4383 = vunpack.c.l.b16 %v3990
    %v4384 = vunpack.c.h.b16 %v3990
    %v4385 = vpack.c.b16 %v4133, %v4129
    %v4386 = vpack.c.b16 %v4134, %v4130
    %v4387 = vpack.c.b16 %v4135, %v4131
    %v4388 = vpack.c.b16 %v4136, %v4132
    %v4389 = vpack.c.b16 %v4141, %v4137
    %v4390 = vpack.c.b16 %v4142, %v4138
    %v4391 = vpack.c.b16 %v4143, %v4139
    %v4392 = vpack.c.b16 %v4144, %v4140
    %v4393 = vpack.c.b16 %v4149, %v4145
    %v4394 = vpack.c.b16 %v4150, %v4146
    %v4395 = vpack.c.b16 %v4151, %v4147
    %v4396 = vpack.c.b16 %v4152, %v4148
    %v4397 = vpack.c.b16 %v4157, %v4153
    %v4398 = vpack.c.b16 %v4158, %v4154
    %v4399 = vpack.c.b16 %v4159, %v4155
    %v4400 = vpack.c.b16 %v4160, %v4156
    %v4401 = vpack.c.b16 %v4165, %v4161
    %v4402 = vpack.c.b16 %v4166, %v4162
    %v4403 = vpack.c.b16 %v4167, %v4163
    %v4404 = vpack.c.b16 %v4168, %v4164
    %v4405 = vpack.c.b16 %v4173, %v4169
    %v4406 = vpack.c.b16 %v4174, %v4170
    %v4407 = vpack.c.b16 %v4175, %v4171
    %v4408 = vpack.c.b16 %v4176, %v4172
    %v4409 = vpack.c.b16 %v4181, %v4177
    %v4410 = vpack.c.b16 %v4182, %v4178
    %v4411 = vpack.c.b16 %v4183, %v4179
    %v4412 = vpack.c.b16 %v4184, %v4180
    %v4413 = vpack.c.b16 %v4189, %v4185
    %v4414 = vpack.c.b16 %v4190, %v4186
    %v4415 = vpack.c.b16 %v4191, %v4187
    %v4416 = vpack.c.b16 %v4192, %v4188
    %v4417 = vpack.c.b16 %v4197, %v4193
    %v4418 = vpack.c.b16 %v4198, %v4194
    %v4419 = vpack.c.b16 %v4199, %v4195
    %v4420 = vpack.c.b16 %v4200, %v4196
    %v4421 = vpack.c.b16 %v4205, %v4201
    %v4422 = vpack.c.b16 %v4206, %v4202
    %v4423 = vpack.c.b16 %v4207, %v4203
    %v4424 = vpack.c.b16 %v4208, %v4204
    %v4425 = vpack.c.b16 %v4213, %v4209
    %v4426 = vpack.c.b16 %v4214, %v4210
    %v4427 = vpack.c.b16 %v4215, %v4211
    %v4428 = vpack.c.b16 %v4216, %v4212
    %v4429 = vpack.c.b16 %v4221, %v4217
    %v4430 = vpack.c.b16 %v4222, %v4218
    %v4431 = vpack.c.b16 %v4223, %v4219
    %v4432 = vpack.c.b16 %v4224, %v4220
    %v4433 = vpack.c.b16 %v4229, %v4225
    %v4434 = vpack.c.b16 %v4230, %v4226
    %v4435 = vpack.c.b16 %v4231, %v4227
    %v4436 = vpack.c.b16 %v4232, %v4228
    %v4437 = vpack.c.b16 %v4237, %v4233
    %v4438 = vpack.c.b16 %v4238, %v4234
    %v4439 = vpack.c.b16 %v4239, %v4235
    %v4440 = vpack.c.b16 %v4240, %v4236
    %v4441 = vpack.c.b16 %v4245, %v4241
    %v4442 = vpack.c.b16 %v4246, %v4242
    %v4443 = vpack.c.b16 %v4247, %v4243
    %v4444 = vpack.c.b16 %v4248, %v4244
    %v4445 = vpack.c.b16 %v4253, %v4249
    %v4446 = vpack.c.b16 %v4254, %v4250
    %v4447 = vpack.c.b16 %v4255, %v4251
    %v4448 = vpack.c.b16 %v4256, %v4252
    %v4449 = vpack.c.b16 %v4261, %v4257
    %v4450 = vpack.c.b16 %v4262, %v4258
    %v4451 = vpack.c.b16 %v4263, %v4259
    %v4452 = vpack.c.b16 %v4264, %v4260
    %v4453 = vpack.c.b16 %v4269, %v4265
    %v4454 = vpack.c.b16 %v4270, %v4266
    %v4455 = vpack.c.b16 %v4271, %v4267
    %v4456 = vpack.c.b16 %v4272, %v4268
    %v4457 = vpack.c.b16 %v4277, %v4273
    %v4458 = vpack.c.b16 %v4278, %v4274
    %v4459 = vpack.c.b16 %v4279, %v4275
    %v4460 = vpack.c.b16 %v4280, %v4276
    %v4461 = vpack.c.b16 %v4285, %v4281
    %v4462 = vpack.c.b16 %v4286, %v4282
    %v4463 = vpack.c.b16 %v4287, %v4283
    %v4464 = vpack.c.b16 %v4288, %v4284
    %v4465 = vpack.c.b16 %v4293, %v4289
    %v4466 = vpack.c.b16 %v4294, %v4290
    %v4467 = vpack.c.b16 %v4295, %v4291
    %v4468 = vpack.c.b16 %v4296, %v4292
    %v4469 = vpack.c.b16 %v4301, %v4297
    %v4470 = vpack.c.b16 %v4302, %v4298
    %v4471 = vpack.c.b16 %v4303, %v4299
    %v4472 = vpack.c.b16 %v4304, %v4300
    %v4473 = vpack.c.b16 %v4309, %v4305
    %v4474 = vpack.c.b16 %v4310, %v4306
    %v4475 = vpack.c.b16 %v4311, %v4307
    %v4476 = vpack.c.b16 %v4312, %v4308
    %v4477 = vpack.c.b16 %v4317, %v4313
    %v4478 = vpack.c.b16 %v4318, %v4314
    %v4479 = vpack.c.b16 %v4319, %v4315
    %v4480 = vpack.c.b16 %v4320, %v4316
    %v4481 = vpack.c.b16 %v4325, %v4321
    %v4482 = vpack.c.b16 %v4326, %v4322
    %v4483 = vpack.c.b16 %v4327, %v4323
    %v4484 = vpack.c.b16 %v4328, %v4324
    %v4485 = vpack.c.b16 %v4333, %v4329
    %v4486 = vpack.c.b16 %v4334, %v4330
    %v4487 = vpack.c.b16 %v4335, %v4331
    %v4488 = vpack.c.b16 %v4336, %v4332
    %v4489 = vpack.c.b16 %v4341, %v4337
    %v4490 = vpack.c.b16 %v4342, %v4338
    %v4491 = vpack.c.b16 %v4343, %v4339
    %v4492 = vpack.c.b16 %v4344, %v4340
    %v4493 = vpack.c.b16 %v4349, %v4345
    %v4494 = vpack.c.b16 %v4350, %v4346
    %v4495 = vpack.c.b16 %v4351, %v4347
    %v4496 = vpack.c.b16 %v4352, %v4348
    %v4497 = vpack.c.b16 %v4357, %v4353
    %v4498 = vpack.c.b16 %v4358, %v4354
    %v4499 = vpack.c.b16 %v4359, %v4355
    %v4500 = vpack.c.b16 %v4360, %v4356
    %v4501 = vpack.c.b16 %v4365, %v4361
    %v4502 = vpack.c.b16 %v4366, %v4362
    %v4503 = vpack.c.b16 %v4367, %v4363
    %v4504 = vpack.c.b16 %v4368, %v4364
    %v4505 = vpack.c.b16 %v4373, %v4369
    %v4506 = vpack.c.b16 %v4374, %v4370
    %v4507 = vpack.c.b16 %v4375, %v4371
    %v4508 = vpack.c.b16 %v4376, %v4372
    %v4509 = vpack.c.b16 %v4381, %v4377
    %v4510 = vpack.c.b16 %v4382, %v4378
    %v4511 = vpack.c.b16 %v4383, %v4379
    %v4512 = vpack.c.b16 %v4384, %v4380
    %4641 = vmatpush.bf16.msra.mxu0 %v4413
    %4642 = vmatpush.bf16.msra.mxu0 %v4409
    %4643 = vmatpush.bf16.msra.mxu0 %v4405
    %4644 = vmatpush.bf16.msra.mxu0 %v4401
    %4645 = vmatpush.bf16.msra.mxu0 %v4397
    %4646 = vmatpush.bf16.msra.mxu0 %v4393
    %4647 = vmatpush.bf16.msra.mxu0 %v4389
    %4648 = vmatpush.bf16.msra.mxu0 %v4385
    %4649 = vmatmul.bf16.gmra.mxu0 %v3859
    %v4650 = vpop.f32.mrf.mxu0
    %v4651 = vadd.f32 %v3993, %v4650
    %v4652 = vpop.f32.mrf.mxu0
    %4653 = vdwg.mxu0
    %4654 = vmatpush.bf16.msra.mxu0 %v4445
    %4655 = vmatpush.bf16.msra.mxu0 %v4441
    %4656 = vmatpush.bf16.msra.mxu0 %v4437
    %4657 = vmatpush.bf16.msra.mxu0 %v4433
    %4658 = vmatpush.bf16.msra.mxu0 %v4429
    %4659 = vmatpush.bf16.msra.mxu0 %v4425
    %4660 = vmatpush.bf16.msra.mxu0 %v4421
    %4661 = vmatpush.bf16.msra.mxu0 %v4417
    %4662 = vmatmul.bf16.gmra.mxu0 %v3860
    %v4663 = vpop.f32.mrf.mxu0
    %v4664 = vadd.f32 %v4651, %v4663
    %v4665 = vpop.f32.mrf.mxu0
    %4666 = vdwg.mxu0
    %4667 = vmatpush.bf16.msra.mxu0 %v4477
    %4668 = vmatpush.bf16.msra.mxu0 %v4473
    %4669 = vmatpush.bf16.msra.mxu0 %v4469
    %4670 = vmatpush.bf16.msra.mxu0 %v4465
    %4671 = vmatpush.bf16.msra.mxu0 %v4461
    %4672 = vmatpush.bf16.msra.mxu0 %v4457
    %4673 = vmatpush.bf16.msra.mxu0 %v4453
    %4674 = vmatpush.bf16.msra.mxu0 %v4449
    %4675 = vmatmul.bf16.gmra.mxu0 %v3861
    %v4676 = vpop.f32.mrf.mxu0
    %v4677 = vadd.f32 %v4664, %v4676
    %v4678 = vpop.f32.mrf.mxu0
    %4679 = vdwg.mxu0
    %4680 = vmatpush.bf16.msra.mxu0 %v4509
    %4681 = vmatpush.bf16.msra.mxu0 %v4505
    %4682 = vmatpush.bf16.msra.mxu0 %v4501
    %4683 = vmatpush.bf16.msra.mxu0 %v4497
    %4684 = vmatpush.bf16.msra.mxu0 %v4493
    %4685 = vmatpush.bf16.msra.mxu0 %v4489
    %4686 = vmatpush.bf16.msra.mxu0 %v4485
    %4687 = vmatpush.bf16.msra.mxu0 %v4481
    %4688 = vmatmul.bf16.gmra.mxu0 %v3862
    %v4689 = vpop.f32.mrf.mxu0
    %v4690 = vadd.f32 %v4677, %v4689
    %v4691 = vpop.f32.mrf.mxu0
    %4692 = vdwg.mxu0
    %4693 = vmatpush.bf16.msra.mxu0 %v4414
    %4694 = vmatpush.bf16.msra.mxu0 %v4410
    %4695 = vmatpush.bf16.msra.mxu0 %v4406
    %4696 = vmatpush.bf16.msra.mxu0 %v4402
    %4697 = vmatpush.bf16.msra.mxu0 %v4398
    %4698 = vmatpush.bf16.msra.mxu0 %v4394
    %4699 = vmatpush.bf16.msra.mxu0 %v4390
    %4700 = vmatpush.bf16.msra.mxu0 %v4386
    %4701 = vmatmul.bf16.gmra.mxu0 %v3859
    %v4702 = vpop.f32.mrf.mxu0
    %v4703 = vadd.f32 %v3994, %v4702
    %v4704 = vpop.f32.mrf.mxu0
    %4705 = vdwg.mxu0
    %4706 = vmatpush.bf16.msra.mxu0 %v4446
    %4707 = vmatpush.bf16.msra.mxu0 %v4442
    %4708 = vmatpush.bf16.msra.mxu0 %v4438
    %4709 = vmatpush.bf16.msra.mxu0 %v4434
    %4710 = vmatpush.bf16.msra.mxu0 %v4430
    %4711 = vmatpush.bf16.msra.mxu0 %v4426
    %4712 = vmatpush.bf16.msra.mxu0 %v4422
    %4713 = vmatpush.bf16.msra.mxu0 %v4418
    %4714 = vmatmul.bf16.gmra.mxu0 %v3860
    %v4715 = vpop.f32.mrf.mxu0
    %v4716 = vadd.f32 %v4703, %v4715
    %v4717 = vpop.f32.mrf.mxu0
    %4718 = vdwg.mxu0
    %4719 = vmatpush.bf16.msra.mxu0 %v4478
    %4720 = vmatpush.bf16.msra.mxu0 %v4474
    %4721 = vmatpush.bf16.msra.mxu0 %v4470
    %4722 = vmatpush.bf16.msra.mxu0 %v4466
    %4723 = vmatpush.bf16.msra.mxu0 %v4462
    %4724 = vmatpush.bf16.msra.mxu0 %v4458
    %4725 = vmatpush.bf16.msra.mxu0 %v4454
    %4726 = vmatpush.bf16.msra.mxu0 %v4450
    %4727 = vmatmul.bf16.gmra.mxu0 %v3861
    %v4728 = vpop.f32.mrf.mxu0
    %v4729 = vadd.f32 %v4716, %v4728
    %v4730 = vpop.f32.mrf.mxu0
    %4731 = vdwg.mxu0
    %4732 = vmatpush.bf16.msra.mxu0 %v4510
    %4733 = vmatpush.bf16.msra.mxu0 %v4506
    %4734 = vmatpush.bf16.msra.mxu0 %v4502
    %4735 = vmatpush.bf16.msra.mxu0 %v4498
    %4736 = vmatpush.bf16.msra.mxu0 %v4494
    %4737 = vmatpush.bf16.msra.mxu0 %v4490
    %4738 = vmatpush.bf16.msra.mxu0 %v4486
    %4739 = vmatpush.bf16.msra.mxu0 %v4482
    %4740 = vmatmul.bf16.gmra.mxu0 %v3862
    %v4741 = vpop.f32.mrf.mxu0
    %v4742 = vadd.f32 %v4729, %v4741
    %v4743 = vpop.f32.mrf.mxu0
    %4744 = vdwg.mxu0
    %4745 = vmatpush.bf16.msra.mxu0 %v4415
    %4746 = vmatpush.bf16.msra.mxu0 %v4411
    %4747 = vmatpush.bf16.msra.mxu0 %v4407
    %4748 = vmatpush.bf16.msra.mxu0 %v4403
    %4749 = vmatpush.bf16.msra.mxu0 %v4399
    %4750 = vmatpush.bf16.msra.mxu0 %v4395
    %4751 = vmatpush.bf16.msra.mxu0 %v4391
    %4752 = vmatpush.bf16.msra.mxu0 %v4387
    %4753 = vmatmul.bf16.gmra.mxu0 %v3859
    %v4754 = vpop.f32.mrf.mxu0
    %v4755 = vadd.f32 %v3995, %v4754
    %v4756 = vpop.f32.mrf.mxu0
    %4757 = vdwg.mxu0
    %4758 = vmatpush.bf16.msra.mxu0 %v4447
    %4759 = vmatpush.bf16.msra.mxu0 %v4443
    %4760 = vmatpush.bf16.msra.mxu0 %v4439
    %4761 = vmatpush.bf16.msra.mxu0 %v4435
    %4762 = vmatpush.bf16.msra.mxu0 %v4431
    %4763 = vmatpush.bf16.msra.mxu0 %v4427
    %4764 = vmatpush.bf16.msra.mxu0 %v4423
    %4765 = vmatpush.bf16.msra.mxu0 %v4419
    %4766 = vmatmul.bf16.gmra.mxu0 %v3860
    %v4767 = vpop.f32.mrf.mxu0
    %v4768 = vadd.f32 %v4755, %v4767
    %v4769 = vpop.f32.mrf.mxu0
    %4770 = vdwg.mxu0
    %4771 = vmatpush.bf16.msra.mxu0 %v4479
    %4772 = vmatpush.bf16.msra.mxu0 %v4475
    %4773 = vmatpush.bf16.msra.mxu0 %v4471
    %4774 = vmatpush.bf16.msra.mxu0 %v4467
    %4775 = vmatpush.bf16.msra.mxu0 %v4463
    %4776 = vmatpush.bf16.msra.mxu0 %v4459
    %4777 = vmatpush.bf16.msra.mxu0 %v4455
    %4778 = vmatpush.bf16.msra.mxu0 %v4451
    %4779 = vmatmul.bf16.gmra.mxu0 %v3861
    %v4780 = vpop.f32.mrf.mxu0
    %v4781 = vadd.f32 %v4768, %v4780
    %v4782 = vpop.f32.mrf.mxu0
    %4783 = vdwg.mxu0
    %4784 = vmatpush.bf16.msra.mxu0 %v4511
    %4785 = vmatpush.bf16.msra.mxu0 %v4507
    %4786 = vmatpush.bf16.msra.mxu0 %v4503
    %4787 = vmatpush.bf16.msra.mxu0 %v4499
    %4788 = vmatpush.bf16.msra.mxu0 %v4495
    %4789 = vmatpush.bf16.msra.mxu0 %v4491
    %4790 = vmatpush.bf16.msra.mxu0 %v4487
    %4791 = vmatpush.bf16.msra.mxu0 %v4483
    %4792 = vmatmul.bf16.gmra.mxu0 %v3862
    %v4793 = vpop.f32.mrf.mxu0
    %v4794 = vadd.f32 %v4781, %v4793
    %v4795 = vpop.f32.mrf.mxu0
    %4796 = vdwg.mxu0
    %4797 = vmatpush.bf16.msra.mxu0 %v4416
    %4798 = vmatpush.bf16.msra.mxu0 %v4412
    %4799 = vmatpush.bf16.msra.mxu0 %v4408
    %4800 = vmatpush.bf16.msra.mxu0 %v4404
    %4801 = vmatpush.bf16.msra.mxu0 %v4400
    %4802 = vmatpush.bf16.msra.mxu0 %v4396
    %4803 = vmatpush.bf16.msra.mxu0 %v4392
    %4804 = vmatpush.bf16.msra.mxu0 %v4388
    %4805 = vmatmul.bf16.gmra.mxu0 %v3859
    %v4806 = vpop.f32.mrf.mxu0
    %v4807 = vadd.f32 %v3996, %v4806
    %v4808 = vpop.f32.mrf.mxu0
    %4809 = vdwg.mxu0
    %4810 = vmatpush.bf16.msra.mxu0 %v4448
    %4811 = vmatpush.bf16.msra.mxu0 %v4444
    %4812 = vmatpush.bf16.msra.mxu0 %v4440
    %4813 = vmatpush.bf16.msra.mxu0 %v4436
    %4814 = vmatpush.bf16.msra.mxu0 %v4432
    %4815 = vmatpush.bf16.msra.mxu0 %v4428
    %4816 = vmatpush.bf16.msra.mxu0 %v4424
    %4817 = vmatpush.bf16.msra.mxu0 %v4420
    %4818 = vmatmul.bf16.gmra.mxu0 %v3860
    %v4819 = vpop.f32.mrf.mxu0
    %v4820 = vadd.f32 %v4807, %v4819
    %v4821 = vpop.f32.mrf.mxu0
    %4822 = vdwg.mxu0
    %4823 = vmatpush.bf16.msra.mxu0 %v4480
    %4824 = vmatpush.bf16.msra.mxu0 %v4476
    %4825 = vmatpush.bf16.msra.mxu0 %v4472
    %4826 = vmatpush.bf16.msra.mxu0 %v4468
    %4827 = vmatpush.bf16.msra.mxu0 %v4464
    %4828 = vmatpush.bf16.msra.mxu0 %v4460
    %4829 = vmatpush.bf16.msra.mxu0 %v4456
    %4830 = vmatpush.bf16.msra.mxu0 %v4452
    %4831 = vmatmul.bf16.gmra.mxu0 %v3861
    %v4832 = vpop.f32.mrf.mxu0
    %v4833 = vadd.f32 %v4820, %v4832
    %v4834 = vpop.f32.mrf.mxu0
    %4835 = vdwg.mxu0
    %4836 = vmatpush.bf16.msra.mxu0 %v4512
    %4837 = vmatpush.bf16.msra.mxu0 %v4508
    %4838 = vmatpush.bf16.msra.mxu0 %v4504
    %4839 = vmatpush.bf16.msra.mxu0 %v4500
    %4840 = vmatpush.bf16.msra.mxu0 %v4496
    %4841 = vmatpush.bf16.msra.mxu0 %v4492
    %4842 = vmatpush.bf16.msra.mxu0 %v4488
    %4843 = vmatpush.bf16.msra.mxu0 %v4484
    %4844 = vmatmul.bf16.gmra.mxu0 %v3862
    %v4845 = vpop.f32.mrf.mxu0
    %v4846 = vadd.f32 %v4833, %v4845
    %v4847 = vpop.f32.mrf.mxu0
    %4848 = vdwg.mxu0
    %vm4849 = vcmp.gt.f32.partialorder %v4690, 0.0
    %vm4850 = vcmp.gt.f32.partialorder %v4742, 0.0
    %vm4851 = vcmp.gt.f32.partialorder %v4794, 0.0
    %vm4852 = vcmp.gt.f32.partialorder %v4846, 0.0
    %v4853 = vmul.f32 %v4690, 0.2
    %v4854 = vmul.f32 %v4742, 0.2
    %v4855 = vmul.f32 %v4794, 0.2
    %v4856 = vmul.f32 %v4846, 0.2
    %v4857 = vsel %vm4849, %v4690, %v4853
    %v4858 = vsel %vm4850, %v4742, %v4854
    %v4859 = vsel %vm4851, %v4794, %v4855
    %v4860 = vsel %vm4852, %v4846, %v4856
    // Predicated region
    $region82: #{tpu_custom_call.1} parent=1 // pred_check
      %p4861 = pneg %p102
    $region83: #{tpu_custom_call.1} parent=1 // pred_check_branch
      %4863 = sbr.rel (%p4861) target = $region85
    $region84: #{tpu_custom_call.1} parent=1 // pred_region
      %s4864 = scalar_lea.sflag [#allocation6], 3
      %s4865 = smul.u32 4, 64
      %s4866 = smul.u32 %s4865, 1
      %s4867 = sshll.u32 %s4866, 4
      %4868 = dma.done %s4864, %s4867
    $region85: #{tpu_custom_call.1} parent=1 // pred_fallthru
      _
    %v4869 = vpack.c.bf16 %v4857, %v4857
    %v4870 = vpack.c.bf16 %v4858, %v4858
    %v4871 = vpack.c.bf16 %v4859, %v4859
    %v4872 = vpack.c.bf16 %v4860, %v4860
    %v4873 = vld [vmem:[#allocation5] sm:$0xf]
    %v4874 = vld [vmem:[#allocation5 + $0x4] sm:$0xf]
    %v4875 = vld [vmem:[#allocation5 + $0x8] sm:$0xf]
    %v4876 = vld [vmem:[#allocation5 + $0xc] sm:$0xf]
    %v4877 = vld [vmem:[#allocation5 + $0x10] sm:$0xf]
    %v4878 = vld [vmem:[#allocation5 + $0x14] sm:$0xf]
    %v4879 = vld [vmem:[#allocation5 + $0x18] sm:$0xf]
    %v4880 = vld [vmem:[#allocation5 + $0x1c] sm:$0xf]
    %v4881 = vld [vmem:[#allocation5 + $0x20] sm:$0xf]
    %v4882 = vld [vmem:[#allocation5 + $0x24] sm:$0xf]
    %v4883 = vld [vmem:[#allocation5 + $0x28] sm:$0xf]
    %v4884 = vld [vmem:[#allocation5 + $0x2c] sm:$0xf]
    %v4885 = vld [vmem:[#allocation5 + $0x30] sm:$0xf]
    %v4886 = vld [vmem:[#allocation5 + $0x34] sm:$0xf]
    %v4887 = vld [vmem:[#allocation5 + $0x38] sm:$0xf]
    %v4888 = vld [vmem:[#allocation5 + $0x3c] sm:$0xf]
    %v4889 = vld [vmem:[#allocation5 + $0x40] sm:$0xf]
    %v4890 = vld [vmem:[#allocation5 + $0x44] sm:$0xf]
    %v4891 = vld [vmem:[#allocation5 + $0x48] sm:$0xf]
    %v4892 = vld [vmem:[#allocation5 + $0x4c] sm:$0xf]
    %v4893 = vld [vmem:[#allocation5 + $0x50] sm:$0xf]
    %v4894 = vld [vmem:[#allocation5 + $0x54] sm:$0xf]
    %v4895 = vld [vmem:[#allocation5 + $0x58] sm:$0xf]
    %v4896 = vld [vmem:[#allocation5 + $0x5c] sm:$0xf]
    %v4897 = vld [vmem:[#allocation5 + $0x60] sm:$0xf]
    %v4898 = vld [vmem:[#allocation5 + $0x64] sm:$0xf]
    %v4899 = vld [vmem:[#allocation5 + $0x68] sm:$0xf]
    %v4900 = vld [vmem:[#allocation5 + $0x6c] sm:$0xf]
    %v4901 = vld [vmem:[#allocation5 + $0x70] sm:$0xf]
    %v4902 = vld [vmem:[#allocation5 + $0x74] sm:$0xf]
    %v4903 = vld [vmem:[#allocation5 + $0x78] sm:$0xf]
    %v4904 = vld [vmem:[#allocation5 + $0x7c] sm:$0xf]
    %v4905 = vld [vmem:[#allocation5 + $0x80] sm:$0xf]
    %v4906 = vld [vmem:[#allocation5 + $0x84] sm:$0xf]
    %v4907 = vld [vmem:[#allocation5 + $0x88] sm:$0xf]
    %v4908 = vld [vmem:[#allocation5 + $0x8c] sm:$0xf]
    %v4909 = vld [vmem:[#allocation5 + $0x90] sm:$0xf]
    %v4910 = vld [vmem:[#allocation5 + $0x94] sm:$0xf]
    %v4911 = vld [vmem:[#allocation5 + $0x98] sm:$0xf]
    %v4912 = vld [vmem:[#allocation5 + $0x9c] sm:$0xf]
    %v4913 = vld [vmem:[#allocation5 + $0xa0] sm:$0xf]
    %v4914 = vld [vmem:[#allocation5 + $0xa4] sm:$0xf]
    %v4915 = vld [vmem:[#allocation5 + $0xa8] sm:$0xf]
    %v4916 = vld [vmem:[#allocation5 + $0xac] sm:$0xf]
    %v4917 = vld [vmem:[#allocation5 + $0xb0] sm:$0xf]
    %v4918 = vld [vmem:[#allocation5 + $0xb4] sm:$0xf]
    %v4919 = vld [vmem:[#allocation5 + $0xb8] sm:$0xf]
    %v4920 = vld [vmem:[#allocation5 + $0xbc] sm:$0xf]
    %v4921 = vld [vmem:[#allocation5 + $0xc0] sm:$0xf]
    %v4922 = vld [vmem:[#allocation5 + $0xc4] sm:$0xf]
    %v4923 = vld [vmem:[#allocation5 + $0xc8] sm:$0xf]
    %v4924 = vld [vmem:[#allocation5 + $0xcc] sm:$0xf]
    %v4925 = vld [vmem:[#allocation5 + $0xd0] sm:$0xf]
    %v4926 = vld [vmem:[#allocation5 + $0xd4] sm:$0xf]
    %v4927 = vld [vmem:[#allocation5 + $0xd8] sm:$0xf]
    %v4928 = vld [vmem:[#allocation5 + $0xdc] sm:$0xf]
    %v4929 = vld [vmem:[#allocation5 + $0xe0] sm:$0xf]
    %v4930 = vld [vmem:[#allocation5 + $0xe4] sm:$0xf]
    %v4931 = vld [vmem:[#allocation5 + $0xe8] sm:$0xf]
    %v4932 = vld [vmem:[#allocation5 + $0xec] sm:$0xf]
    %v4933 = vld [vmem:[#allocation5 + $0xf0] sm:$0xf]
    %v4934 = vld [vmem:[#allocation5 + $0xf4] sm:$0xf]
    %v4935 = vld [vmem:[#allocation5 + $0xf8] sm:$0xf]
    %v4936 = vld [vmem:[#allocation5 + $0xfc] sm:$0xf]
    %v4937 = vld [vmem:[%s10] sm:$0x1]
    %v4939 = vperm.slane %v4937, 0
    %v5005 = vunpack.c.l.b16 %v4873
    %v5006 = vunpack.c.l.b16 %v4874
    %v5007 = vunpack.c.l.b16 %v4875
    %v5008 = vunpack.c.l.b16 %v4876
    %v5009 = vunpack.c.l.b16 %v4877
    %v5010 = vunpack.c.l.b16 %v4878
    %v5011 = vunpack.c.l.b16 %v4879
    %v5012 = vunpack.c.l.b16 %v4880
    %v5013 = vunpack.c.l.b16 %v4881
    %v5014 = vunpack.c.l.b16 %v4882
    %v5015 = vunpack.c.l.b16 %v4883
    %v5016 = vunpack.c.l.b16 %v4884
    %v5017 = vunpack.c.l.b16 %v4885
    %v5018 = vunpack.c.l.b16 %v4886
    %v5019 = vunpack.c.l.b16 %v4887
    %v5020 = vunpack.c.l.b16 %v4888
    %v5021 = vunpack.c.l.b16 %v4889
    %v5022 = vunpack.c.l.b16 %v4890
    %v5023 = vunpack.c.l.b16 %v4891
    %v5024 = vunpack.c.l.b16 %v4892
    %v5025 = vunpack.c.l.b16 %v4893
    %v5026 = vunpack.c.l.b16 %v4894
    %v5027 = vunpack.c.l.b16 %v4895
    %v5028 = vunpack.c.l.b16 %v4896
    %v5029 = vunpack.c.l.b16 %v4897
    %v5030 = vunpack.c.l.b16 %v4898
    %v5031 = vunpack.c.l.b16 %v4899
    %v5032 = vunpack.c.l.b16 %v4900
    %v5033 = vunpack.c.l.b16 %v4901
    %v5034 = vunpack.c.l.b16 %v4902
    %v5035 = vunpack.c.l.b16 %v4903
    %v5036 = vunpack.c.l.b16 %v4904
    %v5037 = vunpack.c.l.b16 %v4905
    %v5038 = vunpack.c.l.b16 %v4906
    %v5039 = vunpack.c.l.b16 %v4907
    %v5040 = vunpack.c.l.b16 %v4908
    %v5041 = vunpack.c.l.b16 %v4909
    %v5042 = vunpack.c.l.b16 %v4910
    %v5043 = vunpack.c.l.b16 %v4911
    %v5044 = vunpack.c.l.b16 %v4912
    %v5045 = vunpack.c.l.b16 %v4913
    %v5046 = vunpack.c.l.b16 %v4914
    %v5047 = vunpack.c.l.b16 %v4915
    %v5048 = vunpack.c.l.b16 %v4916
    %v5049 = vunpack.c.l.b16 %v4917
    %v5050 = vunpack.c.l.b16 %v4918
    %v5051 = vunpack.c.l.b16 %v4919
    %v5052 = vunpack.c.l.b16 %v4920
    %v5053 = vunpack.c.l.b16 %v4921
    %v5054 = vunpack.c.l.b16 %v4922
    %v5055 = vunpack.c.l.b16 %v4923
    %v5056 = vunpack.c.l.b16 %v4924
    %v5057 = vunpack.c.l.b16 %v4925
    %v5058 = vunpack.c.l.b16 %v4926
    %v5059 = vunpack.c.l.b16 %v4927
    %v5060 = vunpack.c.l.b16 %v4928
    %v5061 = vunpack.c.l.b16 %v4929
    %v5062 = vunpack.c.l.b16 %v4930
    %v5063 = vunpack.c.l.b16 %v4931
    %v5064 = vunpack.c.l.b16 %v4932
    %v5065 = vunpack.c.l.b16 %v4933
    %v5066 = vunpack.c.l.b16 %v4934
    %v5067 = vunpack.c.l.b16 %v4935
    %v5068 = vunpack.c.l.b16 %v4936
    %v5069 = vpack.c.b16 %v5006, %v5005
    %v5070 = vpack.c.b16 %v5008, %v5007
    %v5071 = vpack.c.b16 %v5010, %v5009
    %v5072 = vpack.c.b16 %v5012, %v5011
    %v5073 = vpack.c.b16 %v5014, %v5013
    %v5074 = vpack.c.b16 %v5016, %v5015
    %v5075 = vpack.c.b16 %v5018, %v5017
    %v5076 = vpack.c.b16 %v5020, %v5019
    %v5077 = vpack.c.b16 %v5022, %v5021
    %v5078 = vpack.c.b16 %v5024, %v5023
    %v5079 = vpack.c.b16 %v5026, %v5025
    %v5080 = vpack.c.b16 %v5028, %v5027
    %v5081 = vpack.c.b16 %v5030, %v5029
    %v5082 = vpack.c.b16 %v5032, %v5031
    %v5083 = vpack.c.b16 %v5034, %v5033
    %v5084 = vpack.c.b16 %v5036, %v5035
    %v5085 = vpack.c.b16 %v5038, %v5037
    %v5086 = vpack.c.b16 %v5040, %v5039
    %v5087 = vpack.c.b16 %v5042, %v5041
    %v5088 = vpack.c.b16 %v5044, %v5043
    %v5089 = vpack.c.b16 %v5046, %v5045
    %v5090 = vpack.c.b16 %v5048, %v5047
    %v5091 = vpack.c.b16 %v5050, %v5049
    %v5092 = vpack.c.b16 %v5052, %v5051
    %v5093 = vpack.c.b16 %v5054, %v5053
    %v5094 = vpack.c.b16 %v5056, %v5055
    %v5095 = vpack.c.b16 %v5058, %v5057
    %v5096 = vpack.c.b16 %v5060, %v5059
    %v5097 = vpack.c.b16 %v5062, %v5061
    %v5098 = vpack.c.b16 %v5064, %v5063
    %v5099 = vpack.c.b16 %v5066, %v5065
    %v5100 = vpack.c.b16 %v5068, %v5067
    %5133 = vmatpush.bf16.msra.mxu0 %v5076
    %5134 = vmatpush.bf16.msra.mxu0 %v5075
    %5135 = vmatpush.bf16.msra.mxu0 %v5074
    %5136 = vmatpush.bf16.msra.mxu0 %v5073
    %5137 = vmatpush.bf16.msra.mxu0 %v5072
    %5138 = vmatpush.bf16.msra.mxu0 %v5071
    %5139 = vmatpush.bf16.msra.mxu0 %v5070
    %5140 = vmatpush.bf16.msra.mxu0 %v5069
    %5141 = vmatmul.bf16.gmra.mxu0 %v4869
    %v5142 = vpop.f32.mrf.mxu0
    %v5143 = vadd.f32 %v4939, %v5142
    %v5144 = vpop.f32.mrf.mxu0
    %5145 = vdwg.mxu0
    %5146 = vmatpush.bf16.msra.mxu0 %v5084
    %5147 = vmatpush.bf16.msra.mxu0 %v5083
    %5148 = vmatpush.bf16.msra.mxu0 %v5082
    %5149 = vmatpush.bf16.msra.mxu0 %v5081
    %5150 = vmatpush.bf16.msra.mxu0 %v5080
    %5151 = vmatpush.bf16.msra.mxu0 %v5079
    %5152 = vmatpush.bf16.msra.mxu0 %v5078
    %5153 = vmatpush.bf16.msra.mxu0 %v5077
    %5154 = vmatmul.bf16.gmra.mxu0 %v4870
    %v5155 = vpop.f32.mrf.mxu0
    %v5156 = vadd.f32 %v5143, %v5155
    %v5157 = vpop.f32.mrf.mxu0
    %5158 = vdwg.mxu0
    %5159 = vmatpush.bf16.msra.mxu0 %v5092
    %5160 = vmatpush.bf16.msra.mxu0 %v5091
    %5161 = vmatpush.bf16.msra.mxu0 %v5090
    %5162 = vmatpush.bf16.msra.mxu0 %v5089
    %5163 = vmatpush.bf16.msra.mxu0 %v5088
    %5164 = vmatpush.bf16.msra.mxu0 %v5087
    %5165 = vmatpush.bf16.msra.mxu0 %v5086
    %5166 = vmatpush.bf16.msra.mxu0 %v5085
    %5167 = vmatmul.bf16.gmra.mxu0 %v4871
    %v5168 = vpop.f32.mrf.mxu0
    %v5169 = vadd.f32 %v5156, %v5168
    %v5170 = vpop.f32.mrf.mxu0
    %5171 = vdwg.mxu0
    %5172 = vmatpush.bf16.msra.mxu0 %v5100
    %5173 = vmatpush.bf16.msra.mxu0 %v5099
    %5174 = vmatpush.bf16.msra.mxu0 %v5098
    %5175 = vmatpush.bf16.msra.mxu0 %v5097
    %5176 = vmatpush.bf16.msra.mxu0 %v5096
    %5177 = vmatpush.bf16.msra.mxu0 %v5095
    %5178 = vmatpush.bf16.msra.mxu0 %v5094
    %5179 = vmatpush.bf16.msra.mxu0 %v5093
    %5180 = vmatmul.bf16.gmra.mxu0 %v4872
    %v5181 = vpop.f32.mrf.mxu0
    %v5182 = vadd.f32 %v5169, %v5181
    %v5183 = vpop.f32.mrf.mxu0
    %5184 = vdwg.mxu0
    %5185 = vst [vmem:[#allocation16] sm:$0xff] %v5182
    // Predicated region
    $region86: #{tpu_custom_call.1} parent=1 // pred_check
      _
    $region87: #{tpu_custom_call.1} parent=1 // pred_check_branch
      %5187 = sbr.rel (0) target = $region89
    $region88: #{tpu_custom_call.1} parent=1 // pred_region
      %5189 = vsyncadd [#allocation9], 0
      %s5191 = sshll.u32 [#allocation16], 4
      %s5192 = int_to_ptr.vmem [resolvable:$true] %s5191
      %s5193 = sshll.u32 %s11, 4
      %s5194 = int_to_ptr.hbm [resolvable:$true] %s5193
      %5196 = dma.vmem_to_hbm [thread:$0]  %s5192, 128, %s5194, [#allocation9]
    $region89: #{tpu_custom_call.1} parent=1 // pred_fallthru
      _
    // Predicated region
    $region90: #{tpu_custom_call.1} parent=1 // pred_check
      _
    $region91: #{tpu_custom_call.1} parent=1 // pred_check_branch
      %5198 = sbr.rel (0) target = $region93
    $region92: #{tpu_custom_call.1} parent=1 // pred_region
      %5200 = dma.done [#allocation9], 128
    $region93: #{tpu_custom_call.1} parent=1 // pred_fallthru
      _
    %5201 = vsyncpa [#allocation8], 1
    %5202 = vsyncpa [#allocation11], 1
    %5203 = vsyncpa [#allocation14], 1
    %5204 = vsyncpa [#allocation9], 1
  %5205 = vsyncmov [#allocation6]
  %s5206 = vpop.sfrf %5205
  %p5207 = scmp.eq.s32.totalorder %s5206, 0
  %p5208 = pneg %p5207
  %5210 = shalt.err (%p5208)
  %s5211 = scalar_lea.sflag [#allocation6], 1
  %5212 = vsyncmov %s5211
  %s5213 = vpop.sfrf %5212
  %p5214 = scmp.eq.s32.totalorder %s5213, 0
  %p5215 = pneg %p5214
  %5217 = shalt.err (%p5215)
  %s5218 = scalar_lea.sflag [#allocation6], 2
  %5219 = vsyncmov %s5218
  %s5220 = vpop.sfrf %5219
  %p5221 = scmp.eq.s32.totalorder %s5220, 0
  %p5222 = pneg %p5221
  %5224 = shalt.err (%p5222)
  %s5225 = scalar_lea.sflag [#allocation6], 3
  %5226 = vsyncmov %s5225
  %s5227 = vpop.sfrf %5226
  %p5228 = scmp.eq.s32.totalorder %s5227, 0
  %p5229 = pneg %p5228
  %5231 = shalt.err (%p5229)

</llo_original>
